<compile_context>
chip_gen: v7x
topology: tpu7x:2x2x1
jax: 0.10.0
libtpu: 0.0.40
codegen_flags: <defaults>
</compile_context>

<pallas_src>
import functools

import jax
import jax.numpy as jnp
from jax.experimental import pallas as pl
from jax.experimental.pallas import tpu as pltpu

BN_EPS = 1e-5
LANE = 128
SUBLANE = 8


def _round_up(x, m):
    return ((x + m - 1) // m) * m


# -----------------------------------------------------------------------------
# Shared per-layer math (used by the Pallas kernel and by the plain-JAX mirror):
#   y = maybe_relu( (x_bf16 @ dequant_bf16(w_int8)) * col_scale + bias )
# -----------------------------------------------------------------------------
def _dense(x, w_i8, scale, bias, relu):
    w = w_i8.astype(jnp.float32).astype(jnp.bfloat16)   # int8 -> bf16 (exact, <=127)
    y = jnp.dot(x.astype(jnp.bfloat16), w, preferred_element_type=jnp.float32)
    y = y * scale + bias                                 # per-channel dequant + BN-folded bias
    return jnp.maximum(y, 0.0) if relu else y


# -----------------------------------------------------------------------------
# Pallas kernel: the entire network in one gridless call
# -----------------------------------------------------------------------------
def _taxonomy_kernel(mano_ref, img_ref, mw_ref, iw_ref, cw_ref, ow_ref,
                     sc_ref, bs_ref, o_ref, mpad_ref, ipad_ref, *,
                     mano_dim, mano_pad, hidden, num_classes, out_pad):
    H = hidden
    B = mano_ref.shape[0]

    def sc(k, n=H):
        return sc_ref[k:k + 1, 0:n]

    def bs(k, n=H):
        return bs_ref[k:k + 1, 0:n]

    # ---- in-kernel zero padding (batch -> 8 sublanes, mano feat 45 -> 128 lanes)
    mpad_ref[...] = jnp.zeros_like(mpad_ref)
    mpad_ref[0:B, 0:mano_dim] = mano_ref[...]
    ipad_ref[...] = jnp.zeros_like(ipad_ref)
    ipad_ref[0:B, :] = img_ref[...]

    # ---- mano branch: scale/bias rows 0..2, weight slab rows [0:128|128:640|640:1152]
    m = mpad_ref[...]
    m = _dense(m, mw_ref[0:mano_pad, :], sc(0), bs(0), True)
    m = _dense(m, mw_ref[mano_pad:mano_pad + H, :], sc(1), bs(1), True)
    m = _dense(m, mw_ref[mano_pad + H:mano_pad + 2 * H, :], sc(2), bs(2), True)

    # ---- img branch: rows 3..5
    v = ipad_ref[...]
    v = _dense(v, iw_ref[0:H, :], sc(3), bs(3), True)
    v = _dense(v, iw_ref[H:2 * H, :], sc(4), bs(4), True)
    v = _dense(v, iw_ref[2 * H:3 * H, :], sc(5), bs(5), True)

    # ---- classifier[0], concat-free: cat([m, v], 1) @ W0 == m @ W0_top + v @ W0_bot
    wa = cw_ref[0:H, :].astype(jnp.float32).astype(jnp.bfloat16)
    wb = cw_ref[H:2 * H, :].astype(jnp.float32).astype(jnp.bfloat16)
    h = (jnp.dot(m.astype(jnp.bfloat16), wa, preferred_element_type=jnp.float32)
         + jnp.dot(v.astype(jnp.bfloat16), wb, preferred_element_type=jnp.float32))
    h = jnp.maximum(h * sc(6) + bs(6), 0.0)

    # ---- classifier[1], classifier[2] (final layer: no BN, no ReLU)
    h = _dense(h, cw_ref[2 * H:3 * H, :], sc(7), bs(7), True)
    y = _dense(h, ow_ref[...], sc(8, out_pad), bs(8, out_pad), False)

    # exact-shape output store (drops the batch / class padding)
    o_ref[...] = y[0:B, 0:num_classes].astype(o_ref.dtype)


# -----------------------------------------------------------------------------
# Raw (PyTorch-like) parameter construction
# -----------------------------------------------------------------------------
def _make_linear(key, fin, fout):
    kw, kb = jax.random.split(key)
    return {"w": jax.random.normal(kw, (fin, fout), jnp.float32) * 0.05,
            "b": jax.random.normal(kb, (fout,), jnp.float32) * 0.05}


def _make_bn(key, dim):
    kg, kb, km, kv = jax.random.split(key, 4)
    return {"gamma": 1.0 + 0.1 * jax.random.normal(kg, (dim,), jnp.float32),
            "beta": 0.1 * jax.random.normal(kb, (dim,), jnp.float32),
            "mean": 0.1 * jax.random.normal(km, (dim,), jnp.float32),
            "var": 0.5 + jnp.abs(jax.random.normal(kv, (dim,), jnp.float32))}


def make_params(key, mano_input_dim=45, img_input_dim=512, hidden_dim=512, num_classes=33):
    keys = jax.random.split(key, 17)

    def branch(ks, in_dim):
        dims = [(in_dim, hidden_dim), (hidden_dim, hidden_dim), (hidden_dim, hidden_dim)]
        return [{"lin": _make_linear(ks[2 * i], fi, fo), "bn": _make_bn(ks[2 * i + 1], fo)}
                for i, (fi, fo) in enumerate(dims)]

    return {
        "mano_branch": branch(keys[0:6], mano_input_dim),
        "img_branch": branch(keys[6:12], img_input_dim),
        "classifier": [
            {"lin": _make_linear(keys[12], 2 * hidden_dim, hidden_dim),
             "bn": _make_bn(keys[13], hidden_dim)},
            {"lin": _make_linear(keys[14], hidden_dim, hidden_dim),
             "bn": _make_bn(keys[15], hidden_dim)},
            {"lin": _make_linear(keys[16], hidden_dim, num_classes), "bn": None},
        ],
    }


# -----------------------------------------------------------------------------
# Fold BN, quantize weights to int8 (per-output-channel), pack into slabs
# -----------------------------------------------------------------------------
def _quantize_cols(w):
    """Symmetric per-output-channel int8 quantization: w ~= q * scale."""
    amax = jnp.max(jnp.abs(w), axis=0)
    scale = jnp.where(amax > 0, amax / 127.0, 1.0).astype(jnp.float32)
    q = jnp.clip(jnp.round(w / scale[None, :]), -127.0, 127.0).astype(jnp.int8)
    return q, scale


def prepare_inference_params(params, mano_input_dim=45, img_input_dim=512,
                             hidden_dim=512, num_classes=33):
    assert img_input_dim % LANE == 0, "img_input_dim must be a multiple of 128"
    assert hidden_dim % LANE == 0, "hidden_dim must be a multiple of 128"
    mano_pad = _round_up(mano_input_dim, LANE)
    out_pad = _round_up(num_classes, LANE)

    def fold(layer):
        """Fold eval-mode BatchNorm1d into the preceding Linear."""
        lin, bn = layer["lin"], layer["bn"]
        w, b = lin["w"], lin["b"]
        if bn is not None:
            s = bn["gamma"] / jnp.sqrt(bn["var"] + BN_EPS)
            w = w * s[None, :]
            b = b * s + (bn["beta"] - bn["mean"] * s)
        return w, b

    scales, biases = [], []

    def branch_slab(layers, in_dim, in_pad):
        qs = []
        for i, layer in enumerate(layers):
            w, b = fold(layer)
            if i == 0 and in_pad != in_dim:            # zero rows -> identical result
                w = jnp.zeros((in_pad, w.shape[1]), w.dtype).at[:in_dim, :].set(w)
            q, s = _quantize_cols(w)
            qs.append(q)
            scales.append(s)
            biases.append(b)
        return jnp.concatenate(qs, axis=0)

    mano_slab = branch_slab(params["mano_branch"], mano_input_dim, mano_pad)   # (1152, 512)
    img_slab = branch_slab(params["img_branch"], img_input_dim, img_input_dim)  # (1536, 512)

    cls = params["classifier"]
    w0, b0 = fold(cls[0])
    q0, s0 = _quantize_cols(w0)           # (2H, H): one column scale for both concat halves
    w1, b1 = fold(cls[1])
    q1, s1 = _quantize_cols(w1)
    w2, b2 = fold(cls[2])
    w2p = jnp.zeros((hidden_dim, out_pad), w2.dtype).at[:, :num_classes].set(w2)
    q2, s2 = _quantize_cols(w2p)          # padded columns: all-zero weights, scale 1
    b2p = jnp.zeros((out_pad,), jnp.float32).at[:num_classes].set(b2)

    cls_slab = jnp.concatenate([q0, q1], axis=0)       # (3H, H): [W0_top | W0_bot | W1]
    out_w = q2                                         # (H, out_pad)
    scales += [s0, s1, s2]
    biases += [b0, b1, b2p]

    n_rows = _round_up(len(scales), SUBLANE)           # 9 -> 16 rows

    def make_slab(rows):
        slab = jnp.zeros((n_rows, hidden_dim), jnp.float32)
        for i, r in enumerate(rows):
            slab = slab.at[i, :r.shape[0]].set(r.astype(jnp.float32))
        return slab

    return {
        "operands": (mano_slab, img_slab, cls_slab, out_w,
                     make_slab(scales), make_slab(biases)),
        "mano_dim": mano_input_dim, "mano_pad": mano_pad,
        "img_dim": img_input_dim, "hidden": hidden_dim,
        "num_classes": num_classes, "out_pad": out_pad,
    }


# -----------------------------------------------------------------------------
# Forward passes
# -----------------------------------------------------------------------------
def _prep_inputs(input_dict):
    mano = input_dict["mano_pose"]
    if mano.ndim == 3:
        mano = jnp.squeeze(mano, axis=1)               # module's squeeze(1)
    img = input_dict["img_feat"]
    return mano.astype(jnp.float32), img.astype(jnp.float32)


def taxonomy_forward_pallas(ip, input_dict):
    mano, img = _prep_inputs(input_dict)
    B = mano.shape[0]
    BP = max(_round_up(B, SUBLANE), SUBLANE)           # batch is padded in-kernel only

    kernel = functools.partial(
        _taxonomy_kernel,
        mano_dim=ip["mano_dim"], mano_pad=ip["mano_pad"], hidden=ip["hidden"],
        num_classes=ip["num_classes"], out_pad=ip["out_pad"])

    operands = (mano, img) + ip["operands"]
    flops = 2 * BP * sum(int(w.shape[0]) * int(w.shape[1])
                         for w in ip["operands"] if w.dtype == jnp.int8)
    bytes_accessed = (sum(int(a.size) * a.dtype.itemsize for a in operands)
                      + B * ip["num_classes"] * 4)

    # Gridless call: one invocation, every operand whole-resident in VMEM
    # (~2.2 MiB of int8 weights), no pipelining machinery / double buffering.
    return pl.pallas_call(
        kernel,
        out_shape=jax.ShapeDtypeStruct((B, ip["num_classes"]), jnp.float32),
        scratch_shapes=[pltpu.VMEM((BP, ip["mano_pad"]), jnp.float32),
                        pltpu.VMEM((BP, ip["img_dim"]), jnp.float32)],
        compiler_params=pltpu.CompilerParams(vmem_limit_bytes=16 * 1024 * 1024),
        cost_estimate=pl.CostEstimate(flops=int(flops), transcendentals=0,
                                      bytes_accessed=int(bytes_accessed)),
    )(*operands)


def taxonomy_forward_jax(ip, input_dict):
    """Plain-JAX mirror of the kernel math (same int8 slabs, same bf16 dots)."""
    mano, img = _prep_inputs(input_dict)
    B = mano.shape[0]
    mw, iw, cw, ow, sc, bs = ip["operands"]
    H, MP, MD = ip["hidden"], ip["mano_pad"], ip["mano_dim"]
    OP, NC = ip["out_pad"], ip["num_classes"]

    m = jnp.zeros((B, MP), jnp.float32).at[:, :MD].set(mano)
    m = _dense(m, mw[0:MP], sc[0:1, :H], bs[0:1, :H], True)
    m = _dense(m, mw[MP:MP + H], sc[1:2, :H], bs[1:2, :H], True)
    m = _dense(m, mw[MP + H:MP + 2 * H], sc[2:3, :H], bs[2:3, :H], True)

    v = img
    v = _dense(v, iw[0:H], sc[3:4, :H], bs[3:4, :H], True)
    v = _dense(v, iw[H:2 * H], sc[4:5, :H], bs[4:5, :H], True)
    v = _dense(v, iw[2 * H:3 * H], sc[5:6, :H], bs[5:6, :H], True)

    wa = cw[0:H].astype(jnp.float32).astype(jnp.bfloat16)
    wb = cw[H:2 * H].astype(jnp.float32).astype(jnp.bfloat16)
    h = (jnp.dot(m.astype(jnp.bfloat16), wa, preferred_element_type=jnp.float32)
         + jnp.dot(v.astype(jnp.bfloat16), wb, preferred_element_type=jnp.float32))
    h = jnp.maximum(h * sc[6:7, :H] + bs[6:7, :H], 0.0)

    h = _dense(h, cw[2 * H:3 * H], sc[7:8, :H], bs[7:8, :H], True)
    y = _dense(h, ow, sc[8:9, :OP], bs[8:9, :OP], False)
    return y[:, :NC]


def ref_forward(params, input_dict):
    """Eval-mode module semantics in plain f32 JAX (Linear -> BN -> ReLU -> Dropout=id)."""
    def block(x, layer):
        lin, bn = layer["lin"], layer["bn"]
        y = x @ lin["w"] + lin["b"]
        if bn is not None:
            y = (y - bn["mean"]) / jnp.sqrt(bn["var"] + BN_EPS) * bn["gamma"] + bn["beta"]
            y = jnp.maximum(y, 0.0)
        return y

    mano, img = _prep_inputs(input_dict)
    m = mano
    for layer in params["mano_branch"]:
        m = block(m, layer)
    v = img
    for layer in params["img_branch"]:
        v = block(v, layer)
    x = jnp.concatenate([m, v], axis=1)
    for layer in params["classifier"]:
        x = block(x, layer)
    return x


# -----------------------------------------------------------------------------
if __name__ == "__main__":
    key = jax.random.PRNGKey(0)
    kp, kx1, kx2 = jax.random.split(key, 3)

    B = 2
    MANO_DIM, IMG_DIM, HIDDEN, NUM_CLASSES = 45, 512, 512, 33

    params = make_params(kp, MANO_DIM, IMG_DIM, HIDDEN, NUM_CLASSES)
    ip = prepare_inference_params(params, MANO_DIM, IMG_DIM, HIDDEN, NUM_CLASSES)

    # mano_pose is (B, 1, 45) to exercise the squeeze(1) path; img_feat is (B, 512)
    input_dict = {
        "mano_pose": jax.random.normal(kx1, (B, 1, MANO_DIM), jnp.float32),
        "img_feat": jax.random.normal(kx2, (B, IMG_DIM), jnp.float32),
    }

    out = jax.block_until_ready(taxonomy_forward_pallas(ip, input_dict))
    assert out.shape == (B, NUM_CLASSES), out.shape

    # Tight check: Pallas kernel vs plain-JAX running the identical quantized math.
    ref_q = jax.block_until_ready(taxonomy_forward_jax(ip, input_dict))
    err_q = float(jnp.max(jnp.abs(out - ref_q)))
    assert jnp.allclose(out, ref_q, atol=2e-3, rtol=2e-3), err_q

    # Loose check: against the unfolded f32 eval-mode module reference (bounds the
    # int8-weight + bf16-activation quantization and BN-fold rounding error).
    ref32 = jax.block_until_ready(ref_forward(params, input_dict))
    err32 = float(jnp.max(jnp.abs(out - ref32)))
    assert jnp.allclose(out, ref32, atol=3e-1, rtol=3e-1), err32

    print("KERNEL_OK")
</pallas_src>

<mosaic_0001>
module attributes {stable_mosaic.version = 11 : i64} {
  func.func @_taxonomy_kernel(%arg0: memref<2x45xf32, #tpu.memory_space<vmem>>, %arg1: memref<2x512xf32, #tpu.memory_space<vmem>>, %arg2: memref<1152x512xi8, #tpu.memory_space<vmem>>, %arg3: memref<1536x512xi8, #tpu.memory_space<vmem>>, %arg4: memref<1536x512xi8, #tpu.memory_space<vmem>>, %arg5: memref<512x128xi8, #tpu.memory_space<vmem>>, %arg6: memref<16x512xf32, #tpu.memory_space<vmem>>, %arg7: memref<16x512xf32, #tpu.memory_space<vmem>>, %arg8: memref<2x33xf32, #tpu.memory_space<vmem>>, %arg9: memref<8x128xf32, #tpu.memory_space<vmem>>, %arg10: memref<8x512xf32, #tpu.memory_space<vmem>>) attributes {dimension_semantics = [], scalar_prefetch = 0 : i64, scratch_operands = 2 : i64, tpu.core_type = #tpu.core_type<tc>} {
    %cst = arith.constant 0.000000e+00 : f32
    %0 = vector.broadcast %cst : f32 to vector<8x128xf32>
    %c0 = arith.constant 0 : index
    %c0_0 = arith.constant 0 : index
    %1 = vector.load %arg9[%c0, %c0_0] : memref<8x128xf32, #tpu.memory_space<vmem>>, vector<8x128xf32>
    tpu.vector_store %arg9[%c0, %c0_0], %0 {strides = array<i32>} : memref<8x128xf32, #tpu.memory_space<vmem>>, vector<8x128xf32>,
    %c0_1 = arith.constant 0 : index
    %c0_2 = arith.constant 0 : index
    %2 = vector.load %arg0[%c0_1, %c0_2] : memref<2x45xf32, #tpu.memory_space<vmem>>, vector<2x45xf32>
    %c0_3 = arith.constant 0 : index
    %c0_4 = arith.constant 0 : index
    %3 = vector.load %arg9[%c0_3, %c0_4] : memref<8x128xf32, #tpu.memory_space<vmem>>, vector<2x45xf32>
    tpu.vector_store %arg9[%c0_3, %c0_4], %2 {strides = array<i32>} : memref<8x128xf32, #tpu.memory_space<vmem>>, vector<2x45xf32>,
    %cst_5 = arith.constant 0.000000e+00 : f32
    %4 = vector.broadcast %cst_5 : f32 to vector<8x512xf32>
    %c0_6 = arith.constant 0 : index
    %c0_7 = arith.constant 0 : index
    %5 = vector.load %arg10[%c0_6, %c0_7] : memref<8x512xf32, #tpu.memory_space<vmem>>, vector<8x512xf32>
    tpu.vector_store %arg10[%c0_6, %c0_7], %4 {strides = array<i32>} : memref<8x512xf32, #tpu.memory_space<vmem>>, vector<8x512xf32>,
    %c0_8 = arith.constant 0 : index
    %c0_9 = arith.constant 0 : index
    %6 = vector.load %arg1[%c0_8, %c0_9] : memref<2x512xf32, #tpu.memory_space<vmem>>, vector<2x512xf32>
    %c0_10 = arith.constant 0 : index
    %c0_11 = arith.constant 0 : index
    %7 = vector.load %arg10[%c0_10, %c0_11] : memref<8x512xf32, #tpu.memory_space<vmem>>, vector<2x512xf32>
    tpu.vector_store %arg10[%c0_10, %c0_11], %6 {strides = array<i32>} : memref<8x512xf32, #tpu.memory_space<vmem>>, vector<2x512xf32>,
    %c0_12 = arith.constant 0 : index
    %c0_13 = arith.constant 0 : index
    %8 = vector.load %arg9[%c0_12, %c0_13] : memref<8x128xf32, #tpu.memory_space<vmem>>, vector<8x128xf32>
    %c0_14 = arith.constant 0 : index
    %c0_15 = arith.constant 0 : index
    %9 = vector.load %arg2[%c0_14, %c0_15] : memref<1152x512xi8, #tpu.memory_space<vmem>>, vector<128x512xi8>
    %c0_16 = arith.constant 0 : index
    %c0_17 = arith.constant 0 : index
    %10 = vector.load %arg6[%c0_16, %c0_17] : memref<16x512xf32, #tpu.memory_space<vmem>>, vector<1x512xf32>
    %c0_18 = arith.constant 0 : index
    %c0_19 = arith.constant 0 : index
    %11 = vector.load %arg7[%c0_18, %c0_19] : memref<16x512xf32, #tpu.memory_space<vmem>>, vector<1x512xf32>
    %12 = arith.sitofp %9 : vector<128x512xi8> to vector<128x512xf32>
    %13 = arith.truncf %12 : vector<128x512xf32> to vector<128x512xbf16>
    %14 = arith.truncf %8 : vector<8x128xf32> to vector<8x128xbf16>
    %cst_20 = arith.constant dense<0.000000e+00> : vector<8x512xf32>
    %15 = tpu.matmul %14, %13, %cst_20 {dimension_numbers = #tpu.dot_dimension_numbers<[1], [0], [0], [1], [0, 0, 1, 1], [], []>} : vector<8x128xbf16>, vector<128x512xbf16>, vector<8x512xf32> -> vector<8x512xf32>
    %16 = vector.broadcast %10 : vector<1x512xf32> to vector<8x512xf32>
    %17 = arith.mulf %15, %16 : vector<8x512xf32>
    %18 = vector.broadcast %11 : vector<1x512xf32> to vector<8x512xf32>
    %19 = arith.addf %17, %18 : vector<8x512xf32>
    %cst_21 = arith.constant 0.000000e+00 : f32
    %20 = vector.broadcast %cst_21 : f32 to vector<8x512xf32>
    %21 = arith.maximumf %19, %20 : vector<8x512xf32>
    %c128 = arith.constant 128 : index
    %c0_22 = arith.constant 0 : index
    %22 = vector.load %arg2[%c128, %c0_22] : memref<1152x512xi8, #tpu.memory_space<vmem>>, vector<512x512xi8>
    %c1 = arith.constant 1 : index
    %c0_23 = arith.constant 0 : index
    %23 = vector.load %arg6[%c1, %c0_23] : memref<16x512xf32, #tpu.memory_space<vmem>>, vector<1x512xf32>
    %c1_24 = arith.constant 1 : index
    %c0_25 = arith.constant 0 : index
    %24 = vector.load %arg7[%c1_24, %c0_25] : memref<16x512xf32, #tpu.memory_space<vmem>>, vector<1x512xf32>
    %25 = arith.sitofp %22 : vector<512x512xi8> to vector<512x512xf32>
    %26 = arith.truncf %25 : vector<512x512xf32> to vector<512x512xbf16>
    %27 = arith.truncf %21 : vector<8x512xf32> to vector<8x512xbf16>
    %cst_26 = arith.constant dense<0.000000e+00> : vector<8x512xf32>
    %28 = tpu.matmul %27, %26, %cst_26 {dimension_numbers = #tpu.dot_dimension_numbers<[1], [0], [0], [1], [0, 0, 1, 1], [], []>} : vector<8x512xbf16>, vector<512x512xbf16>, vector<8x512xf32> -> vector<8x512xf32>
    %29 = vector.broadcast %23 : vector<1x512xf32> to vector<8x512xf32>
    %30 = arith.mulf %28, %29 : vector<8x512xf32>
    %31 = vector.broadcast %24 : vector<1x512xf32> to vector<8x512xf32>
    %32 = arith.addf %30, %31 : vector<8x512xf32>
    %cst_27 = arith.constant 0.000000e+00 : f32
    %33 = vector.broadcast %cst_27 : f32 to vector<8x512xf32>
    %34 = arith.maximumf %32, %33 : vector<8x512xf32>
    %c640 = arith.constant 640 : index
    %c0_28 = arith.constant 0 : index
    %35 = vector.load %arg2[%c640, %c0_28] : memref<1152x512xi8, #tpu.memory_space<vmem>>, vector<512x512xi8>
    %c2 = arith.constant 2 : index
    %c0_29 = arith.constant 0 : index
    %36 = vector.load %arg6[%c2, %c0_29] : memref<16x512xf32, #tpu.memory_space<vmem>>, vector<1x512xf32>
    %c2_30 = arith.constant 2 : index
    %c0_31 = arith.constant 0 : index
    %37 = vector.load %arg7[%c2_30, %c0_31] : memref<16x512xf32, #tpu.memory_space<vmem>>, vector<1x512xf32>
    %38 = arith.sitofp %35 : vector<512x512xi8> to vector<512x512xf32>
    %39 = arith.truncf %38 : vector<512x512xf32> to vector<512x512xbf16>
    %40 = arith.truncf %34 : vector<8x512xf32> to vector<8x512xbf16>
    %cst_32 = arith.constant dense<0.000000e+00> : vector<8x512xf32>
    %41 = tpu.matmul %40, %39, %cst_32 {dimension_numbers = #tpu.dot_dimension_numbers<[1], [0], [0], [1], [0, 0, 1, 1], [], []>} : vector<8x512xbf16>, vector<512x512xbf16>, vector<8x512xf32> -> vector<8x512xf32>
    %42 = vector.broadcast %36 : vector<1x512xf32> to vector<8x512xf32>
    %43 = arith.mulf %41, %42 : vector<8x512xf32>
    %44 = vector.broadcast %37 : vector<1x512xf32> to vector<8x512xf32>
    %45 = arith.addf %43, %44 : vector<8x512xf32>
    %cst_33 = arith.constant 0.000000e+00 : f32
    %46 = vector.broadcast %cst_33 : f32 to vector<8x512xf32>
    %47 = arith.maximumf %45, %46 : vector<8x512xf32>
    %c0_34 = arith.constant 0 : index
    %c0_35 = arith.constant 0 : index
    %48 = vector.load %arg10[%c0_34, %c0_35] : memref<8x512xf32, #tpu.memory_space<vmem>>, vector<8x512xf32>
    %c0_36 = arith.constant 0 : index
    %c0_37 = arith.constant 0 : index
    %49 = vector.load %arg3[%c0_36, %c0_37] : memref<1536x512xi8, #tpu.memory_space<vmem>>, vector<512x512xi8>
    %c3 = arith.constant 3 : index
    %c0_38 = arith.constant 0 : index
    %50 = vector.load %arg6[%c3, %c0_38] : memref<16x512xf32, #tpu.memory_space<vmem>>, vector<1x512xf32>
    %c3_39 = arith.constant 3 : index
    %c0_40 = arith.constant 0 : index
    %51 = vector.load %arg7[%c3_39, %c0_40] : memref<16x512xf32, #tpu.memory_space<vmem>>, vector<1x512xf32>
    %52 = arith.sitofp %49 : vector<512x512xi8> to vector<512x512xf32>
    %53 = arith.truncf %52 : vector<512x512xf32> to vector<512x512xbf16>
    %54 = arith.truncf %48 : vector<8x512xf32> to vector<8x512xbf16>
    %cst_41 = arith.constant dense<0.000000e+00> : vector<8x512xf32>
    %55 = tpu.matmul %54, %53, %cst_41 {dimension_numbers = #tpu.dot_dimension_numbers<[1], [0], [0], [1], [0, 0, 1, 1], [], []>} : vector<8x512xbf16>, vector<512x512xbf16>, vector<8x512xf32> -> vector<8x512xf32>
    %56 = vector.broadcast %50 : vector<1x512xf32> to vector<8x512xf32>
    %57 = arith.mulf %55, %56 : vector<8x512xf32>
    %58 = vector.broadcast %51 : vector<1x512xf32> to vector<8x512xf32>
    %59 = arith.addf %57, %58 : vector<8x512xf32>
    %cst_42 = arith.constant 0.000000e+00 : f32
    %60 = vector.broadcast %cst_42 : f32 to vector<8x512xf32>
    %61 = arith.maximumf %59, %60 : vector<8x512xf32>
    %c512 = arith.constant 512 : index
    %c0_43 = arith.constant 0 : index
    %62 = vector.load %arg3[%c512, %c0_43] : memref<1536x512xi8, #tpu.memory_space<vmem>>, vector<512x512xi8>
    %c4 = arith.constant 4 : index
    %c0_44 = arith.constant 0 : index
    %63 = vector.load %arg6[%c4, %c0_44] : memref<16x512xf32, #tpu.memory_space<vmem>>, vector<1x512xf32>
    %c4_45 = arith.constant 4 : index
    %c0_46 = arith.constant 0 : index
    %64 = vector.load %arg7[%c4_45, %c0_46] : memref<16x512xf32, #tpu.memory_space<vmem>>, vector<1x512xf32>
    %65 = arith.sitofp %62 : vector<512x512xi8> to vector<512x512xf32>
    %66 = arith.truncf %65 : vector<512x512xf32> to vector<512x512xbf16>
    %67 = arith.truncf %61 : vector<8x512xf32> to vector<8x512xbf16>
    %cst_47 = arith.constant dense<0.000000e+00> : vector<8x512xf32>
    %68 = tpu.matmul %67, %66, %cst_47 {dimension_numbers = #tpu.dot_dimension_numbers<[1], [0], [0], [1], [0, 0, 1, 1], [], []>} : vector<8x512xbf16>, vector<512x512xbf16>, vector<8x512xf32> -> vector<8x512xf32>
    %69 = vector.broadcast %63 : vector<1x512xf32> to vector<8x512xf32>
    %70 = arith.mulf %68, %69 : vector<8x512xf32>
    %71 = vector.broadcast %64 : vector<1x512xf32> to vector<8x512xf32>
    %72 = arith.addf %70, %71 : vector<8x512xf32>
    %cst_48 = arith.constant 0.000000e+00 : f32
    %73 = vector.broadcast %cst_48 : f32 to vector<8x512xf32>
    %74 = arith.maximumf %72, %73 : vector<8x512xf32>
    %c1024 = arith.constant 1024 : index
    %c0_49 = arith.constant 0 : index
    %75 = vector.load %arg3[%c1024, %c0_49] : memref<1536x512xi8, #tpu.memory_space<vmem>>, vector<512x512xi8>
    %c5 = arith.constant 5 : index
    %c0_50 = arith.constant 0 : index
    %76 = vector.load %arg6[%c5, %c0_50] : memref<16x512xf32, #tpu.memory_space<vmem>>, vector<1x512xf32>
    %c5_51 = arith.constant 5 : index
    %c0_52 = arith.constant 0 : index
    %77 = vector.load %arg7[%c5_51, %c0_52] : memref<16x512xf32, #tpu.memory_space<vmem>>, vector<1x512xf32>
    %78 = arith.sitofp %75 : vector<512x512xi8> to vector<512x512xf32>
    %79 = arith.truncf %78 : vector<512x512xf32> to vector<512x512xbf16>
    %80 = arith.truncf %74 : vector<8x512xf32> to vector<8x512xbf16>
    %cst_53 = arith.constant dense<0.000000e+00> : vector<8x512xf32>
    %81 = tpu.matmul %80, %79, %cst_53 {dimension_numbers = #tpu.dot_dimension_numbers<[1], [0], [0], [1], [0, 0, 1, 1], [], []>} : vector<8x512xbf16>, vector<512x512xbf16>, vector<8x512xf32> -> vector<8x512xf32>
    %82 = vector.broadcast %76 : vector<1x512xf32> to vector<8x512xf32>
    %83 = arith.mulf %81, %82 : vector<8x512xf32>
    %84 = vector.broadcast %77 : vector<1x512xf32> to vector<8x512xf32>
    %85 = arith.addf %83, %84 : vector<8x512xf32>
    %cst_54 = arith.constant 0.000000e+00 : f32
    %86 = vector.broadcast %cst_54 : f32 to vector<8x512xf32>
    %87 = arith.maximumf %85, %86 : vector<8x512xf32>
    %c0_55 = arith.constant 0 : index
    %c0_56 = arith.constant 0 : index
    %88 = vector.load %arg4[%c0_55, %c0_56] : memref<1536x512xi8, #tpu.memory_space<vmem>>, vector<512x512xi8>
    %89 = arith.sitofp %88 : vector<512x512xi8> to vector<512x512xf32>
    %90 = arith.truncf %89 : vector<512x512xf32> to vector<512x512xbf16>
    %c512_57 = arith.constant 512 : index
    %c0_58 = arith.constant 0 : index
    %91 = vector.load %arg4[%c512_57, %c0_58] : memref<1536x512xi8, #tpu.memory_space<vmem>>, vector<512x512xi8>
    %92 = arith.sitofp %91 : vector<512x512xi8> to vector<512x512xf32>
    %93 = arith.truncf %92 : vector<512x512xf32> to vector<512x512xbf16>
    %94 = arith.truncf %47 : vector<8x512xf32> to vector<8x512xbf16>
    %cst_59 = arith.constant dense<0.000000e+00> : vector<8x512xf32>
    %95 = tpu.matmul %94, %90, %cst_59 {dimension_numbers = #tpu.dot_dimension_numbers<[1], [0], [0], [1], [0, 0, 1, 1], [], []>} : vector<8x512xbf16>, vector<512x512xbf16>, vector<8x512xf32> -> vector<8x512xf32>
    %96 = arith.truncf %87 : vector<8x512xf32> to vector<8x512xbf16>
    %cst_60 = arith.constant dense<0.000000e+00> : vector<8x512xf32>
    %97 = tpu.matmul %96, %93, %cst_60 {dimension_numbers = #tpu.dot_dimension_numbers<[1], [0], [0], [1], [0, 0, 1, 1], [], []>} : vector<8x512xbf16>, vector<512x512xbf16>, vector<8x512xf32> -> vector<8x512xf32>
    %98 = arith.addf %95, %97 : vector<8x512xf32>
    %c6 = arith.constant 6 : index
    %c0_61 = arith.constant 0 : index
    %99 = vector.load %arg6[%c6, %c0_61] : memref<16x512xf32, #tpu.memory_space<vmem>>, vector<1x512xf32>
    %100 = vector.broadcast %99 : vector<1x512xf32> to vector<8x512xf32>
    %101 = arith.mulf %98, %100 : vector<8x512xf32>
    %c6_62 = arith.constant 6 : index
    %c0_63 = arith.constant 0 : index
    %102 = vector.load %arg7[%c6_62, %c0_63] : memref<16x512xf32, #tpu.memory_space<vmem>>, vector<1x512xf32>
    %103 = vector.broadcast %102 : vector<1x512xf32> to vector<8x512xf32>
    %104 = arith.addf %101, %103 : vector<8x512xf32>
    %cst_64 = arith.constant 0.000000e+00 : f32
    %105 = vector.broadcast %cst_64 : f32 to vector<8x512xf32>
    %106 = arith.maximumf %104, %105 : vector<8x512xf32>
    %c1024_65 = arith.constant 1024 : index
    %c0_66 = arith.constant 0 : index
    %107 = vector.load %arg4[%c1024_65, %c0_66] : memref<1536x512xi8, #tpu.memory_space<vmem>>, vector<512x512xi8>
    %c7 = arith.constant 7 : index
    %c0_67 = arith.constant 0 : index
    %108 = vector.load %arg6[%c7, %c0_67] : memref<16x512xf32, #tpu.memory_space<vmem>>, vector<1x512xf32>
    %c7_68 = arith.constant 7 : index
    %c0_69 = arith.constant 0 : index
    %109 = vector.load %arg7[%c7_68, %c0_69] : memref<16x512xf32, #tpu.memory_space<vmem>>, vector<1x512xf32>
    %110 = arith.sitofp %107 : vector<512x512xi8> to vector<512x512xf32>
    %111 = arith.truncf %110 : vector<512x512xf32> to vector<512x512xbf16>
    %112 = arith.truncf %106 : vector<8x512xf32> to vector<8x512xbf16>
    %cst_70 = arith.constant dense<0.000000e+00> : vector<8x512xf32>
    %113 = tpu.matmul %112, %111, %cst_70 {dimension_numbers = #tpu.dot_dimension_numbers<[1], [0], [0], [1], [0, 0, 1, 1], [], []>} : vector<8x512xbf16>, vector<512x512xbf16>, vector<8x512xf32> -> vector<8x512xf32>
    %114 = vector.broadcast %108 : vector<1x512xf32> to vector<8x512xf32>
    %115 = arith.mulf %113, %114 : vector<8x512xf32>
    %116 = vector.broadcast %109 : vector<1x512xf32> to vector<8x512xf32>
    %117 = arith.addf %115, %116 : vector<8x512xf32>
    %cst_71 = arith.constant 0.000000e+00 : f32
    %118 = vector.broadcast %cst_71 : f32 to vector<8x512xf32>
    %119 = arith.maximumf %117, %118 : vector<8x512xf32>
    %c0_72 = arith.constant 0 : index
    %c0_73 = arith.constant 0 : index
    %120 = vector.load %arg5[%c0_72, %c0_73] : memref<512x128xi8, #tpu.memory_space<vmem>>, vector<512x128xi8>
    %c8 = arith.constant 8 : index
    %c0_74 = arith.constant 0 : index
    %121 = vector.load %arg6[%c8, %c0_74] : memref<16x512xf32, #tpu.memory_space<vmem>>, vector<1x128xf32>
    %c8_75 = arith.constant 8 : index
    %c0_76 = arith.constant 0 : index
    %122 = vector.load %arg7[%c8_75, %c0_76] : memref<16x512xf32, #tpu.memory_space<vmem>>, vector<1x128xf32>
    %123 = arith.sitofp %120 : vector<512x128xi8> to vector<512x128xf32>
    %124 = arith.truncf %123 : vector<512x128xf32> to vector<512x128xbf16>
    %125 = arith.truncf %119 : vector<8x512xf32> to vector<8x512xbf16>
    %cst_77 = arith.constant dense<0.000000e+00> : vector<8x128xf32>
    %126 = tpu.matmul %125, %124, %cst_77 {dimension_numbers = #tpu.dot_dimension_numbers<[1], [0], [0], [1], [0, 0, 1, 1], [], []>} : vector<8x512xbf16>, vector<512x128xbf16>, vector<8x128xf32> -> vector<8x128xf32>
    %127 = vector.broadcast %121 : vector<1x128xf32> to vector<8x128xf32>
    %128 = arith.mulf %126, %127 : vector<8x128xf32>
    %129 = vector.broadcast %122 : vector<1x128xf32> to vector<8x128xf32>
    %130 = arith.addf %128, %129 : vector<8x128xf32>
    %131 = vector.extract_strided_slice %130 {offsets = [0, 0], sizes = [2, 33], strides = [1, 1]} : vector<8x128xf32> to vector<2x33xf32>
    %c0_78 = arith.constant 0 : index
    %c0_79 = arith.constant 0 : index
    %132 = vector.load %arg8[%c0_78, %c0_79] : memref<2x33xf32, #tpu.memory_space<vmem>>, vector<2x33xf32>
    tpu.vector_store %arg8[%c0_78, %c0_79], %131 {strides = array<i32>} : memref<2x33xf32, #tpu.memory_space<vmem>>, vector<2x33xf32>,
    return
  }
}

</mosaic_0001>

<llo_original>
// kernel: tpu_custom_call.1
$region0: #{tpu_custom_call.1}
  #allocation0 [shape = 'u32[]', space=smem, size = 0x4, offset = 0x4, fixed_abs, tag = 'smem constant byte address 0x4 - core index']
  #allocation1 [shape = 'u32[144,128]{1,0:T(1,128)}', space=vmem, size = 0x12000, scoped, tag = 'internal scratch']
  #allocation2 [shape = 'f32[8,128]{1,0:T(8,128)}', space=vmem, size = 0x1000, scoped, tag = 'scratch operand']
  #allocation3 [shape = 'f32[8,512]{1,0:T(8,128)}', space=vmem, size = 0x4000, scoped, tag = 'scratch operand']
  %s0 = inlined_call_operand.hbm [shape: f32[2,45], index: 0, kind: input, shape index: {}]
  %s1 = inlined_call_operand.hbm [shape: f32[2,512], index: 1, kind: input, shape index: {}]
  %s2 = inlined_call_operand.hbm [shape: s8[1152,512], index: 2, kind: input, shape index: {}]
  %s3 = inlined_call_operand.hbm [shape: s8[1536,512], index: 3, kind: input, shape index: {}]
  %s4 = inlined_call_operand.hbm [shape: s8[1536,512], index: 4, kind: input, shape index: {}]
  %s5 = inlined_call_operand.hbm [shape: s8[512,128], index: 5, kind: input, shape index: {}]
  %s6 = inlined_call_operand.hbm [shape: f32[16,512], index: 6, kind: input, shape index: {}]
  %s7 = inlined_call_operand.hbm [shape: f32[16,512], index: 7, kind: input, shape index: {}]
  %s8 = inlined_call_operand.hbm [shape: f32[2,33], index: 8, kind: output, shape index: {}]
  %s9 = sld [smem:[#allocation0]]
  $region74: #{tpu_custom_call.1} parent=0
    _
  %s11 = ssub.s32 1, %s9
  %s12 = scalar_select 0, %s11, %s9
  $region1: #{tpu_custom_call.1} parent=0
    #allocation4 [shape = 'u8[1024]{0}', space=vmem, size = 0x400, scoped, tag = 'input window, operand 0, single buffered']
    #allocation5 [shape = 's32[1]{0}', space=sflag, size = 0x4, scoped, tag = 'scoped memory for tpu_custom_call.1']
    #allocation6 [shape = 's32[1]{0}', space=sflag, size = 0x4, scoped, tag = 'scoped memory for tpu_custom_call.1']
    #allocation7 [shape = 'u8[4096]{0}', space=vmem, size = 0x1000, scoped, tag = 'input window, operand 1, single buffered']
    #allocation8 [shape = 's32[1]{0}', space=sflag, size = 0x4, scoped, tag = 'scoped memory for tpu_custom_call.1']
    #allocation9 [shape = 'u8[589824]{0}', space=vmem, size = 0x90000, scoped, tag = 'input window, operand 2, single buffered']
    #allocation10 [shape = 'u8[786432]{0}', space=vmem, size = 0xc0000, scoped, tag = 'input window, operand 3, single buffered']
    #allocation11 [shape = 's32[1]{0}', space=sflag, size = 0x4, scoped, tag = 'scoped memory for tpu_custom_call.1']
    #allocation12 [shape = 'u8[786432]{0}', space=vmem, size = 0xc0000, scoped, tag = 'input window, operand 4, single buffered']
    #allocation13 [shape = 'u8[65536]{0}', space=vmem, size = 0x10000, scoped, tag = 'input window, operand 5, single buffered']
    #allocation14 [shape = 's32[1]{0}', space=sflag, size = 0x4, scoped, tag = 'scoped memory for tpu_custom_call.1']
    #allocation15 [shape = 'u8[32768]{0}', space=vmem, size = 0x8000, scoped, tag = 'input window, operand 6, single buffered']
    #allocation16 [shape = 'u8[32768]{0}', space=vmem, size = 0x8000, scoped, tag = 'input window, operand 7, single buffered']
    #allocation17 [shape = 's32[1]{0}', space=sflag, size = 0x4, scoped, tag = 'scoped memory for tpu_custom_call.1']
    #allocation18 [shape = 'u8[1024]{0}', space=vmem, size = 0x400, scoped, tag = 'output window, operand 0, single buffered']
    %13 = vsyncpa [#allocation5], 0
    %14 = vsyncpa [#allocation8], 0
    %15 = vsyncpa [#allocation11], 0
    %16 = vsyncpa [#allocation14], 0
    %17 = vsyncpa [#allocation17], 0
    %18 = vsyncpa [#allocation6], 0
    // Predicated region
    $region2: #{tpu_custom_call.1} parent=1 // pred_check
      _
    $region3: #{tpu_custom_call.1} parent=1 // pred_check_branch
      %20 = sbr.rel (0) target = $region5
    $region4: #{tpu_custom_call.1} parent=1 // pred_region
      %s22 = ssub.s32 32, 32
      %23 = vsyncadd [#allocation5], %s22
      %s25 = sshll.u32 [#allocation4], 4
      %s26 = int_to_ptr.vmem [resolvable:$true] %s25
      %28 = dma.hbm_to_vmem [thread:$0]  %s0, 32, %s26, [#allocation5]
    $region5: #{tpu_custom_call.1} parent=1 // pred_fallthru
      _
    // Predicated region
    $region6: #{tpu_custom_call.1} parent=1 // pred_check
      _
    $region7: #{tpu_custom_call.1} parent=1 // pred_check_branch
      %30 = sbr.rel (0) target = $region9
    $region8: #{tpu_custom_call.1} parent=1 // pred_region
      %s32 = ssub.s32 128, 128
      %33 = vsyncadd [#allocation8], %s32
      %s35 = sshll.u32 [#allocation7], 4
      %s36 = int_to_ptr.vmem [resolvable:$true] %s35
      %38 = dma.hbm_to_vmem [thread:$0]  %s1, 128, %s36, [#allocation8]
    $region9: #{tpu_custom_call.1} parent=1 // pred_fallthru
      _
    // Predicated region
    $region10: #{tpu_custom_call.1} parent=1 // pred_check
      _
    $region11: #{tpu_custom_call.1} parent=1 // pred_check_branch
      %40 = sbr.rel (0) target = $region13
    $region12: #{tpu_custom_call.1} parent=1 // pred_region
      %s42 = ssub.s32 18432, 18432
      %43 = vsyncadd [#allocation8], %s42
      %s44 = sshll.u32 [#allocation9], 4
      %s45 = int_to_ptr.vmem [resolvable:$true] %s44
      %50 = dma.hbm_to_vmem [thread:$0]  %s2, 18432, %s45, [#allocation8], 512, 512, 32
    $region13: #{tpu_custom_call.1} parent=1 // pred_fallthru
      _
    // Predicated region
    $region14: #{tpu_custom_call.1} parent=1 // pred_check
      _
    $region15: #{tpu_custom_call.1} parent=1 // pred_check_branch
      %52 = sbr.rel (0) target = $region17
    $region16: #{tpu_custom_call.1} parent=1 // pred_region
      %s54 = ssub.s32 24576, 24576
      %55 = vsyncadd [#allocation11], %s54
      %s56 = sshll.u32 [#allocation10], 4
      %s57 = int_to_ptr.vmem [resolvable:$true] %s56
      %62 = dma.hbm_to_vmem [thread:$0]  %s3, 24576, %s57, [#allocation11], 512, 512, 32
    $region17: #{tpu_custom_call.1} parent=1 // pred_fallthru
      _
    // Predicated region
    $region18: #{tpu_custom_call.1} parent=1 // pred_check
      _
    $region19: #{tpu_custom_call.1} parent=1 // pred_check_branch
      %64 = sbr.rel (0) target = $region21
    $region20: #{tpu_custom_call.1} parent=1 // pred_region
      %s66 = ssub.s32 24576, 24576
      %67 = vsyncadd [#allocation11], %s66
      %s68 = sshll.u32 [#allocation12], 4
      %s69 = int_to_ptr.vmem [resolvable:$true] %s68
      %74 = dma.hbm_to_vmem [thread:$0]  %s4, 24576, %s69, [#allocation11], 512, 512, 32
    $region21: #{tpu_custom_call.1} parent=1 // pred_fallthru
      _
    // Predicated region
    $region22: #{tpu_custom_call.1} parent=1 // pred_check
      _
    $region23: #{tpu_custom_call.1} parent=1 // pred_check_branch
      %76 = sbr.rel (0) target = $region25
    $region24: #{tpu_custom_call.1} parent=1 // pred_region
      %s78 = ssub.s32 2048, 2048
      %79 = vsyncadd [#allocation14], %s78
      %s80 = sshll.u32 [#allocation13], 4
      %s81 = int_to_ptr.vmem [resolvable:$true] %s80
      %86 = dma.hbm_to_vmem [thread:$0]  %s5, 2048, %s81, [#allocation14], 128, 128, 8
    $region25: #{tpu_custom_call.1} parent=1 // pred_fallthru
      _
    // Predicated region
    $region26: #{tpu_custom_call.1} parent=1 // pred_check
      _
    $region27: #{tpu_custom_call.1} parent=1 // pred_check_branch
      %88 = sbr.rel (0) target = $region29
    $region28: #{tpu_custom_call.1} parent=1 // pred_region
      %s90 = ssub.s32 1024, 1024
      %91 = vsyncadd [#allocation14], %s90
      %s92 = sshll.u32 [#allocation15], 4
      %s93 = int_to_ptr.vmem [resolvable:$true] %s92
      %98 = dma.hbm_to_vmem [thread:$0]  %s6, 1024, %s93, [#allocation14], 512, 512, 32
    $region29: #{tpu_custom_call.1} parent=1 // pred_fallthru
      _
    // Predicated region
    $region30: #{tpu_custom_call.1} parent=1 // pred_check
      _
    $region31: #{tpu_custom_call.1} parent=1 // pred_check_branch
      %100 = sbr.rel (0) target = $region33
    $region32: #{tpu_custom_call.1} parent=1 // pred_region
      %s102 = ssub.s32 1024, 1024
      %103 = vsyncadd [#allocation17], %s102
      %s104 = sshll.u32 [#allocation16], 4
      %s105 = int_to_ptr.vmem [resolvable:$true] %s104
      %110 = dma.hbm_to_vmem [thread:$0]  %s7, 1024, %s105, [#allocation17], 512, 512, 32
    $region33: #{tpu_custom_call.1} parent=1 // pred_fallthru
      _
    // Predicated region
    $region34: #{tpu_custom_call.1} parent=1 // pred_check
      _
    $region35: #{tpu_custom_call.1} parent=1 // pred_check_branch
      %112 = sbr.rel (0) target = $region37
    $region36: #{tpu_custom_call.1} parent=1 // pred_region
      %113 = dma.done [#allocation5], 32
    $region37: #{tpu_custom_call.1} parent=1 // pred_fallthru
      _
    // Predicated region
    $region38: #{tpu_custom_call.1} parent=1 // pred_check
      _
    $region39: #{tpu_custom_call.1} parent=1 // pred_check_branch
      %115 = sbr.rel (0) target = $region41
    $region40: #{tpu_custom_call.1} parent=1 // pred_region
      %116 = dma.done [#allocation8], 128
    $region41: #{tpu_custom_call.1} parent=1 // pred_fallthru
      _
    // Predicated region
    $region42: #{tpu_custom_call.1} parent=1 // pred_check
      _
    $region43: #{tpu_custom_call.1} parent=1 // pred_check_branch
      %118 = sbr.rel (0) target = $region45
    $region44: #{tpu_custom_call.1} parent=1 // pred_region
      %119 = dma.done [#allocation8], 18432
    $region45: #{tpu_custom_call.1} parent=1 // pred_fallthru
      _
    // Predicated region
    $region46: #{tpu_custom_call.1} parent=1 // pred_check
      _
    $region47: #{tpu_custom_call.1} parent=1 // pred_check_branch
      %121 = sbr.rel (0) target = $region49
    $region48: #{tpu_custom_call.1} parent=1 // pred_region
      %122 = dma.done [#allocation11], 24576
    $region49: #{tpu_custom_call.1} parent=1 // pred_fallthru
      _
    // Predicated region
    $region50: #{tpu_custom_call.1} parent=1 // pred_check
      _
    $region51: #{tpu_custom_call.1} parent=1 // pred_check_branch
      %124 = sbr.rel (0) target = $region53
    $region52: #{tpu_custom_call.1} parent=1 // pred_region
      %125 = dma.done [#allocation11], 24576
    $region53: #{tpu_custom_call.1} parent=1 // pred_fallthru
      _
    // Predicated region
    $region54: #{tpu_custom_call.1} parent=1 // pred_check
      _
    $region55: #{tpu_custom_call.1} parent=1 // pred_check_branch
      %127 = sbr.rel (0) target = $region57
    $region56: #{tpu_custom_call.1} parent=1 // pred_region
      %128 = dma.done [#allocation14], 2048
    $region57: #{tpu_custom_call.1} parent=1 // pred_fallthru
      _
    // Predicated region
    $region58: #{tpu_custom_call.1} parent=1 // pred_check
      _
    $region59: #{tpu_custom_call.1} parent=1 // pred_check_branch
      %130 = sbr.rel (0) target = $region61
    $region60: #{tpu_custom_call.1} parent=1 // pred_region
      %131 = dma.done [#allocation14], 1024
    $region61: #{tpu_custom_call.1} parent=1 // pred_fallthru
      _
    // Predicated region
    $region62: #{tpu_custom_call.1} parent=1 // pred_check
      _
    $region63: #{tpu_custom_call.1} parent=1 // pred_check_branch
      %133 = sbr.rel (0) target = $region65
    $region64: #{tpu_custom_call.1} parent=1 // pred_region
      %134 = dma.done [#allocation17], 1024
    $region65: #{tpu_custom_call.1} parent=1 // pred_fallthru
      _
    %136 = vst [vmem:[#allocation2] sm:$0xff] 0.0
    %v137 = vld [vmem:[#allocation4] sm:$0x3]
    %vm138 = vcmask 361472
    %139 = vst.msk [vmem:[#allocation2] sm:$0x3] %vm138, %v137
    %140 = vst [vmem:[#allocation3] sm:$0xff] 0.0
    %141 = vst [vmem:[#allocation3 + $0x8] sm:$0xff] 0.0
    %142 = vst [vmem:[#allocation3 + $0x10] sm:$0xff] 0.0
    %143 = vst [vmem:[#allocation3 + $0x18] sm:$0xff] 0.0
    %v144 = vld [vmem:[#allocation7] sm:$0xff]
    %v146 = vcombine.high %v144, %v144
    %v148 = vunpack.c.l.s4 1983009808
    %v149 = vunpack.c.0.s8 %v148
    %v150 = vlaneseq
    %v151 = vshrl.u32 %v150, 7
    %v152 = vsub.s32 %v149, %v151
    %v153 = vrot.slane %v144, %v152
    %v155 = vunpack.c.l.s4 1983009808
    %v156 = vunpack.c.0.s8 %v155
    %v157 = vlaneseq
    %v158 = vshrl.u32 %v157, 7
    %v159 = vsub.s32 %v156, %v158
    %v160 = vrot.slane %v146, %v159
    %v161 = vcombine.high %v153, %v153
    %v162 = vcombine.high %v160, %v160
    %167 = vst [vmem:[#allocation3] sm:$0x3] %v153
    %168 = vst [vmem:[#allocation3 + $0x8] sm:$0x3] %v161
    %169 = vst [vmem:[#allocation3 + $0x10] sm:$0x3] %v160
    %170 = vst [vmem:[#allocation3 + $0x18] sm:$0x3] %v162
    %v171 = vld [vmem:[#allocation2] sm:$0xff]
    %v172 = vld [vmem:[#allocation9] sm:$0xff]
    %v173 = vld [vmem:[#allocation9 + $0x8] sm:$0xff]
    %v174 = vld [vmem:[#allocation9 + $0x10] sm:$0xff]
    %v175 = vld [vmem:[#allocation9 + $0x18] sm:$0xff]
    %v176 = vld [vmem:[#allocation9 + $0x20] sm:$0xff]
    %v177 = vld [vmem:[#allocation9 + $0x28] sm:$0xff]
    %v178 = vld [vmem:[#allocation9 + $0x30] sm:$0xff]
    %v179 = vld [vmem:[#allocation9 + $0x38] sm:$0xff]
    %v180 = vld [vmem:[#allocation9 + $0x40] sm:$0xff]
    %v181 = vld [vmem:[#allocation9 + $0x48] sm:$0xff]
    %v182 = vld [vmem:[#allocation9 + $0x50] sm:$0xff]
    %v183 = vld [vmem:[#allocation9 + $0x58] sm:$0xff]
    %v184 = vld [vmem:[#allocation9 + $0x60] sm:$0xff]
    %v185 = vld [vmem:[#allocation9 + $0x68] sm:$0xff]
    %v186 = vld [vmem:[#allocation9 + $0x70] sm:$0xff]
    %v187 = vld [vmem:[#allocation9 + $0x78] sm:$0xff]
    %v188 = vld [vmem:[#allocation15] ss:$8 sm:$0xf]
    %v189 = vld [vmem:[#allocation16] ss:$8 sm:$0xf]
    %v190 = vunpack.c.l.s8.bf16 %v172
    %v191 = vunpack.c.l.s8.bf16 %v173
    %v192 = vunpack.c.l.s8.bf16 %v174
    %v193 = vunpack.c.l.s8.bf16 %v175
    %v194 = vunpack.c.h.s8.bf16 %v172
    %v195 = vunpack.c.h.s8.bf16 %v173
    %v196 = vunpack.c.h.s8.bf16 %v174
    %v197 = vunpack.c.h.s8.bf16 %v175
    %v198 = vunpack.c.l.s8.bf16 %v176
    %v199 = vunpack.c.l.s8.bf16 %v177
    %v200 = vunpack.c.l.s8.bf16 %v178
    %v201 = vunpack.c.l.s8.bf16 %v179
    %v202 = vunpack.c.h.s8.bf16 %v176
    %v203 = vunpack.c.h.s8.bf16 %v177
    %v204 = vunpack.c.h.s8.bf16 %v178
    %v205 = vunpack.c.h.s8.bf16 %v179
    %v206 = vunpack.c.l.s8.bf16 %v180
    %v207 = vunpack.c.l.s8.bf16 %v181
    %v208 = vunpack.c.l.s8.bf16 %v182
    %v209 = vunpack.c.l.s8.bf16 %v183
    %v210 = vunpack.c.h.s8.bf16 %v180
    %v211 = vunpack.c.h.s8.bf16 %v181
    %v212 = vunpack.c.h.s8.bf16 %v182
    %v213 = vunpack.c.h.s8.bf16 %v183
    %v214 = vunpack.c.l.s8.bf16 %v184
    %v215 = vunpack.c.l.s8.bf16 %v185
    %v216 = vunpack.c.l.s8.bf16 %v186
    %v217 = vunpack.c.l.s8.bf16 %v187
    %v218 = vunpack.c.h.s8.bf16 %v184
    %v219 = vunpack.c.h.s8.bf16 %v185
    %v220 = vunpack.c.h.s8.bf16 %v186
    %v221 = vunpack.c.h.s8.bf16 %v187
    %v222 = vpack.c.bf16 %v171, %v171
    %223 = vmatprep.subr.bf16.mxu0 %v191
    %224 = vmatpush1.bf16.msra.mxu0 %v190
    %225 = vmatprep.subr.bf16.mxu0 %v195
    %226 = vmatpush1.bf16.msra.mxu0 %v194
    %227 = vmatprep.subr.bf16.mxu0 %v199
    %228 = vmatpush1.bf16.msra.mxu0 %v198
    %229 = vmatprep.subr.bf16.mxu0 %v203
    %230 = vmatpush1.bf16.msra.mxu0 %v202
    %231 = vmatprep.subr.bf16.mxu0 %v207
    %232 = vmatpush1.bf16.msra.mxu0 %v206
    %233 = vmatprep.subr.bf16.mxu0 %v211
    %234 = vmatpush1.bf16.msra.mxu0 %v210
    %235 = vmatprep.subr.bf16.mxu0 %v215
    %236 = vmatpush1.bf16.msra.mxu0 %v214
    %237 = vmatprep.subr.bf16.mxu0 %v219
    %238 = vmatpush1.bf16.msra.mxu0 %v218
    %239 = vmatprep.subr.bf16.mxu0 0
    %240 = vmatpush1.bf16.msra.mxu0 0
    %241 = vmatprep.subr.bf16.mxu0 0
    %242 = vmatpush1.bf16.msra.mxu0 0
    %243 = vmatprep.subr.bf16.mxu0 0
    %244 = vmatpush1.bf16.msra.mxu0 0
    %245 = vmatprep.subr.bf16.mxu0 0
    %246 = vmatpush1.bf16.msra.mxu0 0
    %247 = vmatprep.subr.bf16.mxu0 0
    %248 = vmatpush1.bf16.msra.mxu0 0
    %249 = vmatprep.subr.bf16.mxu0 0
    %250 = vmatpush1.bf16.msra.mxu0 0
    %251 = vmatprep.subr.bf16.mxu0 0
    %252 = vmatpush1.bf16.msra.mxu0 0
    %253 = vmatprep.subr.bf16.mxu0 0
    %254 = vmatpush1.bf16.msra.mxu0 0
    %255 = vmatprep.mubr.bf16.mxu0 0
    %256 = vmatmul.mubr.bf16.gmra.mrb[0].mxu0 %v222
    %v257 = vpop.f32.mrb[0].mxu0
    %v258 = vadd.f32 0.0, %v257
    %v259 = vpop.f32.mrb[0].mxu0
    %v260 = vadd.f32 0.0, %v259
    %v261 = vpop.f32.mrb[0].mxu0
    %v262 = vpop.f32.mrb[0].mxu0
    %263 = vdwg.mxu0
    %264 = vmatprep.subr.bf16.mxu0 %v193
    %265 = vmatpush1.bf16.msra.mxu0 %v192
    %266 = vmatprep.subr.bf16.mxu0 %v197
    %267 = vmatpush1.bf16.msra.mxu0 %v196
    %268 = vmatprep.subr.bf16.mxu0 %v201
    %269 = vmatpush1.bf16.msra.mxu0 %v200
    %270 = vmatprep.subr.bf16.mxu0 %v205
    %271 = vmatpush1.bf16.msra.mxu0 %v204
    %272 = vmatprep.subr.bf16.mxu0 %v209
    %273 = vmatpush1.bf16.msra.mxu0 %v208
    %274 = vmatprep.subr.bf16.mxu0 %v213
    %275 = vmatpush1.bf16.msra.mxu0 %v212
    %276 = vmatprep.subr.bf16.mxu0 %v217
    %277 = vmatpush1.bf16.msra.mxu0 %v216
    %278 = vmatprep.subr.bf16.mxu0 %v221
    %279 = vmatpush1.bf16.msra.mxu0 %v220
    %280 = vmatprep.subr.bf16.mxu0 0
    %281 = vmatpush1.bf16.msra.mxu0 0
    %282 = vmatprep.subr.bf16.mxu0 0
    %283 = vmatpush1.bf16.msra.mxu0 0
    %284 = vmatprep.subr.bf16.mxu0 0
    %285 = vmatpush1.bf16.msra.mxu0 0
    %286 = vmatprep.subr.bf16.mxu0 0
    %287 = vmatpush1.bf16.msra.mxu0 0
    %288 = vmatprep.subr.bf16.mxu0 0
    %289 = vmatpush1.bf16.msra.mxu0 0
    %290 = vmatprep.subr.bf16.mxu0 0
    %291 = vmatpush1.bf16.msra.mxu0 0
    %292 = vmatprep.subr.bf16.mxu0 0
    %293 = vmatpush1.bf16.msra.mxu0 0
    %294 = vmatprep.subr.bf16.mxu0 0
    %295 = vmatpush1.bf16.msra.mxu0 0
    %296 = vmatprep.mubr.bf16.mxu0 0
    %297 = vmatmul.mubr.bf16.gmra.mrb[0].mxu0 %v222
    %v298 = vpop.f32.mrb[0].mxu0
    %v299 = vadd.f32 0.0, %v298
    %v300 = vpop.f32.mrb[0].mxu0
    %v301 = vadd.f32 0.0, %v300
    %v302 = vpop.f32.mrb[0].mxu0
    %v303 = vpop.f32.mrb[0].mxu0
    %304 = vdwg.mxu0
    %v306 = vlaneseq
    %v307 = vshrl.u32 %v306, 7
    %v308 = vsub.s32 0, %v307
    %v309 = vrot.slane %v188, %v308
    %v310 = vlaneseq
    %v311 = vshrl.u32 %v310, 7
    %v312 = vsub.s32 1, %v311
    %v313 = vrot.slane %v188, %v312
    %v314 = vlaneseq
    %v315 = vshrl.u32 %v314, 7
    %v316 = vsub.s32 2, %v315
    %v317 = vrot.slane %v188, %v316
    %v318 = vlaneseq
    %v319 = vshrl.u32 %v318, 7
    %v320 = vsub.s32 3, %v319
    %v321 = vrot.slane %v188, %v320
    %v326 = vmul.f32 %v258, %v309
    %v327 = vmul.f32 %v260, %v313
    %v328 = vmul.f32 %v299, %v317
    %v329 = vmul.f32 %v301, %v321
    %v331 = vlaneseq
    %v332 = vshrl.u32 %v331, 7
    %v333 = vsub.s32 0, %v332
    %v334 = vrot.slane %v189, %v333
    %v335 = vlaneseq
    %v336 = vshrl.u32 %v335, 7
    %v337 = vsub.s32 1, %v336
    %v338 = vrot.slane %v189, %v337
    %v339 = vlaneseq
    %v340 = vshrl.u32 %v339, 7
    %v341 = vsub.s32 2, %v340
    %v342 = vrot.slane %v189, %v341
    %v343 = vlaneseq
    %v344 = vshrl.u32 %v343, 7
    %v345 = vsub.s32 3, %v344
    %v346 = vrot.slane %v189, %v345
    %v351 = vadd.f32 %v326, %v334
    %v352 = vadd.f32 %v327, %v338
    %v353 = vadd.f32 %v328, %v342
    %v354 = vadd.f32 %v329, %v346
    %v355 = vmax.f32 %v351, 0.0
    %v356 = vmax.f32 %v352, 0.0
    %v357 = vmax.f32 %v353, 0.0
    %v358 = vmax.f32 %v354, 0.0
    %v359 = vld [vmem:[#allocation9 + $0x80] sm:$0xff]
    %v360 = vld [vmem:[#allocation9 + $0x88] sm:$0xff]
    %v361 = vld [vmem:[#allocation9 + $0x90] sm:$0xff]
    %v362 = vld [vmem:[#allocation9 + $0x98] sm:$0xff]
    %v363 = vld [vmem:[#allocation9 + $0xa0] sm:$0xff]
    %v364 = vld [vmem:[#allocation9 + $0xa8] sm:$0xff]
    %v365 = vld [vmem:[#allocation9 + $0xb0] sm:$0xff]
    %v366 = vld [vmem:[#allocation9 + $0xb8] sm:$0xff]
    %v367 = vld [vmem:[#allocation9 + $0xc0] sm:$0xff]
    %v368 = vld [vmem:[#allocation9 + $0xc8] sm:$0xff]
    %v369 = vld [vmem:[#allocation9 + $0xd0] sm:$0xff]
    %v370 = vld [vmem:[#allocation9 + $0xd8] sm:$0xff]
    %v371 = vld [vmem:[#allocation9 + $0xe0] sm:$0xff]
    %v372 = vld [vmem:[#allocation9 + $0xe8] sm:$0xff]
    %v373 = vld [vmem:[#allocation9 + $0xf0] sm:$0xff]
    %v374 = vld [vmem:[#allocation9 + $0xf8] sm:$0xff]
    %v375 = vld [vmem:[#allocation9 + $0x100] sm:$0xff]
    %v376 = vld [vmem:[#allocation9 + $0x108] sm:$0xff]
    %v377 = vld [vmem:[#allocation9 + $0x110] sm:$0xff]
    %v378 = vld [vmem:[#allocation9 + $0x118] sm:$0xff]
    %v379 = vld [vmem:[#allocation9 + $0x120] sm:$0xff]
    %v380 = vld [vmem:[#allocation9 + $0x128] sm:$0xff]
    %v381 = vld [vmem:[#allocation9 + $0x130] sm:$0xff]
    %v382 = vld [vmem:[#allocation9 + $0x138] sm:$0xff]
    %v383 = vld [vmem:[#allocation9 + $0x140] sm:$0xff]
    %v384 = vld [vmem:[#allocation9 + $0x148] sm:$0xff]
    %v385 = vld [vmem:[#allocation9 + $0x150] sm:$0xff]
    %v386 = vld [vmem:[#allocation9 + $0x158] sm:$0xff]
    %v387 = vld [vmem:[#allocation9 + $0x160] sm:$0xff]
    %v388 = vld [vmem:[#allocation9 + $0x168] sm:$0xff]
    %v389 = vld [vmem:[#allocation9 + $0x170] sm:$0xff]
    %v390 = vld [vmem:[#allocation9 + $0x178] sm:$0xff]
    %v391 = vld [vmem:[#allocation9 + $0x180] sm:$0xff]
    %v392 = vld [vmem:[#allocation9 + $0x188] sm:$0xff]
    %v393 = vld [vmem:[#allocation9 + $0x190] sm:$0xff]
    %v394 = vld [vmem:[#allocation9 + $0x198] sm:$0xff]
    %v395 = vld [vmem:[#allocation9 + $0x1a0] sm:$0xff]
    %v396 = vld [vmem:[#allocation9 + $0x1a8] sm:$0xff]
    %v397 = vld [vmem:[#allocation9 + $0x1b0] sm:$0xff]
    %v398 = vld [vmem:[#allocation9 + $0x1b8] sm:$0xff]
    %v399 = vld [vmem:[#allocation9 + $0x1c0] sm:$0xff]
    %v400 = vld [vmem:[#allocation9 + $0x1c8] sm:$0xff]
    %v401 = vld [vmem:[#allocation9 + $0x1d0] sm:$0xff]
    %v402 = vld [vmem:[#allocation9 + $0x1d8] sm:$0xff]
    %v403 = vld [vmem:[#allocation9 + $0x1e0] sm:$0xff]
    %v404 = vld [vmem:[#allocation9 + $0x1e8] sm:$0xff]
    %v405 = vld [vmem:[#allocation9 + $0x1f0] sm:$0xff]
    %v406 = vld [vmem:[#allocation9 + $0x1f8] sm:$0xff]
    %v407 = vld [vmem:[#allocation9 + $0x200] sm:$0xff]
    %v408 = vld [vmem:[#allocation9 + $0x208] sm:$0xff]
    %v409 = vld [vmem:[#allocation9 + $0x210] sm:$0xff]
    %v410 = vld [vmem:[#allocation9 + $0x218] sm:$0xff]
    %v411 = vld [vmem:[#allocation9 + $0x220] sm:$0xff]
    %v412 = vld [vmem:[#allocation9 + $0x228] sm:$0xff]
    %v413 = vld [vmem:[#allocation9 + $0x230] sm:$0xff]
    %v414 = vld [vmem:[#allocation9 + $0x238] sm:$0xff]
    %v415 = vld [vmem:[#allocation9 + $0x240] sm:$0xff]
    %v416 = vld [vmem:[#allocation9 + $0x248] sm:$0xff]
    %v417 = vld [vmem:[#allocation9 + $0x250] sm:$0xff]
    %v418 = vld [vmem:[#allocation9 + $0x258] sm:$0xff]
    %v419 = vld [vmem:[#allocation9 + $0x260] sm:$0xff]
    %v420 = vld [vmem:[#allocation9 + $0x268] sm:$0xff]
    %v421 = vld [vmem:[#allocation9 + $0x270] sm:$0xff]
    %v422 = vld [vmem:[#allocation9 + $0x278] sm:$0xff]
    %s423 = scalar_lea.vmem [#allocation15], 1
    %v424 = vld [vmem:[%s423] ss:$8 sm:$0xf]
    %s425 = scalar_lea.vmem [#allocation16], 1
    %v426 = vld [vmem:[%s425] ss:$8 sm:$0xf]
    %v427 = vunpack.c.l.s8.bf16 %v359
    %v428 = vunpack.c.l.s8.bf16 %v360
    %v429 = vunpack.c.l.s8.bf16 %v361
    %v430 = vunpack.c.l.s8.bf16 %v362
    %v431 = vunpack.c.h.s8.bf16 %v359
    %v432 = vunpack.c.h.s8.bf16 %v360
    %v433 = vunpack.c.h.s8.bf16 %v361
    %v434 = vunpack.c.h.s8.bf16 %v362
    %v435 = vunpack.c.l.s8.bf16 %v363
    %v436 = vunpack.c.l.s8.bf16 %v364
    %v437 = vunpack.c.l.s8.bf16 %v365
    %v438 = vunpack.c.l.s8.bf16 %v366
    %v439 = vunpack.c.h.s8.bf16 %v363
    %v440 = vunpack.c.h.s8.bf16 %v364
    %v441 = vunpack.c.h.s8.bf16 %v365
    %v442 = vunpack.c.h.s8.bf16 %v366
    %v443 = vunpack.c.l.s8.bf16 %v367
    %v444 = vunpack.c.l.s8.bf16 %v368
    %v445 = vunpack.c.l.s8.bf16 %v369
    %v446 = vunpack.c.l.s8.bf16 %v370
    %v447 = vunpack.c.h.s8.bf16 %v367
    %v448 = vunpack.c.h.s8.bf16 %v368
    %v449 = vunpack.c.h.s8.bf16 %v369
    %v450 = vunpack.c.h.s8.bf16 %v370
    %v451 = vunpack.c.l.s8.bf16 %v371
    %v452 = vunpack.c.l.s8.bf16 %v372
    %v453 = vunpack.c.l.s8.bf16 %v373
    %v454 = vunpack.c.l.s8.bf16 %v374
    %v455 = vunpack.c.h.s8.bf16 %v371
    %v456 = vunpack.c.h.s8.bf16 %v372
    %v457 = vunpack.c.h.s8.bf16 %v373
    %v458 = vunpack.c.h.s8.bf16 %v374
    %v459 = vunpack.c.l.s8.bf16 %v375
    %v460 = vunpack.c.l.s8.bf16 %v376
    %v461 = vunpack.c.l.s8.bf16 %v377
    %v462 = vunpack.c.l.s8.bf16 %v378
    %v463 = vunpack.c.h.s8.bf16 %v375
    %v464 = vunpack.c.h.s8.bf16 %v376
    %v465 = vunpack.c.h.s8.bf16 %v377
    %v466 = vunpack.c.h.s8.bf16 %v378
    %v467 = vunpack.c.l.s8.bf16 %v379
    %v468 = vunpack.c.l.s8.bf16 %v380
    %v469 = vunpack.c.l.s8.bf16 %v381
    %v470 = vunpack.c.l.s8.bf16 %v382
    %v471 = vunpack.c.h.s8.bf16 %v379
    %v472 = vunpack.c.h.s8.bf16 %v380
    %v473 = vunpack.c.h.s8.bf16 %v381
    %v474 = vunpack.c.h.s8.bf16 %v382
    %v475 = vunpack.c.l.s8.bf16 %v383
    %v476 = vunpack.c.l.s8.bf16 %v384
    %v477 = vunpack.c.l.s8.bf16 %v385
    %v478 = vunpack.c.l.s8.bf16 %v386
    %v479 = vunpack.c.h.s8.bf16 %v383
    %v480 = vunpack.c.h.s8.bf16 %v384
    %v481 = vunpack.c.h.s8.bf16 %v385
    %v482 = vunpack.c.h.s8.bf16 %v386
    %v483 = vunpack.c.l.s8.bf16 %v387
    %v484 = vunpack.c.l.s8.bf16 %v388
    %v485 = vunpack.c.l.s8.bf16 %v389
    %v486 = vunpack.c.l.s8.bf16 %v390
    %v487 = vunpack.c.h.s8.bf16 %v387
    %v488 = vunpack.c.h.s8.bf16 %v388
    %v489 = vunpack.c.h.s8.bf16 %v389
    %v490 = vunpack.c.h.s8.bf16 %v390
    %v491 = vunpack.c.l.s8.bf16 %v391
    %v492 = vunpack.c.l.s8.bf16 %v392
    %v493 = vunpack.c.l.s8.bf16 %v393
    %v494 = vunpack.c.l.s8.bf16 %v394
    %v495 = vunpack.c.h.s8.bf16 %v391
    %v496 = vunpack.c.h.s8.bf16 %v392
    %v497 = vunpack.c.h.s8.bf16 %v393
    %v498 = vunpack.c.h.s8.bf16 %v394
    %v499 = vunpack.c.l.s8.bf16 %v395
    %v500 = vunpack.c.l.s8.bf16 %v396
    %v501 = vunpack.c.l.s8.bf16 %v397
    %v502 = vunpack.c.l.s8.bf16 %v398
    %v503 = vunpack.c.h.s8.bf16 %v395
    %v504 = vunpack.c.h.s8.bf16 %v396
    %v505 = vunpack.c.h.s8.bf16 %v397
    %v506 = vunpack.c.h.s8.bf16 %v398
    %v507 = vunpack.c.l.s8.bf16 %v399
    %v508 = vunpack.c.l.s8.bf16 %v400
    %v509 = vunpack.c.l.s8.bf16 %v401
    %v510 = vunpack.c.l.s8.bf16 %v402
    %v511 = vunpack.c.h.s8.bf16 %v399
    %v512 = vunpack.c.h.s8.bf16 %v400
    %v513 = vunpack.c.h.s8.bf16 %v401
    %v514 = vunpack.c.h.s8.bf16 %v402
    %v515 = vunpack.c.l.s8.bf16 %v403
    %v516 = vunpack.c.l.s8.bf16 %v404
    %v517 = vunpack.c.l.s8.bf16 %v405
    %v518 = vunpack.c.l.s8.bf16 %v406
    %v519 = vunpack.c.h.s8.bf16 %v403
    %v520 = vunpack.c.h.s8.bf16 %v404
    %v521 = vunpack.c.h.s8.bf16 %v405
    %v522 = vunpack.c.h.s8.bf16 %v406
    %v523 = vunpack.c.l.s8.bf16 %v407
    %v524 = vunpack.c.l.s8.bf16 %v408
    %v525 = vunpack.c.l.s8.bf16 %v409
    %v526 = vunpack.c.l.s8.bf16 %v410
    %v527 = vunpack.c.h.s8.bf16 %v407
    %v528 = vunpack.c.h.s8.bf16 %v408
    %v529 = vunpack.c.h.s8.bf16 %v409
    %v530 = vunpack.c.h.s8.bf16 %v410
    %v531 = vunpack.c.l.s8.bf16 %v411
    %v532 = vunpack.c.l.s8.bf16 %v412
    %v533 = vunpack.c.l.s8.bf16 %v413
    %v534 = vunpack.c.l.s8.bf16 %v414
    %v535 = vunpack.c.h.s8.bf16 %v411
    %v536 = vunpack.c.h.s8.bf16 %v412
    %v537 = vunpack.c.h.s8.bf16 %v413
    %v538 = vunpack.c.h.s8.bf16 %v414
    %v539 = vunpack.c.l.s8.bf16 %v415
    %v540 = vunpack.c.l.s8.bf16 %v416
    %v541 = vunpack.c.l.s8.bf16 %v417
    %v542 = vunpack.c.l.s8.bf16 %v418
    %v543 = vunpack.c.h.s8.bf16 %v415
    %v544 = vunpack.c.h.s8.bf16 %v416
    %v545 = vunpack.c.h.s8.bf16 %v417
    %v546 = vunpack.c.h.s8.bf16 %v418
    %v547 = vunpack.c.l.s8.bf16 %v419
    %v548 = vunpack.c.l.s8.bf16 %v420
    %v549 = vunpack.c.l.s8.bf16 %v421
    %v550 = vunpack.c.l.s8.bf16 %v422
    %v551 = vunpack.c.h.s8.bf16 %v419
    %v552 = vunpack.c.h.s8.bf16 %v420
    %v553 = vunpack.c.h.s8.bf16 %v421
    %v554 = vunpack.c.h.s8.bf16 %v422
    %v555 = vpack.c.bf16 %v355, %v355
    %v556 = vpack.c.bf16 %v356, %v356
    %v557 = vpack.c.bf16 %v357, %v357
    %v558 = vpack.c.bf16 %v358, %v358
    %559 = vmatprep.subr.bf16.mxu0 %v428
    %560 = vmatpush1.bf16.msra.mxu0 %v427
    %561 = vmatprep.subr.bf16.mxu0 %v432
    %562 = vmatpush1.bf16.msra.mxu0 %v431
    %563 = vmatprep.subr.bf16.mxu0 %v436
    %564 = vmatpush1.bf16.msra.mxu0 %v435
    %565 = vmatprep.subr.bf16.mxu0 %v440
    %566 = vmatpush1.bf16.msra.mxu0 %v439
    %567 = vmatprep.subr.bf16.mxu0 %v444
    %568 = vmatpush1.bf16.msra.mxu0 %v443
    %569 = vmatprep.subr.bf16.mxu0 %v448
    %570 = vmatpush1.bf16.msra.mxu0 %v447
    %571 = vmatprep.subr.bf16.mxu0 %v452
    %572 = vmatpush1.bf16.msra.mxu0 %v451
    %573 = vmatprep.subr.bf16.mxu0 %v456
    %574 = vmatpush1.bf16.msra.mxu0 %v455
    %575 = vmatprep.subr.bf16.mxu0 %v460
    %576 = vmatpush1.bf16.msra.mxu0 %v459
    %577 = vmatprep.subr.bf16.mxu0 %v464
    %578 = vmatpush1.bf16.msra.mxu0 %v463
    %579 = vmatprep.subr.bf16.mxu0 %v468
    %580 = vmatpush1.bf16.msra.mxu0 %v467
    %581 = vmatprep.subr.bf16.mxu0 %v472
    %582 = vmatpush1.bf16.msra.mxu0 %v471
    %583 = vmatprep.subr.bf16.mxu0 %v476
    %584 = vmatpush1.bf16.msra.mxu0 %v475
    %585 = vmatprep.subr.bf16.mxu0 %v480
    %586 = vmatpush1.bf16.msra.mxu0 %v479
    %587 = vmatprep.subr.bf16.mxu0 %v484
    %588 = vmatpush1.bf16.msra.mxu0 %v483
    %589 = vmatprep.subr.bf16.mxu0 %v488
    %590 = vmatpush1.bf16.msra.mxu0 %v487
    %591 = vmatprep.mubr.bf16.mxu0 %v556
    %592 = vmatmul.mubr.bf16.gmra.mrb[0].mxu0 %v555
    %v593 = vpop.f32.mrb[0].mxu0
    %v594 = vadd.f32 0.0, %v593
    %v595 = vpop.f32.mrb[0].mxu0
    %v596 = vadd.f32 0.0, %v595
    %v597 = vpop.f32.mrb[0].mxu0
    %v598 = vpop.f32.mrb[0].mxu0
    %599 = vdwg.mxu0
    %600 = vmatprep.subr.bf16.mxu0 %v492
    %601 = vmatpush1.bf16.msra.mxu0 %v491
    %602 = vmatprep.subr.bf16.mxu0 %v496
    %603 = vmatpush1.bf16.msra.mxu0 %v495
    %604 = vmatprep.subr.bf16.mxu0 %v500
    %605 = vmatpush1.bf16.msra.mxu0 %v499
    %606 = vmatprep.subr.bf16.mxu0 %v504
    %607 = vmatpush1.bf16.msra.mxu0 %v503
    %608 = vmatprep.subr.bf16.mxu0 %v508
    %609 = vmatpush1.bf16.msra.mxu0 %v507
    %610 = vmatprep.subr.bf16.mxu0 %v512
    %611 = vmatpush1.bf16.msra.mxu0 %v511
    %612 = vmatprep.subr.bf16.mxu0 %v516
    %613 = vmatpush1.bf16.msra.mxu0 %v515
    %614 = vmatprep.subr.bf16.mxu0 %v520
    %615 = vmatpush1.bf16.msra.mxu0 %v519
    %616 = vmatprep.subr.bf16.mxu0 %v524
    %617 = vmatpush1.bf16.msra.mxu0 %v523
    %618 = vmatprep.subr.bf16.mxu0 %v528
    %619 = vmatpush1.bf16.msra.mxu0 %v527
    %620 = vmatprep.subr.bf16.mxu0 %v532
    %621 = vmatpush1.bf16.msra.mxu0 %v531
    %622 = vmatprep.subr.bf16.mxu0 %v536
    %623 = vmatpush1.bf16.msra.mxu0 %v535
    %624 = vmatprep.subr.bf16.mxu0 %v540
    %625 = vmatpush1.bf16.msra.mxu0 %v539
    %626 = vmatprep.subr.bf16.mxu0 %v544
    %627 = vmatpush1.bf16.msra.mxu0 %v543
    %628 = vmatprep.subr.bf16.mxu0 %v548
    %629 = vmatpush1.bf16.msra.mxu0 %v547
    %630 = vmatprep.subr.bf16.mxu0 %v552
    %631 = vmatpush1.bf16.msra.mxu0 %v551
    %632 = vmatprep.mubr.bf16.mxu0 %v558
    %633 = vmatmul.mubr.bf16.gmra.mrb[0].mxu0 %v557
    %v634 = vpop.f32.mrb[0].mxu0
    %v635 = vadd.f32 %v594, %v634
    %v636 = vpop.f32.mrb[0].mxu0
    %v637 = vadd.f32 %v596, %v636
    %v638 = vpop.f32.mrb[0].mxu0
    %v639 = vpop.f32.mrb[0].mxu0
    %640 = vdwg.mxu0
    %641 = vmatprep.subr.bf16.mxu0 %v430
    %642 = vmatpush1.bf16.msra.mxu0 %v429
    %643 = vmatprep.subr.bf16.mxu0 %v434
    %644 = vmatpush1.bf16.msra.mxu0 %v433
    %645 = vmatprep.subr.bf16.mxu0 %v438
    %646 = vmatpush1.bf16.msra.mxu0 %v437
    %647 = vmatprep.subr.bf16.mxu0 %v442
    %648 = vmatpush1.bf16.msra.mxu0 %v441
    %649 = vmatprep.subr.bf16.mxu0 %v446
    %650 = vmatpush1.bf16.msra.mxu0 %v445
    %651 = vmatprep.subr.bf16.mxu0 %v450
    %652 = vmatpush1.bf16.msra.mxu0 %v449
    %653 = vmatprep.subr.bf16.mxu0 %v454
    %654 = vmatpush1.bf16.msra.mxu0 %v453
    %655 = vmatprep.subr.bf16.mxu0 %v458
    %656 = vmatpush1.bf16.msra.mxu0 %v457
    %657 = vmatprep.subr.bf16.mxu0 %v462
    %658 = vmatpush1.bf16.msra.mxu0 %v461
    %659 = vmatprep.subr.bf16.mxu0 %v466
    %660 = vmatpush1.bf16.msra.mxu0 %v465
    %661 = vmatprep.subr.bf16.mxu0 %v470
    %662 = vmatpush1.bf16.msra.mxu0 %v469
    %663 = vmatprep.subr.bf16.mxu0 %v474
    %664 = vmatpush1.bf16.msra.mxu0 %v473
    %665 = vmatprep.subr.bf16.mxu0 %v478
    %666 = vmatpush1.bf16.msra.mxu0 %v477
    %667 = vmatprep.subr.bf16.mxu0 %v482
    %668 = vmatpush1.bf16.msra.mxu0 %v481
    %669 = vmatprep.subr.bf16.mxu0 %v486
    %670 = vmatpush1.bf16.msra.mxu0 %v485
    %671 = vmatprep.subr.bf16.mxu0 %v490
    %672 = vmatpush1.bf16.msra.mxu0 %v489
    %673 = vmatprep.mubr.bf16.mxu0 %v556
    %674 = vmatmul.mubr.bf16.gmra.mrb[0].mxu0 %v555
    %v675 = vpop.f32.mrb[0].mxu0
    %v676 = vadd.f32 0.0, %v675
    %v677 = vpop.f32.mrb[0].mxu0
    %v678 = vadd.f32 0.0, %v677
    %v679 = vpop.f32.mrb[0].mxu0
    %v680 = vpop.f32.mrb[0].mxu0
    %681 = vdwg.mxu0
    %682 = vmatprep.subr.bf16.mxu0 %v494
    %683 = vmatpush1.bf16.msra.mxu0 %v493
    %684 = vmatprep.subr.bf16.mxu0 %v498
    %685 = vmatpush1.bf16.msra.mxu0 %v497
    %686 = vmatprep.subr.bf16.mxu0 %v502
    %687 = vmatpush1.bf16.msra.mxu0 %v501
    %688 = vmatprep.subr.bf16.mxu0 %v506
    %689 = vmatpush1.bf16.msra.mxu0 %v505
    %690 = vmatprep.subr.bf16.mxu0 %v510
    %691 = vmatpush1.bf16.msra.mxu0 %v509
    %692 = vmatprep.subr.bf16.mxu0 %v514
    %693 = vmatpush1.bf16.msra.mxu0 %v513
    %694 = vmatprep.subr.bf16.mxu0 %v518
    %695 = vmatpush1.bf16.msra.mxu0 %v517
    %696 = vmatprep.subr.bf16.mxu0 %v522
    %697 = vmatpush1.bf16.msra.mxu0 %v521
    %698 = vmatprep.subr.bf16.mxu0 %v526
    %699 = vmatpush1.bf16.msra.mxu0 %v525
    %700 = vmatprep.subr.bf16.mxu0 %v530
    %701 = vmatpush1.bf16.msra.mxu0 %v529
    %702 = vmatprep.subr.bf16.mxu0 %v534
    %703 = vmatpush1.bf16.msra.mxu0 %v533
    %704 = vmatprep.subr.bf16.mxu0 %v538
    %705 = vmatpush1.bf16.msra.mxu0 %v537
    %706 = vmatprep.subr.bf16.mxu0 %v542
    %707 = vmatpush1.bf16.msra.mxu0 %v541
    %708 = vmatprep.subr.bf16.mxu0 %v546
    %709 = vmatpush1.bf16.msra.mxu0 %v545
    %710 = vmatprep.subr.bf16.mxu0 %v550
    %711 = vmatpush1.bf16.msra.mxu0 %v549
    %712 = vmatprep.subr.bf16.mxu0 %v554
    %713 = vmatpush1.bf16.msra.mxu0 %v553
    %714 = vmatprep.mubr.bf16.mxu0 %v558
    %715 = vmatmul.mubr.bf16.gmra.mrb[0].mxu0 %v557
    %v716 = vpop.f32.mrb[0].mxu0
    %v717 = vadd.f32 %v676, %v716
    %v718 = vpop.f32.mrb[0].mxu0
    %v719 = vadd.f32 %v678, %v718
    %v720 = vpop.f32.mrb[0].mxu0
    %v721 = vpop.f32.mrb[0].mxu0
    %722 = vdwg.mxu0
    %v724 = vlaneseq
    %v725 = vshrl.u32 %v724, 7
    %v726 = vsub.s32 0, %v725
    %v727 = vrot.slane %v424, %v726
    %v728 = vlaneseq
    %v729 = vshrl.u32 %v728, 7
    %v730 = vsub.s32 1, %v729
    %v731 = vrot.slane %v424, %v730
    %v732 = vlaneseq
    %v733 = vshrl.u32 %v732, 7
    %v734 = vsub.s32 2, %v733
    %v735 = vrot.slane %v424, %v734
    %v736 = vlaneseq
    %v737 = vshrl.u32 %v736, 7
    %v738 = vsub.s32 3, %v737
    %v739 = vrot.slane %v424, %v738
    %v744 = vmul.f32 %v635, %v727
    %v745 = vmul.f32 %v637, %v731
    %v746 = vmul.f32 %v717, %v735
    %v747 = vmul.f32 %v719, %v739
    %v749 = vlaneseq
    %v750 = vshrl.u32 %v749, 7
    %v751 = vsub.s32 0, %v750
    %v752 = vrot.slane %v426, %v751
    %v753 = vlaneseq
    %v754 = vshrl.u32 %v753, 7
    %v755 = vsub.s32 1, %v754
    %v756 = vrot.slane %v426, %v755
    %v757 = vlaneseq
    %v758 = vshrl.u32 %v757, 7
    %v759 = vsub.s32 2, %v758
    %v760 = vrot.slane %v426, %v759
    %v761 = vlaneseq
    %v762 = vshrl.u32 %v761, 7
    %v763 = vsub.s32 3, %v762
    %v764 = vrot.slane %v426, %v763
    %v769 = vadd.f32 %v744, %v752
    %v770 = vadd.f32 %v745, %v756
    %v771 = vadd.f32 %v746, %v760
    %v772 = vadd.f32 %v747, %v764
    %v773 = vmax.f32 %v769, 0.0
    %v774 = vmax.f32 %v770, 0.0
    %v775 = vmax.f32 %v771, 0.0
    %v776 = vmax.f32 %v772, 0.0
    %v777 = vld [vmem:[#allocation9 + $0x280] sm:$0xff]
    %v778 = vld [vmem:[#allocation9 + $0x288] sm:$0xff]
    %v779 = vld [vmem:[#allocation9 + $0x290] sm:$0xff]
    %v780 = vld [vmem:[#allocation9 + $0x298] sm:$0xff]
    %v781 = vld [vmem:[#allocation9 + $0x2a0] sm:$0xff]
    %v782 = vld [vmem:[#allocation9 + $0x2a8] sm:$0xff]
    %v783 = vld [vmem:[#allocation9 + $0x2b0] sm:$0xff]
    %v784 = vld [vmem:[#allocation9 + $0x2b8] sm:$0xff]
    %v785 = vld [vmem:[#allocation9 + $0x2c0] sm:$0xff]
    %v786 = vld [vmem:[#allocation9 + $0x2c8] sm:$0xff]
    %v787 = vld [vmem:[#allocation9 + $0x2d0] sm:$0xff]
    %v788 = vld [vmem:[#allocation9 + $0x2d8] sm:$0xff]
    %v789 = vld [vmem:[#allocation9 + $0x2e0] sm:$0xff]
    %v790 = vld [vmem:[#allocation9 + $0x2e8] sm:$0xff]
    %v791 = vld [vmem:[#allocation9 + $0x2f0] sm:$0xff]
    %v792 = vld [vmem:[#allocation9 + $0x2f8] sm:$0xff]
    %v793 = vld [vmem:[#allocation9 + $0x300] sm:$0xff]
    %v794 = vld [vmem:[#allocation9 + $0x308] sm:$0xff]
    %v795 = vld [vmem:[#allocation9 + $0x310] sm:$0xff]
    %v796 = vld [vmem:[#allocation9 + $0x318] sm:$0xff]
    %v797 = vld [vmem:[#allocation9 + $0x320] sm:$0xff]
    %v798 = vld [vmem:[#allocation9 + $0x328] sm:$0xff]
    %v799 = vld [vmem:[#allocation9 + $0x330] sm:$0xff]
    %v800 = vld [vmem:[#allocation9 + $0x338] sm:$0xff]
    %v801 = vld [vmem:[#allocation9 + $0x340] sm:$0xff]
    %v802 = vld [vmem:[#allocation9 + $0x348] sm:$0xff]
    %v803 = vld [vmem:[#allocation9 + $0x350] sm:$0xff]
    %v804 = vld [vmem:[#allocation9 + $0x358] sm:$0xff]
    %v805 = vld [vmem:[#allocation9 + $0x360] sm:$0xff]
    %v806 = vld [vmem:[#allocation9 + $0x368] sm:$0xff]
    %v807 = vld [vmem:[#allocation9 + $0x370] sm:$0xff]
    %v808 = vld [vmem:[#allocation9 + $0x378] sm:$0xff]
    %v809 = vld [vmem:[#allocation9 + $0x380] sm:$0xff]
    %v810 = vld [vmem:[#allocation9 + $0x388] sm:$0xff]
    %v811 = vld [vmem:[#allocation9 + $0x390] sm:$0xff]
    %v812 = vld [vmem:[#allocation9 + $0x398] sm:$0xff]
    %v813 = vld [vmem:[#allocation9 + $0x3a0] sm:$0xff]
    %v814 = vld [vmem:[#allocation9 + $0x3a8] sm:$0xff]
    %v815 = vld [vmem:[#allocation9 + $0x3b0] sm:$0xff]
    %v816 = vld [vmem:[#allocation9 + $0x3b8] sm:$0xff]
    %v817 = vld [vmem:[#allocation9 + $0x3c0] sm:$0xff]
    %v818 = vld [vmem:[#allocation9 + $0x3c8] sm:$0xff]
    %v819 = vld [vmem:[#allocation9 + $0x3d0] sm:$0xff]
    %v820 = vld [vmem:[#allocation9 + $0x3d8] sm:$0xff]
    %v821 = vld [vmem:[#allocation9 + $0x3e0] sm:$0xff]
    %v822 = vld [vmem:[#allocation9 + $0x3e8] sm:$0xff]
    %v823 = vld [vmem:[#allocation9 + $0x3f0] sm:$0xff]
    %v824 = vld [vmem:[#allocation9 + $0x3f8] sm:$0xff]
    %v825 = vld [vmem:[#allocation9 + $0x400] sm:$0xff]
    %v826 = vld [vmem:[#allocation9 + $0x408] sm:$0xff]
    %v827 = vld [vmem:[#allocation9 + $0x410] sm:$0xff]
    %v828 = vld [vmem:[#allocation9 + $0x418] sm:$0xff]
    %v829 = vld [vmem:[#allocation9 + $0x420] sm:$0xff]
    %v830 = vld [vmem:[#allocation9 + $0x428] sm:$0xff]
    %v831 = vld [vmem:[#allocation9 + $0x430] sm:$0xff]
    %v832 = vld [vmem:[#allocation9 + $0x438] sm:$0xff]
    %v833 = vld [vmem:[#allocation9 + $0x440] sm:$0xff]
    %v834 = vld [vmem:[#allocation9 + $0x448] sm:$0xff]
    %v835 = vld [vmem:[#allocation9 + $0x450] sm:$0xff]
    %v836 = vld [vmem:[#allocation9 + $0x458] sm:$0xff]
    %v837 = vld [vmem:[#allocation9 + $0x460] sm:$0xff]
    %v838 = vld [vmem:[#allocation9 + $0x468] sm:$0xff]
    %v839 = vld [vmem:[#allocation9 + $0x470] sm:$0xff]
    %v840 = vld [vmem:[#allocation9 + $0x478] sm:$0xff]
    %s841 = scalar_lea.vmem [#allocation15], 2
    %v842 = vld [vmem:[%s841] ss:$8 sm:$0xf]
    %s843 = scalar_lea.vmem [#allocation16], 2
    %v844 = vld [vmem:[%s843] ss:$8 sm:$0xf]
    %v845 = vunpack.c.l.s8.bf16 %v777
    %v846 = vunpack.c.l.s8.bf16 %v778
    %v847 = vunpack.c.l.s8.bf16 %v779
    %v848 = vunpack.c.l.s8.bf16 %v780
    %v849 = vunpack.c.h.s8.bf16 %v777
    %v850 = vunpack.c.h.s8.bf16 %v778
    %v851 = vunpack.c.h.s8.bf16 %v779
    %v852 = vunpack.c.h.s8.bf16 %v780
    %v853 = vunpack.c.l.s8.bf16 %v781
    %v854 = vunpack.c.l.s8.bf16 %v782
    %v855 = vunpack.c.l.s8.bf16 %v783
    %v856 = vunpack.c.l.s8.bf16 %v784
    %v857 = vunpack.c.h.s8.bf16 %v781
    %v858 = vunpack.c.h.s8.bf16 %v782
    %v859 = vunpack.c.h.s8.bf16 %v783
    %v860 = vunpack.c.h.s8.bf16 %v784
    %v861 = vunpack.c.l.s8.bf16 %v785
    %v862 = vunpack.c.l.s8.bf16 %v786
    %v863 = vunpack.c.l.s8.bf16 %v787
    %v864 = vunpack.c.l.s8.bf16 %v788
    %v865 = vunpack.c.h.s8.bf16 %v785
    %v866 = vunpack.c.h.s8.bf16 %v786
    %v867 = vunpack.c.h.s8.bf16 %v787
    %v868 = vunpack.c.h.s8.bf16 %v788
    %v869 = vunpack.c.l.s8.bf16 %v789
    %v870 = vunpack.c.l.s8.bf16 %v790
    %v871 = vunpack.c.l.s8.bf16 %v791
    %v872 = vunpack.c.l.s8.bf16 %v792
    %v873 = vunpack.c.h.s8.bf16 %v789
    %v874 = vunpack.c.h.s8.bf16 %v790
    %v875 = vunpack.c.h.s8.bf16 %v791
    %v876 = vunpack.c.h.s8.bf16 %v792
    %v877 = vunpack.c.l.s8.bf16 %v793
    %v878 = vunpack.c.l.s8.bf16 %v794
    %v879 = vunpack.c.l.s8.bf16 %v795
    %v880 = vunpack.c.l.s8.bf16 %v796
    %v881 = vunpack.c.h.s8.bf16 %v793
    %v882 = vunpack.c.h.s8.bf16 %v794
    %v883 = vunpack.c.h.s8.bf16 %v795
    %v884 = vunpack.c.h.s8.bf16 %v796
    %v885 = vunpack.c.l.s8.bf16 %v797
    %v886 = vunpack.c.l.s8.bf16 %v798
    %v887 = vunpack.c.l.s8.bf16 %v799
    %v888 = vunpack.c.l.s8.bf16 %v800
    %v889 = vunpack.c.h.s8.bf16 %v797
    %v890 = vunpack.c.h.s8.bf16 %v798
    %v891 = vunpack.c.h.s8.bf16 %v799
    %v892 = vunpack.c.h.s8.bf16 %v800
    %v893 = vunpack.c.l.s8.bf16 %v801
    %v894 = vunpack.c.l.s8.bf16 %v802
    %v895 = vunpack.c.l.s8.bf16 %v803
    %v896 = vunpack.c.l.s8.bf16 %v804
    %v897 = vunpack.c.h.s8.bf16 %v801
    %v898 = vunpack.c.h.s8.bf16 %v802
    %v899 = vunpack.c.h.s8.bf16 %v803
    %v900 = vunpack.c.h.s8.bf16 %v804
    %v901 = vunpack.c.l.s8.bf16 %v805
    %v902 = vunpack.c.l.s8.bf16 %v806
    %v903 = vunpack.c.l.s8.bf16 %v807
    %v904 = vunpack.c.l.s8.bf16 %v808
    %v905 = vunpack.c.h.s8.bf16 %v805
    %v906 = vunpack.c.h.s8.bf16 %v806
    %v907 = vunpack.c.h.s8.bf16 %v807
    %v908 = vunpack.c.h.s8.bf16 %v808
    %v909 = vunpack.c.l.s8.bf16 %v809
    %v910 = vunpack.c.l.s8.bf16 %v810
    %v911 = vunpack.c.l.s8.bf16 %v811
    %v912 = vunpack.c.l.s8.bf16 %v812
    %v913 = vunpack.c.h.s8.bf16 %v809
    %v914 = vunpack.c.h.s8.bf16 %v810
    %v915 = vunpack.c.h.s8.bf16 %v811
    %v916 = vunpack.c.h.s8.bf16 %v812
    %v917 = vunpack.c.l.s8.bf16 %v813
    %v918 = vunpack.c.l.s8.bf16 %v814
    %v919 = vunpack.c.l.s8.bf16 %v815
    %v920 = vunpack.c.l.s8.bf16 %v816
    %v921 = vunpack.c.h.s8.bf16 %v813
    %v922 = vunpack.c.h.s8.bf16 %v814
    %v923 = vunpack.c.h.s8.bf16 %v815
    %v924 = vunpack.c.h.s8.bf16 %v816
    %v925 = vunpack.c.l.s8.bf16 %v817
    %v926 = vunpack.c.l.s8.bf16 %v818
    %v927 = vunpack.c.l.s8.bf16 %v819
    %v928 = vunpack.c.l.s8.bf16 %v820
    %v929 = vunpack.c.h.s8.bf16 %v817
    %v930 = vunpack.c.h.s8.bf16 %v818
    %v931 = vunpack.c.h.s8.bf16 %v819
    %v932 = vunpack.c.h.s8.bf16 %v820
    %v933 = vunpack.c.l.s8.bf16 %v821
    %v934 = vunpack.c.l.s8.bf16 %v822
    %v935 = vunpack.c.l.s8.bf16 %v823
    %v936 = vunpack.c.l.s8.bf16 %v824
    %v937 = vunpack.c.h.s8.bf16 %v821
    %v938 = vunpack.c.h.s8.bf16 %v822
    %v939 = vunpack.c.h.s8.bf16 %v823
    %v940 = vunpack.c.h.s8.bf16 %v824
    %v941 = vunpack.c.l.s8.bf16 %v825
    %v942 = vunpack.c.l.s8.bf16 %v826
    %v943 = vunpack.c.l.s8.bf16 %v827
    %v944 = vunpack.c.l.s8.bf16 %v828
    %v945 = vunpack.c.h.s8.bf16 %v825
    %v946 = vunpack.c.h.s8.bf16 %v826
    %v947 = vunpack.c.h.s8.bf16 %v827
    %v948 = vunpack.c.h.s8.bf16 %v828
    %v949 = vunpack.c.l.s8.bf16 %v829
    %v950 = vunpack.c.l.s8.bf16 %v830
    %v951 = vunpack.c.l.s8.bf16 %v831
    %v952 = vunpack.c.l.s8.bf16 %v832
    %v953 = vunpack.c.h.s8.bf16 %v829
    %v954 = vunpack.c.h.s8.bf16 %v830
    %v955 = vunpack.c.h.s8.bf16 %v831
    %v956 = vunpack.c.h.s8.bf16 %v832
    %v957 = vunpack.c.l.s8.bf16 %v833
    %v958 = vunpack.c.l.s8.bf16 %v834
    %v959 = vunpack.c.l.s8.bf16 %v835
    %v960 = vunpack.c.l.s8.bf16 %v836
    %v961 = vunpack.c.h.s8.bf16 %v833
    %v962 = vunpack.c.h.s8.bf16 %v834
    %v963 = vunpack.c.h.s8.bf16 %v835
    %v964 = vunpack.c.h.s8.bf16 %v836
    %v965 = vunpack.c.l.s8.bf16 %v837
    %v966 = vunpack.c.l.s8.bf16 %v838
    %v967 = vunpack.c.l.s8.bf16 %v839
    %v968 = vunpack.c.l.s8.bf16 %v840
    %v969 = vunpack.c.h.s8.bf16 %v837
    %v970 = vunpack.c.h.s8.bf16 %v838
    %v971 = vunpack.c.h.s8.bf16 %v839
    %v972 = vunpack.c.h.s8.bf16 %v840
    %v973 = vpack.c.bf16 %v773, %v773
    %v974 = vpack.c.bf16 %v774, %v774
    %v975 = vpack.c.bf16 %v775, %v775
    %v976 = vpack.c.bf16 %v776, %v776
    %977 = vmatprep.subr.bf16.mxu0 %v846
    %978 = vmatpush1.bf16.msra.mxu0 %v845
    %979 = vmatprep.subr.bf16.mxu0 %v850
    %980 = vmatpush1.bf16.msra.mxu0 %v849
    %981 = vmatprep.subr.bf16.mxu0 %v854
    %982 = vmatpush1.bf16.msra.mxu0 %v853
    %983 = vmatprep.subr.bf16.mxu0 %v858
    %984 = vmatpush1.bf16.msra.mxu0 %v857
    %985 = vmatprep.subr.bf16.mxu0 %v862
    %986 = vmatpush1.bf16.msra.mxu0 %v861
    %987 = vmatprep.subr.bf16.mxu0 %v866
    %988 = vmatpush1.bf16.msra.mxu0 %v865
    %989 = vmatprep.subr.bf16.mxu0 %v870
    %990 = vmatpush1.bf16.msra.mxu0 %v869
    %991 = vmatprep.subr.bf16.mxu0 %v874
    %992 = vmatpush1.bf16.msra.mxu0 %v873
    %993 = vmatprep.subr.bf16.mxu0 %v878
    %994 = vmatpush1.bf16.msra.mxu0 %v877
    %995 = vmatprep.subr.bf16.mxu0 %v882
    %996 = vmatpush1.bf16.msra.mxu0 %v881
    %997 = vmatprep.subr.bf16.mxu0 %v886
    %998 = vmatpush1.bf16.msra.mxu0 %v885
    %999 = vmatprep.subr.bf16.mxu0 %v890
    %1000 = vmatpush1.bf16.msra.mxu0 %v889
    %1001 = vmatprep.subr.bf16.mxu0 %v894
    %1002 = vmatpush1.bf16.msra.mxu0 %v893
    %1003 = vmatprep.subr.bf16.mxu0 %v898
    %1004 = vmatpush1.bf16.msra.mxu0 %v897
    %1005 = vmatprep.subr.bf16.mxu0 %v902
    %1006 = vmatpush1.bf16.msra.mxu0 %v901
    %1007 = vmatprep.subr.bf16.mxu0 %v906
    %1008 = vmatpush1.bf16.msra.mxu0 %v905
    %1009 = vmatprep.mubr.bf16.mxu0 %v974
    %1010 = vmatmul.mubr.bf16.gmra.mrb[0].mxu0 %v973
    %v1011 = vpop.f32.mrb[0].mxu0
    %v1012 = vadd.f32 0.0, %v1011
    %v1013 = vpop.f32.mrb[0].mxu0
    %v1014 = vadd.f32 0.0, %v1013
    %v1015 = vpop.f32.mrb[0].mxu0
    %v1016 = vpop.f32.mrb[0].mxu0
    %1017 = vdwg.mxu0
    %1018 = vmatprep.subr.bf16.mxu0 %v910
    %1019 = vmatpush1.bf16.msra.mxu0 %v909
    %1020 = vmatprep.subr.bf16.mxu0 %v914
    %1021 = vmatpush1.bf16.msra.mxu0 %v913
    %1022 = vmatprep.subr.bf16.mxu0 %v918
    %1023 = vmatpush1.bf16.msra.mxu0 %v917
    %1024 = vmatprep.subr.bf16.mxu0 %v922
    %1025 = vmatpush1.bf16.msra.mxu0 %v921
    %1026 = vmatprep.subr.bf16.mxu0 %v926
    %1027 = vmatpush1.bf16.msra.mxu0 %v925
    %1028 = vmatprep.subr.bf16.mxu0 %v930
    %1029 = vmatpush1.bf16.msra.mxu0 %v929
    %1030 = vmatprep.subr.bf16.mxu0 %v934
    %1031 = vmatpush1.bf16.msra.mxu0 %v933
    %1032 = vmatprep.subr.bf16.mxu0 %v938
    %1033 = vmatpush1.bf16.msra.mxu0 %v937
    %1034 = vmatprep.subr.bf16.mxu0 %v942
    %1035 = vmatpush1.bf16.msra.mxu0 %v941
    %1036 = vmatprep.subr.bf16.mxu0 %v946
    %1037 = vmatpush1.bf16.msra.mxu0 %v945
    %1038 = vmatprep.subr.bf16.mxu0 %v950
    %1039 = vmatpush1.bf16.msra.mxu0 %v949
    %1040 = vmatprep.subr.bf16.mxu0 %v954
    %1041 = vmatpush1.bf16.msra.mxu0 %v953
    %1042 = vmatprep.subr.bf16.mxu0 %v958
    %1043 = vmatpush1.bf16.msra.mxu0 %v957
    %1044 = vmatprep.subr.bf16.mxu0 %v962
    %1045 = vmatpush1.bf16.msra.mxu0 %v961
    %1046 = vmatprep.subr.bf16.mxu0 %v966
    %1047 = vmatpush1.bf16.msra.mxu0 %v965
    %1048 = vmatprep.subr.bf16.mxu0 %v970
    %1049 = vmatpush1.bf16.msra.mxu0 %v969
    %1050 = vmatprep.mubr.bf16.mxu0 %v976
    %1051 = vmatmul.mubr.bf16.gmra.mrb[0].mxu0 %v975
    %v1052 = vpop.f32.mrb[0].mxu0
    %v1053 = vadd.f32 %v1012, %v1052
    %v1054 = vpop.f32.mrb[0].mxu0
    %v1055 = vadd.f32 %v1014, %v1054
    %v1056 = vpop.f32.mrb[0].mxu0
    %v1057 = vpop.f32.mrb[0].mxu0
    %1058 = vdwg.mxu0
    %1059 = vmatprep.subr.bf16.mxu0 %v848
    %1060 = vmatpush1.bf16.msra.mxu0 %v847
    %1061 = vmatprep.subr.bf16.mxu0 %v852
    %1062 = vmatpush1.bf16.msra.mxu0 %v851
    %1063 = vmatprep.subr.bf16.mxu0 %v856
    %1064 = vmatpush1.bf16.msra.mxu0 %v855
    %1065 = vmatprep.subr.bf16.mxu0 %v860
    %1066 = vmatpush1.bf16.msra.mxu0 %v859
    %1067 = vmatprep.subr.bf16.mxu0 %v864
    %1068 = vmatpush1.bf16.msra.mxu0 %v863
    %1069 = vmatprep.subr.bf16.mxu0 %v868
    %1070 = vmatpush1.bf16.msra.mxu0 %v867
    %1071 = vmatprep.subr.bf16.mxu0 %v872
    %1072 = vmatpush1.bf16.msra.mxu0 %v871
    %1073 = vmatprep.subr.bf16.mxu0 %v876
    %1074 = vmatpush1.bf16.msra.mxu0 %v875
    %1075 = vmatprep.subr.bf16.mxu0 %v880
    %1076 = vmatpush1.bf16.msra.mxu0 %v879
    %1077 = vmatprep.subr.bf16.mxu0 %v884
    %1078 = vmatpush1.bf16.msra.mxu0 %v883
    %1079 = vmatprep.subr.bf16.mxu0 %v888
    %1080 = vmatpush1.bf16.msra.mxu0 %v887
    %1081 = vmatprep.subr.bf16.mxu0 %v892
    %1082 = vmatpush1.bf16.msra.mxu0 %v891
    %1083 = vmatprep.subr.bf16.mxu0 %v896
    %1084 = vmatpush1.bf16.msra.mxu0 %v895
    %1085 = vmatprep.subr.bf16.mxu0 %v900
    %1086 = vmatpush1.bf16.msra.mxu0 %v899
    %1087 = vmatprep.subr.bf16.mxu0 %v904
    %1088 = vmatpush1.bf16.msra.mxu0 %v903
    %1089 = vmatprep.subr.bf16.mxu0 %v908
    %1090 = vmatpush1.bf16.msra.mxu0 %v907
    %1091 = vmatprep.mubr.bf16.mxu0 %v974
    %1092 = vmatmul.mubr.bf16.gmra.mrb[0].mxu0 %v973
    %v1093 = vpop.f32.mrb[0].mxu0
    %v1094 = vadd.f32 0.0, %v1093
    %v1095 = vpop.f32.mrb[0].mxu0
    %v1096 = vadd.f32 0.0, %v1095
    %v1097 = vpop.f32.mrb[0].mxu0
    %v1098 = vpop.f32.mrb[0].mxu0
    %1099 = vdwg.mxu0
    %1100 = vmatprep.subr.bf16.mxu0 %v912
    %1101 = vmatpush1.bf16.msra.mxu0 %v911
    %1102 = vmatprep.subr.bf16.mxu0 %v916
    %1103 = vmatpush1.bf16.msra.mxu0 %v915
    %1104 = vmatprep.subr.bf16.mxu0 %v920
    %1105 = vmatpush1.bf16.msra.mxu0 %v919
    %1106 = vmatprep.subr.bf16.mxu0 %v924
    %1107 = vmatpush1.bf16.msra.mxu0 %v923
    %1108 = vmatprep.subr.bf16.mxu0 %v928
    %1109 = vmatpush1.bf16.msra.mxu0 %v927
    %1110 = vmatprep.subr.bf16.mxu0 %v932
    %1111 = vmatpush1.bf16.msra.mxu0 %v931
    %1112 = vmatprep.subr.bf16.mxu0 %v936
    %1113 = vmatpush1.bf16.msra.mxu0 %v935
    %1114 = vmatprep.subr.bf16.mxu0 %v940
    %1115 = vmatpush1.bf16.msra.mxu0 %v939
    %1116 = vmatprep.subr.bf16.mxu0 %v944
    %1117 = vmatpush1.bf16.msra.mxu0 %v943
    %1118 = vmatprep.subr.bf16.mxu0 %v948
    %1119 = vmatpush1.bf16.msra.mxu0 %v947
    %1120 = vmatprep.subr.bf16.mxu0 %v952
    %1121 = vmatpush1.bf16.msra.mxu0 %v951
    %1122 = vmatprep.subr.bf16.mxu0 %v956
    %1123 = vmatpush1.bf16.msra.mxu0 %v955
    %1124 = vmatprep.subr.bf16.mxu0 %v960
    %1125 = vmatpush1.bf16.msra.mxu0 %v959
    %1126 = vmatprep.subr.bf16.mxu0 %v964
    %1127 = vmatpush1.bf16.msra.mxu0 %v963
    %1128 = vmatprep.subr.bf16.mxu0 %v968
    %1129 = vmatpush1.bf16.msra.mxu0 %v967
    %1130 = vmatprep.subr.bf16.mxu0 %v972
    %1131 = vmatpush1.bf16.msra.mxu0 %v971
    %1132 = vmatprep.mubr.bf16.mxu0 %v976
    %1133 = vmatmul.mubr.bf16.gmra.mrb[0].mxu0 %v975
    %v1134 = vpop.f32.mrb[0].mxu0
    %v1135 = vadd.f32 %v1094, %v1134
    %v1136 = vpop.f32.mrb[0].mxu0
    %v1137 = vadd.f32 %v1096, %v1136
    %v1138 = vpop.f32.mrb[0].mxu0
    %v1139 = vpop.f32.mrb[0].mxu0
    %1140 = vdwg.mxu0
    %v1142 = vlaneseq
    %v1143 = vshrl.u32 %v1142, 7
    %v1144 = vsub.s32 0, %v1143
    %v1145 = vrot.slane %v842, %v1144
    %v1146 = vlaneseq
    %v1147 = vshrl.u32 %v1146, 7
    %v1148 = vsub.s32 1, %v1147
    %v1149 = vrot.slane %v842, %v1148
    %v1150 = vlaneseq
    %v1151 = vshrl.u32 %v1150, 7
    %v1152 = vsub.s32 2, %v1151
    %v1153 = vrot.slane %v842, %v1152
    %v1154 = vlaneseq
    %v1155 = vshrl.u32 %v1154, 7
    %v1156 = vsub.s32 3, %v1155
    %v1157 = vrot.slane %v842, %v1156
    %v1162 = vmul.f32 %v1053, %v1145
    %v1163 = vmul.f32 %v1055, %v1149
    %v1164 = vmul.f32 %v1135, %v1153
    %v1165 = vmul.f32 %v1137, %v1157
    %v1167 = vlaneseq
    %v1168 = vshrl.u32 %v1167, 7
    %v1169 = vsub.s32 0, %v1168
    %v1170 = vrot.slane %v844, %v1169
    %v1171 = vlaneseq
    %v1172 = vshrl.u32 %v1171, 7
    %v1173 = vsub.s32 1, %v1172
    %v1174 = vrot.slane %v844, %v1173
    %v1175 = vlaneseq
    %v1176 = vshrl.u32 %v1175, 7
    %v1177 = vsub.s32 2, %v1176
    %v1178 = vrot.slane %v844, %v1177
    %v1179 = vlaneseq
    %v1180 = vshrl.u32 %v1179, 7
    %v1181 = vsub.s32 3, %v1180
    %v1182 = vrot.slane %v844, %v1181
    %v1187 = vadd.f32 %v1162, %v1170
    %v1188 = vadd.f32 %v1163, %v1174
    %v1189 = vadd.f32 %v1164, %v1178
    %v1190 = vadd.f32 %v1165, %v1182
    %v1191 = vmax.f32 %v1187, 0.0
    %v1192 = vmax.f32 %v1188, 0.0
    %v1193 = vmax.f32 %v1189, 0.0
    %v1194 = vmax.f32 %v1190, 0.0
    %v1195 = vld [vmem:[#allocation3] sm:$0xff]
    %v1196 = vld [vmem:[#allocation3 + $0x8] sm:$0xff]
    %v1197 = vld [vmem:[#allocation3 + $0x10] sm:$0xff]
    %v1198 = vld [vmem:[#allocation3 + $0x18] sm:$0xff]
    %v1199 = vld [vmem:[#allocation10] sm:$0xff]
    %v1200 = vld [vmem:[#allocation10 + $0x8] sm:$0xff]
    %v1201 = vld [vmem:[#allocation10 + $0x10] sm:$0xff]
    %v1202 = vld [vmem:[#allocation10 + $0x18] sm:$0xff]
    %v1203 = vld [vmem:[#allocation10 + $0x20] sm:$0xff]
    %v1204 = vld [vmem:[#allocation10 + $0x28] sm:$0xff]
    %v1205 = vld [vmem:[#allocation10 + $0x30] sm:$0xff]
    %v1206 = vld [vmem:[#allocation10 + $0x38] sm:$0xff]
    %v1207 = vld [vmem:[#allocation10 + $0x40] sm:$0xff]
    %v1208 = vld [vmem:[#allocation10 + $0x48] sm:$0xff]
    %v1209 = vld [vmem:[#allocation10 + $0x50] sm:$0xff]
    %v1210 = vld [vmem:[#allocation10 + $0x58] sm:$0xff]
    %v1211 = vld [vmem:[#allocation10 + $0x60] sm:$0xff]
    %v1212 = vld [vmem:[#allocation10 + $0x68] sm:$0xff]
    %v1213 = vld [vmem:[#allocation10 + $0x70] sm:$0xff]
    %v1214 = vld [vmem:[#allocation10 + $0x78] sm:$0xff]
    %v1215 = vld [vmem:[#allocation10 + $0x80] sm:$0xff]
    %v1216 = vld [vmem:[#allocation10 + $0x88] sm:$0xff]
    %v1217 = vld [vmem:[#allocation10 + $0x90] sm:$0xff]
    %v1218 = vld [vmem:[#allocation10 + $0x98] sm:$0xff]
    %v1219 = vld [vmem:[#allocation10 + $0xa0] sm:$0xff]
    %v1220 = vld [vmem:[#allocation10 + $0xa8] sm:$0xff]
    %v1221 = vld [vmem:[#allocation10 + $0xb0] sm:$0xff]
    %v1222 = vld [vmem:[#allocation10 + $0xb8] sm:$0xff]
    %v1223 = vld [vmem:[#allocation10 + $0xc0] sm:$0xff]
    %v1224 = vld [vmem:[#allocation10 + $0xc8] sm:$0xff]
    %v1225 = vld [vmem:[#allocation10 + $0xd0] sm:$0xff]
    %v1226 = vld [vmem:[#allocation10 + $0xd8] sm:$0xff]
    %v1227 = vld [vmem:[#allocation10 + $0xe0] sm:$0xff]
    %v1228 = vld [vmem:[#allocation10 + $0xe8] sm:$0xff]
    %v1229 = vld [vmem:[#allocation10 + $0xf0] sm:$0xff]
    %v1230 = vld [vmem:[#allocation10 + $0xf8] sm:$0xff]
    %v1231 = vld [vmem:[#allocation10 + $0x100] sm:$0xff]
    %v1232 = vld [vmem:[#allocation10 + $0x108] sm:$0xff]
    %v1233 = vld [vmem:[#allocation10 + $0x110] sm:$0xff]
    %v1234 = vld [vmem:[#allocation10 + $0x118] sm:$0xff]
    %v1235 = vld [vmem:[#allocation10 + $0x120] sm:$0xff]
    %v1236 = vld [vmem:[#allocation10 + $0x128] sm:$0xff]
    %v1237 = vld [vmem:[#allocation10 + $0x130] sm:$0xff]
    %v1238 = vld [vmem:[#allocation10 + $0x138] sm:$0xff]
    %v1239 = vld [vmem:[#allocation10 + $0x140] sm:$0xff]
    %v1240 = vld [vmem:[#allocation10 + $0x148] sm:$0xff]
    %v1241 = vld [vmem:[#allocation10 + $0x150] sm:$0xff]
    %v1242 = vld [vmem:[#allocation10 + $0x158] sm:$0xff]
    %v1243 = vld [vmem:[#allocation10 + $0x160] sm:$0xff]
    %v1244 = vld [vmem:[#allocation10 + $0x168] sm:$0xff]
    %v1245 = vld [vmem:[#allocation10 + $0x170] sm:$0xff]
    %v1246 = vld [vmem:[#allocation10 + $0x178] sm:$0xff]
    %v1247 = vld [vmem:[#allocation10 + $0x180] sm:$0xff]
    %v1248 = vld [vmem:[#allocation10 + $0x188] sm:$0xff]
    %v1249 = vld [vmem:[#allocation10 + $0x190] sm:$0xff]
    %v1250 = vld [vmem:[#allocation10 + $0x198] sm:$0xff]
    %v1251 = vld [vmem:[#allocation10 + $0x1a0] sm:$0xff]
    %v1252 = vld [vmem:[#allocation10 + $0x1a8] sm:$0xff]
    %v1253 = vld [vmem:[#allocation10 + $0x1b0] sm:$0xff]
    %v1254 = vld [vmem:[#allocation10 + $0x1b8] sm:$0xff]
    %v1255 = vld [vmem:[#allocation10 + $0x1c0] sm:$0xff]
    %v1256 = vld [vmem:[#allocation10 + $0x1c8] sm:$0xff]
    %v1257 = vld [vmem:[#allocation10 + $0x1d0] sm:$0xff]
    %v1258 = vld [vmem:[#allocation10 + $0x1d8] sm:$0xff]
    %v1259 = vld [vmem:[#allocation10 + $0x1e0] sm:$0xff]
    %v1260 = vld [vmem:[#allocation10 + $0x1e8] sm:$0xff]
    %v1261 = vld [vmem:[#allocation10 + $0x1f0] sm:$0xff]
    %v1262 = vld [vmem:[#allocation10 + $0x1f8] sm:$0xff]
    %s1263 = scalar_lea.vmem [#allocation15], 3
    %v1264 = vld [vmem:[%s1263] ss:$8 sm:$0xf]
    %s1265 = scalar_lea.vmem [#allocation16], 3
    %v1266 = vld [vmem:[%s1265] ss:$8 sm:$0xf]
    %v1267 = vunpack.c.l.s8.bf16 %v1199
    %v1268 = vunpack.c.l.s8.bf16 %v1200
    %v1269 = vunpack.c.l.s8.bf16 %v1201
    %v1270 = vunpack.c.l.s8.bf16 %v1202
    %v1271 = vunpack.c.h.s8.bf16 %v1199
    %v1272 = vunpack.c.h.s8.bf16 %v1200
    %v1273 = vunpack.c.h.s8.bf16 %v1201
    %v1274 = vunpack.c.h.s8.bf16 %v1202
    %v1275 = vunpack.c.l.s8.bf16 %v1203
    %v1276 = vunpack.c.l.s8.bf16 %v1204
    %v1277 = vunpack.c.l.s8.bf16 %v1205
    %v1278 = vunpack.c.l.s8.bf16 %v1206
    %v1279 = vunpack.c.h.s8.bf16 %v1203
    %v1280 = vunpack.c.h.s8.bf16 %v1204
    %v1281 = vunpack.c.h.s8.bf16 %v1205
    %v1282 = vunpack.c.h.s8.bf16 %v1206
    %v1283 = vunpack.c.l.s8.bf16 %v1207
    %v1284 = vunpack.c.l.s8.bf16 %v1208
    %v1285 = vunpack.c.l.s8.bf16 %v1209
    %v1286 = vunpack.c.l.s8.bf16 %v1210
    %v1287 = vunpack.c.h.s8.bf16 %v1207
    %v1288 = vunpack.c.h.s8.bf16 %v1208
    %v1289 = vunpack.c.h.s8.bf16 %v1209
    %v1290 = vunpack.c.h.s8.bf16 %v1210
    %v1291 = vunpack.c.l.s8.bf16 %v1211
    %v1292 = vunpack.c.l.s8.bf16 %v1212
    %v1293 = vunpack.c.l.s8.bf16 %v1213
    %v1294 = vunpack.c.l.s8.bf16 %v1214
    %v1295 = vunpack.c.h.s8.bf16 %v1211
    %v1296 = vunpack.c.h.s8.bf16 %v1212
    %v1297 = vunpack.c.h.s8.bf16 %v1213
    %v1298 = vunpack.c.h.s8.bf16 %v1214
    %v1299 = vunpack.c.l.s8.bf16 %v1215
    %v1300 = vunpack.c.l.s8.bf16 %v1216
    %v1301 = vunpack.c.l.s8.bf16 %v1217
    %v1302 = vunpack.c.l.s8.bf16 %v1218
    %v1303 = vunpack.c.h.s8.bf16 %v1215
    %v1304 = vunpack.c.h.s8.bf16 %v1216
    %v1305 = vunpack.c.h.s8.bf16 %v1217
    %v1306 = vunpack.c.h.s8.bf16 %v1218
    %v1307 = vunpack.c.l.s8.bf16 %v1219
    %v1308 = vunpack.c.l.s8.bf16 %v1220
    %v1309 = vunpack.c.l.s8.bf16 %v1221
    %v1310 = vunpack.c.l.s8.bf16 %v1222
    %v1311 = vunpack.c.h.s8.bf16 %v1219
    %v1312 = vunpack.c.h.s8.bf16 %v1220
    %v1313 = vunpack.c.h.s8.bf16 %v1221
    %v1314 = vunpack.c.h.s8.bf16 %v1222
    %v1315 = vunpack.c.l.s8.bf16 %v1223
    %v1316 = vunpack.c.l.s8.bf16 %v1224
    %v1317 = vunpack.c.l.s8.bf16 %v1225
    %v1318 = vunpack.c.l.s8.bf16 %v1226
    %v1319 = vunpack.c.h.s8.bf16 %v1223
    %v1320 = vunpack.c.h.s8.bf16 %v1224
    %v1321 = vunpack.c.h.s8.bf16 %v1225
    %v1322 = vunpack.c.h.s8.bf16 %v1226
    %v1323 = vunpack.c.l.s8.bf16 %v1227
    %v1324 = vunpack.c.l.s8.bf16 %v1228
    %v1325 = vunpack.c.l.s8.bf16 %v1229
    %v1326 = vunpack.c.l.s8.bf16 %v1230
    %v1327 = vunpack.c.h.s8.bf16 %v1227
    %v1328 = vunpack.c.h.s8.bf16 %v1228
    %v1329 = vunpack.c.h.s8.bf16 %v1229
    %v1330 = vunpack.c.h.s8.bf16 %v1230
    %v1331 = vunpack.c.l.s8.bf16 %v1231
    %v1332 = vunpack.c.l.s8.bf16 %v1232
    %v1333 = vunpack.c.l.s8.bf16 %v1233
    %v1334 = vunpack.c.l.s8.bf16 %v1234
    %v1335 = vunpack.c.h.s8.bf16 %v1231
    %v1336 = vunpack.c.h.s8.bf16 %v1232
    %v1337 = vunpack.c.h.s8.bf16 %v1233
    %v1338 = vunpack.c.h.s8.bf16 %v1234
    %v1339 = vunpack.c.l.s8.bf16 %v1235
    %v1340 = vunpack.c.l.s8.bf16 %v1236
    %v1341 = vunpack.c.l.s8.bf16 %v1237
    %v1342 = vunpack.c.l.s8.bf16 %v1238
    %v1343 = vunpack.c.h.s8.bf16 %v1235
    %v1344 = vunpack.c.h.s8.bf16 %v1236
    %v1345 = vunpack.c.h.s8.bf16 %v1237
    %v1346 = vunpack.c.h.s8.bf16 %v1238
    %v1347 = vunpack.c.l.s8.bf16 %v1239
    %v1348 = vunpack.c.l.s8.bf16 %v1240
    %v1349 = vunpack.c.l.s8.bf16 %v1241
    %v1350 = vunpack.c.l.s8.bf16 %v1242
    %v1351 = vunpack.c.h.s8.bf16 %v1239
    %v1352 = vunpack.c.h.s8.bf16 %v1240
    %v1353 = vunpack.c.h.s8.bf16 %v1241
    %v1354 = vunpack.c.h.s8.bf16 %v1242
    %v1355 = vunpack.c.l.s8.bf16 %v1243
    %v1356 = vunpack.c.l.s8.bf16 %v1244
    %v1357 = vunpack.c.l.s8.bf16 %v1245
    %v1358 = vunpack.c.l.s8.bf16 %v1246
    %v1359 = vunpack.c.h.s8.bf16 %v1243
    %v1360 = vunpack.c.h.s8.bf16 %v1244
    %v1361 = vunpack.c.h.s8.bf16 %v1245
    %v1362 = vunpack.c.h.s8.bf16 %v1246
    %v1363 = vunpack.c.l.s8.bf16 %v1247
    %v1364 = vunpack.c.l.s8.bf16 %v1248
    %v1365 = vunpack.c.l.s8.bf16 %v1249
    %v1366 = vunpack.c.l.s8.bf16 %v1250
    %v1367 = vunpack.c.h.s8.bf16 %v1247
    %v1368 = vunpack.c.h.s8.bf16 %v1248
    %v1369 = vunpack.c.h.s8.bf16 %v1249
    %v1370 = vunpack.c.h.s8.bf16 %v1250
    %v1371 = vunpack.c.l.s8.bf16 %v1251
    %v1372 = vunpack.c.l.s8.bf16 %v1252
    %v1373 = vunpack.c.l.s8.bf16 %v1253
    %v1374 = vunpack.c.l.s8.bf16 %v1254
    %v1375 = vunpack.c.h.s8.bf16 %v1251
    %v1376 = vunpack.c.h.s8.bf16 %v1252
    %v1377 = vunpack.c.h.s8.bf16 %v1253
    %v1378 = vunpack.c.h.s8.bf16 %v1254
    %v1379 = vunpack.c.l.s8.bf16 %v1255
    %v1380 = vunpack.c.l.s8.bf16 %v1256
    %v1381 = vunpack.c.l.s8.bf16 %v1257
    %v1382 = vunpack.c.l.s8.bf16 %v1258
    %v1383 = vunpack.c.h.s8.bf16 %v1255
    %v1384 = vunpack.c.h.s8.bf16 %v1256
    %v1385 = vunpack.c.h.s8.bf16 %v1257
    %v1386 = vunpack.c.h.s8.bf16 %v1258
    %v1387 = vunpack.c.l.s8.bf16 %v1259
    %v1388 = vunpack.c.l.s8.bf16 %v1260
    %v1389 = vunpack.c.l.s8.bf16 %v1261
    %v1390 = vunpack.c.l.s8.bf16 %v1262
    %v1391 = vunpack.c.h.s8.bf16 %v1259
    %v1392 = vunpack.c.h.s8.bf16 %v1260
    %v1393 = vunpack.c.h.s8.bf16 %v1261
    %v1394 = vunpack.c.h.s8.bf16 %v1262
    %v1395 = vpack.c.bf16 %v1195, %v1195
    %v1396 = vpack.c.bf16 %v1196, %v1196
    %v1397 = vpack.c.bf16 %v1197, %v1197
    %v1398 = vpack.c.bf16 %v1198, %v1198
    %1399 = vmatprep.subr.bf16.mxu0 %v1268
    %1400 = vmatpush1.bf16.msra.mxu0 %v1267
    %1401 = vmatprep.subr.bf16.mxu0 %v1272
    %1402 = vmatpush1.bf16.msra.mxu0 %v1271
    %1403 = vmatprep.subr.bf16.mxu0 %v1276
    %1404 = vmatpush1.bf16.msra.mxu0 %v1275
    %1405 = vmatprep.subr.bf16.mxu0 %v1280
    %1406 = vmatpush1.bf16.msra.mxu0 %v1279
    %1407 = vmatprep.subr.bf16.mxu0 %v1284
    %1408 = vmatpush1.bf16.msra.mxu0 %v1283
    %1409 = vmatprep.subr.bf16.mxu0 %v1288
    %1410 = vmatpush1.bf16.msra.mxu0 %v1287
    %1411 = vmatprep.subr.bf16.mxu0 %v1292
    %1412 = vmatpush1.bf16.msra.mxu0 %v1291
    %1413 = vmatprep.subr.bf16.mxu0 %v1296
    %1414 = vmatpush1.bf16.msra.mxu0 %v1295
    %1415 = vmatprep.subr.bf16.mxu0 %v1300
    %1416 = vmatpush1.bf16.msra.mxu0 %v1299
    %1417 = vmatprep.subr.bf16.mxu0 %v1304
    %1418 = vmatpush1.bf16.msra.mxu0 %v1303
    %1419 = vmatprep.subr.bf16.mxu0 %v1308
    %1420 = vmatpush1.bf16.msra.mxu0 %v1307
    %1421 = vmatprep.subr.bf16.mxu0 %v1312
    %1422 = vmatpush1.bf16.msra.mxu0 %v1311
    %1423 = vmatprep.subr.bf16.mxu0 %v1316
    %1424 = vmatpush1.bf16.msra.mxu0 %v1315
    %1425 = vmatprep.subr.bf16.mxu0 %v1320
    %1426 = vmatpush1.bf16.msra.mxu0 %v1319
    %1427 = vmatprep.subr.bf16.mxu0 %v1324
    %1428 = vmatpush1.bf16.msra.mxu0 %v1323
    %1429 = vmatprep.subr.bf16.mxu0 %v1328
    %1430 = vmatpush1.bf16.msra.mxu0 %v1327
    %1431 = vmatprep.mubr.bf16.mxu0 %v1396
    %1432 = vmatmul.mubr.bf16.gmra.mrb[0].mxu0 %v1395
    %v1433 = vpop.f32.mrb[0].mxu0
    %v1434 = vadd.f32 0.0, %v1433
    %v1435 = vpop.f32.mrb[0].mxu0
    %v1436 = vadd.f32 0.0, %v1435
    %v1437 = vpop.f32.mrb[0].mxu0
    %v1438 = vpop.f32.mrb[0].mxu0
    %1439 = vdwg.mxu0
    %1440 = vmatprep.subr.bf16.mxu0 %v1332
    %1441 = vmatpush1.bf16.msra.mxu0 %v1331
    %1442 = vmatprep.subr.bf16.mxu0 %v1336
    %1443 = vmatpush1.bf16.msra.mxu0 %v1335
    %1444 = vmatprep.subr.bf16.mxu0 %v1340
    %1445 = vmatpush1.bf16.msra.mxu0 %v1339
    %1446 = vmatprep.subr.bf16.mxu0 %v1344
    %1447 = vmatpush1.bf16.msra.mxu0 %v1343
    %1448 = vmatprep.subr.bf16.mxu0 %v1348
    %1449 = vmatpush1.bf16.msra.mxu0 %v1347
    %1450 = vmatprep.subr.bf16.mxu0 %v1352
    %1451 = vmatpush1.bf16.msra.mxu0 %v1351
    %1452 = vmatprep.subr.bf16.mxu0 %v1356
    %1453 = vmatpush1.bf16.msra.mxu0 %v1355
    %1454 = vmatprep.subr.bf16.mxu0 %v1360
    %1455 = vmatpush1.bf16.msra.mxu0 %v1359
    %1456 = vmatprep.subr.bf16.mxu0 %v1364
    %1457 = vmatpush1.bf16.msra.mxu0 %v1363
    %1458 = vmatprep.subr.bf16.mxu0 %v1368
    %1459 = vmatpush1.bf16.msra.mxu0 %v1367
    %1460 = vmatprep.subr.bf16.mxu0 %v1372
    %1461 = vmatpush1.bf16.msra.mxu0 %v1371
    %1462 = vmatprep.subr.bf16.mxu0 %v1376
    %1463 = vmatpush1.bf16.msra.mxu0 %v1375
    %1464 = vmatprep.subr.bf16.mxu0 %v1380
    %1465 = vmatpush1.bf16.msra.mxu0 %v1379
    %1466 = vmatprep.subr.bf16.mxu0 %v1384
    %1467 = vmatpush1.bf16.msra.mxu0 %v1383
    %1468 = vmatprep.subr.bf16.mxu0 %v1388
    %1469 = vmatpush1.bf16.msra.mxu0 %v1387
    %1470 = vmatprep.subr.bf16.mxu0 %v1392
    %1471 = vmatpush1.bf16.msra.mxu0 %v1391
    %1472 = vmatprep.mubr.bf16.mxu0 %v1398
    %1473 = vmatmul.mubr.bf16.gmra.mrb[0].mxu0 %v1397
    %v1474 = vpop.f32.mrb[0].mxu0
    %v1475 = vadd.f32 %v1434, %v1474
    %v1476 = vpop.f32.mrb[0].mxu0
    %v1477 = vadd.f32 %v1436, %v1476
    %v1478 = vpop.f32.mrb[0].mxu0
    %v1479 = vpop.f32.mrb[0].mxu0
    %1480 = vdwg.mxu0
    %1481 = vmatprep.subr.bf16.mxu0 %v1270
    %1482 = vmatpush1.bf16.msra.mxu0 %v1269
    %1483 = vmatprep.subr.bf16.mxu0 %v1274
    %1484 = vmatpush1.bf16.msra.mxu0 %v1273
    %1485 = vmatprep.subr.bf16.mxu0 %v1278
    %1486 = vmatpush1.bf16.msra.mxu0 %v1277
    %1487 = vmatprep.subr.bf16.mxu0 %v1282
    %1488 = vmatpush1.bf16.msra.mxu0 %v1281
    %1489 = vmatprep.subr.bf16.mxu0 %v1286
    %1490 = vmatpush1.bf16.msra.mxu0 %v1285
    %1491 = vmatprep.subr.bf16.mxu0 %v1290
    %1492 = vmatpush1.bf16.msra.mxu0 %v1289
    %1493 = vmatprep.subr.bf16.mxu0 %v1294
    %1494 = vmatpush1.bf16.msra.mxu0 %v1293
    %1495 = vmatprep.subr.bf16.mxu0 %v1298
    %1496 = vmatpush1.bf16.msra.mxu0 %v1297
    %1497 = vmatprep.subr.bf16.mxu0 %v1302
    %1498 = vmatpush1.bf16.msra.mxu0 %v1301
    %1499 = vmatprep.subr.bf16.mxu0 %v1306
    %1500 = vmatpush1.bf16.msra.mxu0 %v1305
    %1501 = vmatprep.subr.bf16.mxu0 %v1310
    %1502 = vmatpush1.bf16.msra.mxu0 %v1309
    %1503 = vmatprep.subr.bf16.mxu0 %v1314
    %1504 = vmatpush1.bf16.msra.mxu0 %v1313
    %1505 = vmatprep.subr.bf16.mxu0 %v1318
    %1506 = vmatpush1.bf16.msra.mxu0 %v1317
    %1507 = vmatprep.subr.bf16.mxu0 %v1322
    %1508 = vmatpush1.bf16.msra.mxu0 %v1321
    %1509 = vmatprep.subr.bf16.mxu0 %v1326
    %1510 = vmatpush1.bf16.msra.mxu0 %v1325
    %1511 = vmatprep.subr.bf16.mxu0 %v1330
    %1512 = vmatpush1.bf16.msra.mxu0 %v1329
    %1513 = vmatprep.mubr.bf16.mxu0 %v1396
    %1514 = vmatmul.mubr.bf16.gmra.mrb[0].mxu0 %v1395
    %v1515 = vpop.f32.mrb[0].mxu0
    %v1516 = vadd.f32 0.0, %v1515
    %v1517 = vpop.f32.mrb[0].mxu0
    %v1518 = vadd.f32 0.0, %v1517
    %v1519 = vpop.f32.mrb[0].mxu0
    %v1520 = vpop.f32.mrb[0].mxu0
    %1521 = vdwg.mxu0
    %1522 = vmatprep.subr.bf16.mxu0 %v1334
    %1523 = vmatpush1.bf16.msra.mxu0 %v1333
    %1524 = vmatprep.subr.bf16.mxu0 %v1338
    %1525 = vmatpush1.bf16.msra.mxu0 %v1337
    %1526 = vmatprep.subr.bf16.mxu0 %v1342
    %1527 = vmatpush1.bf16.msra.mxu0 %v1341
    %1528 = vmatprep.subr.bf16.mxu0 %v1346
    %1529 = vmatpush1.bf16.msra.mxu0 %v1345
    %1530 = vmatprep.subr.bf16.mxu0 %v1350
    %1531 = vmatpush1.bf16.msra.mxu0 %v1349
    %1532 = vmatprep.subr.bf16.mxu0 %v1354
    %1533 = vmatpush1.bf16.msra.mxu0 %v1353
    %1534 = vmatprep.subr.bf16.mxu0 %v1358
    %1535 = vmatpush1.bf16.msra.mxu0 %v1357
    %1536 = vmatprep.subr.bf16.mxu0 %v1362
    %1537 = vmatpush1.bf16.msra.mxu0 %v1361
    %1538 = vmatprep.subr.bf16.mxu0 %v1366
    %1539 = vmatpush1.bf16.msra.mxu0 %v1365
    %1540 = vmatprep.subr.bf16.mxu0 %v1370
    %1541 = vmatpush1.bf16.msra.mxu0 %v1369
    %1542 = vmatprep.subr.bf16.mxu0 %v1374
    %1543 = vmatpush1.bf16.msra.mxu0 %v1373
    %1544 = vmatprep.subr.bf16.mxu0 %v1378
    %1545 = vmatpush1.bf16.msra.mxu0 %v1377
    %1546 = vmatprep.subr.bf16.mxu0 %v1382
    %1547 = vmatpush1.bf16.msra.mxu0 %v1381
    %1548 = vmatprep.subr.bf16.mxu0 %v1386
    %1549 = vmatpush1.bf16.msra.mxu0 %v1385
    %1550 = vmatprep.subr.bf16.mxu0 %v1390
    %1551 = vmatpush1.bf16.msra.mxu0 %v1389
    %1552 = vmatprep.subr.bf16.mxu0 %v1394
    %1553 = vmatpush1.bf16.msra.mxu0 %v1393
    %1554 = vmatprep.mubr.bf16.mxu0 %v1398
    %1555 = vmatmul.mubr.bf16.gmra.mrb[0].mxu0 %v1397
    %v1556 = vpop.f32.mrb[0].mxu0
    %v1557 = vadd.f32 %v1516, %v1556
    %v1558 = vpop.f32.mrb[0].mxu0
    %v1559 = vadd.f32 %v1518, %v1558
    %v1560 = vpop.f32.mrb[0].mxu0
    %v1561 = vpop.f32.mrb[0].mxu0
    %1562 = vdwg.mxu0
    %v1564 = vlaneseq
    %v1565 = vshrl.u32 %v1564, 7
    %v1566 = vsub.s32 0, %v1565
    %v1567 = vrot.slane %v1264, %v1566
    %v1568 = vlaneseq
    %v1569 = vshrl.u32 %v1568, 7
    %v1570 = vsub.s32 1, %v1569
    %v1571 = vrot.slane %v1264, %v1570
    %v1572 = vlaneseq
    %v1573 = vshrl.u32 %v1572, 7
    %v1574 = vsub.s32 2, %v1573
    %v1575 = vrot.slane %v1264, %v1574
    %v1576 = vlaneseq
    %v1577 = vshrl.u32 %v1576, 7
    %v1578 = vsub.s32 3, %v1577
    %v1579 = vrot.slane %v1264, %v1578
    %v1584 = vmul.f32 %v1475, %v1567
    %v1585 = vmul.f32 %v1477, %v1571
    %v1586 = vmul.f32 %v1557, %v1575
    %v1587 = vmul.f32 %v1559, %v1579
    %v1589 = vlaneseq
    %v1590 = vshrl.u32 %v1589, 7
    %v1591 = vsub.s32 0, %v1590
    %v1592 = vrot.slane %v1266, %v1591
    %v1593 = vlaneseq
    %v1594 = vshrl.u32 %v1593, 7
    %v1595 = vsub.s32 1, %v1594
    %v1596 = vrot.slane %v1266, %v1595
    %v1597 = vlaneseq
    %v1598 = vshrl.u32 %v1597, 7
    %v1599 = vsub.s32 2, %v1598
    %v1600 = vrot.slane %v1266, %v1599
    %v1601 = vlaneseq
    %v1602 = vshrl.u32 %v1601, 7
    %v1603 = vsub.s32 3, %v1602
    %v1604 = vrot.slane %v1266, %v1603
    %v1609 = vadd.f32 %v1584, %v1592
    %v1610 = vadd.f32 %v1585, %v1596
    %v1611 = vadd.f32 %v1586, %v1600
    %v1612 = vadd.f32 %v1587, %v1604
    %v1613 = vmax.f32 %v1609, 0.0
    %v1614 = vmax.f32 %v1610, 0.0
    %v1615 = vmax.f32 %v1611, 0.0
    %v1616 = vmax.f32 %v1612, 0.0
    %v1617 = vld [vmem:[#allocation10 + $0x200] sm:$0xff]
    %v1618 = vld [vmem:[#allocation10 + $0x208] sm:$0xff]
    %v1619 = vld [vmem:[#allocation10 + $0x210] sm:$0xff]
    %v1620 = vld [vmem:[#allocation10 + $0x218] sm:$0xff]
    %v1621 = vld [vmem:[#allocation10 + $0x220] sm:$0xff]
    %v1622 = vld [vmem:[#allocation10 + $0x228] sm:$0xff]
    %v1623 = vld [vmem:[#allocation10 + $0x230] sm:$0xff]
    %v1624 = vld [vmem:[#allocation10 + $0x238] sm:$0xff]
    %v1625 = vld [vmem:[#allocation10 + $0x240] sm:$0xff]
    %v1626 = vld [vmem:[#allocation10 + $0x248] sm:$0xff]
    %v1627 = vld [vmem:[#allocation10 + $0x250] sm:$0xff]
    %v1628 = vld [vmem:[#allocation10 + $0x258] sm:$0xff]
    %v1629 = vld [vmem:[#allocation10 + $0x260] sm:$0xff]
    %v1630 = vld [vmem:[#allocation10 + $0x268] sm:$0xff]
    %v1631 = vld [vmem:[#allocation10 + $0x270] sm:$0xff]
    %v1632 = vld [vmem:[#allocation10 + $0x278] sm:$0xff]
    %v1633 = vld [vmem:[#allocation10 + $0x280] sm:$0xff]
    %v1634 = vld [vmem:[#allocation10 + $0x288] sm:$0xff]
    %v1635 = vld [vmem:[#allocation10 + $0x290] sm:$0xff]
    %v1636 = vld [vmem:[#allocation10 + $0x298] sm:$0xff]
    %v1637 = vld [vmem:[#allocation10 + $0x2a0] sm:$0xff]
    %v1638 = vld [vmem:[#allocation10 + $0x2a8] sm:$0xff]
    %v1639 = vld [vmem:[#allocation10 + $0x2b0] sm:$0xff]
    %v1640 = vld [vmem:[#allocation10 + $0x2b8] sm:$0xff]
    %v1641 = vld [vmem:[#allocation10 + $0x2c0] sm:$0xff]
    %v1642 = vld [vmem:[#allocation10 + $0x2c8] sm:$0xff]
    %v1643 = vld [vmem:[#allocation10 + $0x2d0] sm:$0xff]
    %v1644 = vld [vmem:[#allocation10 + $0x2d8] sm:$0xff]
    %v1645 = vld [vmem:[#allocation10 + $0x2e0] sm:$0xff]
    %v1646 = vld [vmem:[#allocation10 + $0x2e8] sm:$0xff]
    %v1647 = vld [vmem:[#allocation10 + $0x2f0] sm:$0xff]
    %v1648 = vld [vmem:[#allocation10 + $0x2f8] sm:$0xff]
    %v1649 = vld [vmem:[#allocation10 + $0x300] sm:$0xff]
    %v1650 = vld [vmem:[#allocation10 + $0x308] sm:$0xff]
    %v1651 = vld [vmem:[#allocation10 + $0x310] sm:$0xff]
    %v1652 = vld [vmem:[#allocation10 + $0x318] sm:$0xff]
    %v1653 = vld [vmem:[#allocation10 + $0x320] sm:$0xff]
    %v1654 = vld [vmem:[#allocation10 + $0x328] sm:$0xff]
    %v1655 = vld [vmem:[#allocation10 + $0x330] sm:$0xff]
    %v1656 = vld [vmem:[#allocation10 + $0x338] sm:$0xff]
    %v1657 = vld [vmem:[#allocation10 + $0x340] sm:$0xff]
    %v1658 = vld [vmem:[#allocation10 + $0x348] sm:$0xff]
    %v1659 = vld [vmem:[#allocation10 + $0x350] sm:$0xff]
    %v1660 = vld [vmem:[#allocation10 + $0x358] sm:$0xff]
    %v1661 = vld [vmem:[#allocation10 + $0x360] sm:$0xff]
    %v1662 = vld [vmem:[#allocation10 + $0x368] sm:$0xff]
    %v1663 = vld [vmem:[#allocation10 + $0x370] sm:$0xff]
    %v1664 = vld [vmem:[#allocation10 + $0x378] sm:$0xff]
    %v1665 = vld [vmem:[#allocation10 + $0x380] sm:$0xff]
    %v1666 = vld [vmem:[#allocation10 + $0x388] sm:$0xff]
    %v1667 = vld [vmem:[#allocation10 + $0x390] sm:$0xff]
    %v1668 = vld [vmem:[#allocation10 + $0x398] sm:$0xff]
    %v1669 = vld [vmem:[#allocation10 + $0x3a0] sm:$0xff]
    %v1670 = vld [vmem:[#allocation10 + $0x3a8] sm:$0xff]
    %v1671 = vld [vmem:[#allocation10 + $0x3b0] sm:$0xff]
    %v1672 = vld [vmem:[#allocation10 + $0x3b8] sm:$0xff]
    %v1673 = vld [vmem:[#allocation10 + $0x3c0] sm:$0xff]
    %v1674 = vld [vmem:[#allocation10 + $0x3c8] sm:$0xff]
    %v1675 = vld [vmem:[#allocation10 + $0x3d0] sm:$0xff]
    %v1676 = vld [vmem:[#allocation10 + $0x3d8] sm:$0xff]
    %v1677 = vld [vmem:[#allocation10 + $0x3e0] sm:$0xff]
    %v1678 = vld [vmem:[#allocation10 + $0x3e8] sm:$0xff]
    %v1679 = vld [vmem:[#allocation10 + $0x3f0] sm:$0xff]
    %v1680 = vld [vmem:[#allocation10 + $0x3f8] sm:$0xff]
    %s1681 = scalar_lea.vmem [#allocation15], 4
    %v1682 = vld [vmem:[%s1681] ss:$8 sm:$0xf]
    %s1683 = scalar_lea.vmem [#allocation16], 4
    %v1684 = vld [vmem:[%s1683] ss:$8 sm:$0xf]
    %v1685 = vunpack.c.l.s8.bf16 %v1617
    %v1686 = vunpack.c.l.s8.bf16 %v1618
    %v1687 = vunpack.c.l.s8.bf16 %v1619
    %v1688 = vunpack.c.l.s8.bf16 %v1620
    %v1689 = vunpack.c.h.s8.bf16 %v1617
    %v1690 = vunpack.c.h.s8.bf16 %v1618
    %v1691 = vunpack.c.h.s8.bf16 %v1619
    %v1692 = vunpack.c.h.s8.bf16 %v1620
    %v1693 = vunpack.c.l.s8.bf16 %v1621
    %v1694 = vunpack.c.l.s8.bf16 %v1622
    %v1695 = vunpack.c.l.s8.bf16 %v1623
    %v1696 = vunpack.c.l.s8.bf16 %v1624
    %v1697 = vunpack.c.h.s8.bf16 %v1621
    %v1698 = vunpack.c.h.s8.bf16 %v1622
    %v1699 = vunpack.c.h.s8.bf16 %v1623
    %v1700 = vunpack.c.h.s8.bf16 %v1624
    %v1701 = vunpack.c.l.s8.bf16 %v1625
    %v1702 = vunpack.c.l.s8.bf16 %v1626
    %v1703 = vunpack.c.l.s8.bf16 %v1627
    %v1704 = vunpack.c.l.s8.bf16 %v1628
    %v1705 = vunpack.c.h.s8.bf16 %v1625
    %v1706 = vunpack.c.h.s8.bf16 %v1626
    %v1707 = vunpack.c.h.s8.bf16 %v1627
    %v1708 = vunpack.c.h.s8.bf16 %v1628
    %v1709 = vunpack.c.l.s8.bf16 %v1629
    %v1710 = vunpack.c.l.s8.bf16 %v1630
    %v1711 = vunpack.c.l.s8.bf16 %v1631
    %v1712 = vunpack.c.l.s8.bf16 %v1632
    %v1713 = vunpack.c.h.s8.bf16 %v1629
    %v1714 = vunpack.c.h.s8.bf16 %v1630
    %v1715 = vunpack.c.h.s8.bf16 %v1631
    %v1716 = vunpack.c.h.s8.bf16 %v1632
    %v1717 = vunpack.c.l.s8.bf16 %v1633
    %v1718 = vunpack.c.l.s8.bf16 %v1634
    %v1719 = vunpack.c.l.s8.bf16 %v1635
    %v1720 = vunpack.c.l.s8.bf16 %v1636
    %v1721 = vunpack.c.h.s8.bf16 %v1633
    %v1722 = vunpack.c.h.s8.bf16 %v1634
    %v1723 = vunpack.c.h.s8.bf16 %v1635
    %v1724 = vunpack.c.h.s8.bf16 %v1636
    %v1725 = vunpack.c.l.s8.bf16 %v1637
    %v1726 = vunpack.c.l.s8.bf16 %v1638
    %v1727 = vunpack.c.l.s8.bf16 %v1639
    %v1728 = vunpack.c.l.s8.bf16 %v1640
    %v1729 = vunpack.c.h.s8.bf16 %v1637
    %v1730 = vunpack.c.h.s8.bf16 %v1638
    %v1731 = vunpack.c.h.s8.bf16 %v1639
    %v1732 = vunpack.c.h.s8.bf16 %v1640
    %v1733 = vunpack.c.l.s8.bf16 %v1641
    %v1734 = vunpack.c.l.s8.bf16 %v1642
    %v1735 = vunpack.c.l.s8.bf16 %v1643
    %v1736 = vunpack.c.l.s8.bf16 %v1644
    %v1737 = vunpack.c.h.s8.bf16 %v1641
    %v1738 = vunpack.c.h.s8.bf16 %v1642
    %v1739 = vunpack.c.h.s8.bf16 %v1643
    %v1740 = vunpack.c.h.s8.bf16 %v1644
    %v1741 = vunpack.c.l.s8.bf16 %v1645
    %v1742 = vunpack.c.l.s8.bf16 %v1646
    %v1743 = vunpack.c.l.s8.bf16 %v1647
    %v1744 = vunpack.c.l.s8.bf16 %v1648
    %v1745 = vunpack.c.h.s8.bf16 %v1645
    %v1746 = vunpack.c.h.s8.bf16 %v1646
    %v1747 = vunpack.c.h.s8.bf16 %v1647
    %v1748 = vunpack.c.h.s8.bf16 %v1648
    %v1749 = vunpack.c.l.s8.bf16 %v1649
    %v1750 = vunpack.c.l.s8.bf16 %v1650
    %v1751 = vunpack.c.l.s8.bf16 %v1651
    %v1752 = vunpack.c.l.s8.bf16 %v1652
    %v1753 = vunpack.c.h.s8.bf16 %v1649
    %v1754 = vunpack.c.h.s8.bf16 %v1650
    %v1755 = vunpack.c.h.s8.bf16 %v1651
    %v1756 = vunpack.c.h.s8.bf16 %v1652
    %v1757 = vunpack.c.l.s8.bf16 %v1653
    %v1758 = vunpack.c.l.s8.bf16 %v1654
    %v1759 = vunpack.c.l.s8.bf16 %v1655
    %v1760 = vunpack.c.l.s8.bf16 %v1656
    %v1761 = vunpack.c.h.s8.bf16 %v1653
    %v1762 = vunpack.c.h.s8.bf16 %v1654
    %v1763 = vunpack.c.h.s8.bf16 %v1655
    %v1764 = vunpack.c.h.s8.bf16 %v1656
    %v1765 = vunpack.c.l.s8.bf16 %v1657
    %v1766 = vunpack.c.l.s8.bf16 %v1658
    %v1767 = vunpack.c.l.s8.bf16 %v1659
    %v1768 = vunpack.c.l.s8.bf16 %v1660
    %v1769 = vunpack.c.h.s8.bf16 %v1657
    %v1770 = vunpack.c.h.s8.bf16 %v1658
    %v1771 = vunpack.c.h.s8.bf16 %v1659
    %v1772 = vunpack.c.h.s8.bf16 %v1660
    %v1773 = vunpack.c.l.s8.bf16 %v1661
    %v1774 = vunpack.c.l.s8.bf16 %v1662
    %v1775 = vunpack.c.l.s8.bf16 %v1663
    %v1776 = vunpack.c.l.s8.bf16 %v1664
    %v1777 = vunpack.c.h.s8.bf16 %v1661
    %v1778 = vunpack.c.h.s8.bf16 %v1662
    %v1779 = vunpack.c.h.s8.bf16 %v1663
    %v1780 = vunpack.c.h.s8.bf16 %v1664
    %v1781 = vunpack.c.l.s8.bf16 %v1665
    %v1782 = vunpack.c.l.s8.bf16 %v1666
    %v1783 = vunpack.c.l.s8.bf16 %v1667
    %v1784 = vunpack.c.l.s8.bf16 %v1668
    %v1785 = vunpack.c.h.s8.bf16 %v1665
    %v1786 = vunpack.c.h.s8.bf16 %v1666
    %v1787 = vunpack.c.h.s8.bf16 %v1667
    %v1788 = vunpack.c.h.s8.bf16 %v1668
    %v1789 = vunpack.c.l.s8.bf16 %v1669
    %v1790 = vunpack.c.l.s8.bf16 %v1670
    %v1791 = vunpack.c.l.s8.bf16 %v1671
    %v1792 = vunpack.c.l.s8.bf16 %v1672
    %v1793 = vunpack.c.h.s8.bf16 %v1669
    %v1794 = vunpack.c.h.s8.bf16 %v1670
    %v1795 = vunpack.c.h.s8.bf16 %v1671
    %v1796 = vunpack.c.h.s8.bf16 %v1672
    %v1797 = vunpack.c.l.s8.bf16 %v1673
    %v1798 = vunpack.c.l.s8.bf16 %v1674
    %v1799 = vunpack.c.l.s8.bf16 %v1675
    %v1800 = vunpack.c.l.s8.bf16 %v1676
    %v1801 = vunpack.c.h.s8.bf16 %v1673
    %v1802 = vunpack.c.h.s8.bf16 %v1674
    %v1803 = vunpack.c.h.s8.bf16 %v1675
    %v1804 = vunpack.c.h.s8.bf16 %v1676
    %v1805 = vunpack.c.l.s8.bf16 %v1677
    %v1806 = vunpack.c.l.s8.bf16 %v1678
    %v1807 = vunpack.c.l.s8.bf16 %v1679
    %v1808 = vunpack.c.l.s8.bf16 %v1680
    %v1809 = vunpack.c.h.s8.bf16 %v1677
    %v1810 = vunpack.c.h.s8.bf16 %v1678
    %v1811 = vunpack.c.h.s8.bf16 %v1679
    %v1812 = vunpack.c.h.s8.bf16 %v1680
    %v1813 = vpack.c.bf16 %v1613, %v1613
    %v1814 = vpack.c.bf16 %v1614, %v1614
    %v1815 = vpack.c.bf16 %v1615, %v1615
    %v1816 = vpack.c.bf16 %v1616, %v1616
    %1817 = vmatprep.subr.bf16.mxu0 %v1686
    %1818 = vmatpush1.bf16.msra.mxu0 %v1685
    %1819 = vmatprep.subr.bf16.mxu0 %v1690
    %1820 = vmatpush1.bf16.msra.mxu0 %v1689
    %1821 = vmatprep.subr.bf16.mxu0 %v1694
    %1822 = vmatpush1.bf16.msra.mxu0 %v1693
    %1823 = vmatprep.subr.bf16.mxu0 %v1698
    %1824 = vmatpush1.bf16.msra.mxu0 %v1697
    %1825 = vmatprep.subr.bf16.mxu0 %v1702
    %1826 = vmatpush1.bf16.msra.mxu0 %v1701
    %1827 = vmatprep.subr.bf16.mxu0 %v1706
    %1828 = vmatpush1.bf16.msra.mxu0 %v1705
    %1829 = vmatprep.subr.bf16.mxu0 %v1710
    %1830 = vmatpush1.bf16.msra.mxu0 %v1709
    %1831 = vmatprep.subr.bf16.mxu0 %v1714
    %1832 = vmatpush1.bf16.msra.mxu0 %v1713
    %1833 = vmatprep.subr.bf16.mxu0 %v1718
    %1834 = vmatpush1.bf16.msra.mxu0 %v1717
    %1835 = vmatprep.subr.bf16.mxu0 %v1722
    %1836 = vmatpush1.bf16.msra.mxu0 %v1721
    %1837 = vmatprep.subr.bf16.mxu0 %v1726
    %1838 = vmatpush1.bf16.msra.mxu0 %v1725
    %1839 = vmatprep.subr.bf16.mxu0 %v1730
    %1840 = vmatpush1.bf16.msra.mxu0 %v1729
    %1841 = vmatprep.subr.bf16.mxu0 %v1734
    %1842 = vmatpush1.bf16.msra.mxu0 %v1733
    %1843 = vmatprep.subr.bf16.mxu0 %v1738
    %1844 = vmatpush1.bf16.msra.mxu0 %v1737
    %1845 = vmatprep.subr.bf16.mxu0 %v1742
    %1846 = vmatpush1.bf16.msra.mxu0 %v1741
    %1847 = vmatprep.subr.bf16.mxu0 %v1746
    %1848 = vmatpush1.bf16.msra.mxu0 %v1745
    %1849 = vmatprep.mubr.bf16.mxu0 %v1814
    %1850 = vmatmul.mubr.bf16.gmra.mrb[0].mxu0 %v1813
    %v1851 = vpop.f32.mrb[0].mxu0
    %v1852 = vadd.f32 0.0, %v1851
    %v1853 = vpop.f32.mrb[0].mxu0
    %v1854 = vadd.f32 0.0, %v1853
    %v1855 = vpop.f32.mrb[0].mxu0
    %v1856 = vpop.f32.mrb[0].mxu0
    %1857 = vdwg.mxu0
    %1858 = vmatprep.subr.bf16.mxu0 %v1750
    %1859 = vmatpush1.bf16.msra.mxu0 %v1749
    %1860 = vmatprep.subr.bf16.mxu0 %v1754
    %1861 = vmatpush1.bf16.msra.mxu0 %v1753
    %1862 = vmatprep.subr.bf16.mxu0 %v1758
    %1863 = vmatpush1.bf16.msra.mxu0 %v1757
    %1864 = vmatprep.subr.bf16.mxu0 %v1762
    %1865 = vmatpush1.bf16.msra.mxu0 %v1761
    %1866 = vmatprep.subr.bf16.mxu0 %v1766
    %1867 = vmatpush1.bf16.msra.mxu0 %v1765
    %1868 = vmatprep.subr.bf16.mxu0 %v1770
    %1869 = vmatpush1.bf16.msra.mxu0 %v1769
    %1870 = vmatprep.subr.bf16.mxu0 %v1774
    %1871 = vmatpush1.bf16.msra.mxu0 %v1773
    %1872 = vmatprep.subr.bf16.mxu0 %v1778
    %1873 = vmatpush1.bf16.msra.mxu0 %v1777
    %1874 = vmatprep.subr.bf16.mxu0 %v1782
    %1875 = vmatpush1.bf16.msra.mxu0 %v1781
    %1876 = vmatprep.subr.bf16.mxu0 %v1786
    %1877 = vmatpush1.bf16.msra.mxu0 %v1785
    %1878 = vmatprep.subr.bf16.mxu0 %v1790
    %1879 = vmatpush1.bf16.msra.mxu0 %v1789
    %1880 = vmatprep.subr.bf16.mxu0 %v1794
    %1881 = vmatpush1.bf16.msra.mxu0 %v1793
    %1882 = vmatprep.subr.bf16.mxu0 %v1798
    %1883 = vmatpush1.bf16.msra.mxu0 %v1797
    %1884 = vmatprep.subr.bf16.mxu0 %v1802
    %1885 = vmatpush1.bf16.msra.mxu0 %v1801
    %1886 = vmatprep.subr.bf16.mxu0 %v1806
    %1887 = vmatpush1.bf16.msra.mxu0 %v1805
    %1888 = vmatprep.subr.bf16.mxu0 %v1810
    %1889 = vmatpush1.bf16.msra.mxu0 %v1809
    %1890 = vmatprep.mubr.bf16.mxu0 %v1816
    %1891 = vmatmul.mubr.bf16.gmra.mrb[0].mxu0 %v1815
    %v1892 = vpop.f32.mrb[0].mxu0
    %v1893 = vadd.f32 %v1852, %v1892
    %v1894 = vpop.f32.mrb[0].mxu0
    %v1895 = vadd.f32 %v1854, %v1894
    %v1896 = vpop.f32.mrb[0].mxu0
    %v1897 = vpop.f32.mrb[0].mxu0
    %1898 = vdwg.mxu0
    %1899 = vmatprep.subr.bf16.mxu0 %v1688
    %1900 = vmatpush1.bf16.msra.mxu0 %v1687
    %1901 = vmatprep.subr.bf16.mxu0 %v1692
    %1902 = vmatpush1.bf16.msra.mxu0 %v1691
    %1903 = vmatprep.subr.bf16.mxu0 %v1696
    %1904 = vmatpush1.bf16.msra.mxu0 %v1695
    %1905 = vmatprep.subr.bf16.mxu0 %v1700
    %1906 = vmatpush1.bf16.msra.mxu0 %v1699
    %1907 = vmatprep.subr.bf16.mxu0 %v1704
    %1908 = vmatpush1.bf16.msra.mxu0 %v1703
    %1909 = vmatprep.subr.bf16.mxu0 %v1708
    %1910 = vmatpush1.bf16.msra.mxu0 %v1707
    %1911 = vmatprep.subr.bf16.mxu0 %v1712
    %1912 = vmatpush1.bf16.msra.mxu0 %v1711
    %1913 = vmatprep.subr.bf16.mxu0 %v1716
    %1914 = vmatpush1.bf16.msra.mxu0 %v1715
    %1915 = vmatprep.subr.bf16.mxu0 %v1720
    %1916 = vmatpush1.bf16.msra.mxu0 %v1719
    %1917 = vmatprep.subr.bf16.mxu0 %v1724
    %1918 = vmatpush1.bf16.msra.mxu0 %v1723
    %1919 = vmatprep.subr.bf16.mxu0 %v1728
    %1920 = vmatpush1.bf16.msra.mxu0 %v1727
    %1921 = vmatprep.subr.bf16.mxu0 %v1732
    %1922 = vmatpush1.bf16.msra.mxu0 %v1731
    %1923 = vmatprep.subr.bf16.mxu0 %v1736
    %1924 = vmatpush1.bf16.msra.mxu0 %v1735
    %1925 = vmatprep.subr.bf16.mxu0 %v1740
    %1926 = vmatpush1.bf16.msra.mxu0 %v1739
    %1927 = vmatprep.subr.bf16.mxu0 %v1744
    %1928 = vmatpush1.bf16.msra.mxu0 %v1743
    %1929 = vmatprep.subr.bf16.mxu0 %v1748
    %1930 = vmatpush1.bf16.msra.mxu0 %v1747
    %1931 = vmatprep.mubr.bf16.mxu0 %v1814
    %1932 = vmatmul.mubr.bf16.gmra.mrb[0].mxu0 %v1813
    %v1933 = vpop.f32.mrb[0].mxu0
    %v1934 = vadd.f32 0.0, %v1933
    %v1935 = vpop.f32.mrb[0].mxu0
    %v1936 = vadd.f32 0.0, %v1935
    %v1937 = vpop.f32.mrb[0].mxu0
    %v1938 = vpop.f32.mrb[0].mxu0
    %1939 = vdwg.mxu0
    %1940 = vmatprep.subr.bf16.mxu0 %v1752
    %1941 = vmatpush1.bf16.msra.mxu0 %v1751
    %1942 = vmatprep.subr.bf16.mxu0 %v1756
    %1943 = vmatpush1.bf16.msra.mxu0 %v1755
    %1944 = vmatprep.subr.bf16.mxu0 %v1760
    %1945 = vmatpush1.bf16.msra.mxu0 %v1759
    %1946 = vmatprep.subr.bf16.mxu0 %v1764
    %1947 = vmatpush1.bf16.msra.mxu0 %v1763
    %1948 = vmatprep.subr.bf16.mxu0 %v1768
    %1949 = vmatpush1.bf16.msra.mxu0 %v1767
    %1950 = vmatprep.subr.bf16.mxu0 %v1772
    %1951 = vmatpush1.bf16.msra.mxu0 %v1771
    %1952 = vmatprep.subr.bf16.mxu0 %v1776
    %1953 = vmatpush1.bf16.msra.mxu0 %v1775
    %1954 = vmatprep.subr.bf16.mxu0 %v1780
    %1955 = vmatpush1.bf16.msra.mxu0 %v1779
    %1956 = vmatprep.subr.bf16.mxu0 %v1784
    %1957 = vmatpush1.bf16.msra.mxu0 %v1783
    %1958 = vmatprep.subr.bf16.mxu0 %v1788
    %1959 = vmatpush1.bf16.msra.mxu0 %v1787
    %1960 = vmatprep.subr.bf16.mxu0 %v1792
    %1961 = vmatpush1.bf16.msra.mxu0 %v1791
    %1962 = vmatprep.subr.bf16.mxu0 %v1796
    %1963 = vmatpush1.bf16.msra.mxu0 %v1795
    %1964 = vmatprep.subr.bf16.mxu0 %v1800
    %1965 = vmatpush1.bf16.msra.mxu0 %v1799
    %1966 = vmatprep.subr.bf16.mxu0 %v1804
    %1967 = vmatpush1.bf16.msra.mxu0 %v1803
    %1968 = vmatprep.subr.bf16.mxu0 %v1808
    %1969 = vmatpush1.bf16.msra.mxu0 %v1807
    %1970 = vmatprep.subr.bf16.mxu0 %v1812
    %1971 = vmatpush1.bf16.msra.mxu0 %v1811
    %1972 = vmatprep.mubr.bf16.mxu0 %v1816
    %1973 = vmatmul.mubr.bf16.gmra.mrb[0].mxu0 %v1815
    %v1974 = vpop.f32.mrb[0].mxu0
    %v1975 = vadd.f32 %v1934, %v1974
    %v1976 = vpop.f32.mrb[0].mxu0
    %v1977 = vadd.f32 %v1936, %v1976
    %v1978 = vpop.f32.mrb[0].mxu0
    %v1979 = vpop.f32.mrb[0].mxu0
    %1980 = vdwg.mxu0
    %v1982 = vlaneseq
    %v1983 = vshrl.u32 %v1982, 7
    %v1984 = vsub.s32 0, %v1983
    %v1985 = vrot.slane %v1682, %v1984
    %v1986 = vlaneseq
    %v1987 = vshrl.u32 %v1986, 7
    %v1988 = vsub.s32 1, %v1987
    %v1989 = vrot.slane %v1682, %v1988
    %v1990 = vlaneseq
    %v1991 = vshrl.u32 %v1990, 7
    %v1992 = vsub.s32 2, %v1991
    %v1993 = vrot.slane %v1682, %v1992
    %v1994 = vlaneseq
    %v1995 = vshrl.u32 %v1994, 7
    %v1996 = vsub.s32 3, %v1995
    %v1997 = vrot.slane %v1682, %v1996
    %v2002 = vmul.f32 %v1893, %v1985
    %v2003 = vmul.f32 %v1895, %v1989
    %v2004 = vmul.f32 %v1975, %v1993
    %v2005 = vmul.f32 %v1977, %v1997
    %v2007 = vlaneseq
    %v2008 = vshrl.u32 %v2007, 7
    %v2009 = vsub.s32 0, %v2008
    %v2010 = vrot.slane %v1684, %v2009
    %v2011 = vlaneseq
    %v2012 = vshrl.u32 %v2011, 7
    %v2013 = vsub.s32 1, %v2012
    %v2014 = vrot.slane %v1684, %v2013
    %v2015 = vlaneseq
    %v2016 = vshrl.u32 %v2015, 7
    %v2017 = vsub.s32 2, %v2016
    %v2018 = vrot.slane %v1684, %v2017
    %v2019 = vlaneseq
    %v2020 = vshrl.u32 %v2019, 7
    %v2021 = vsub.s32 3, %v2020
    %v2022 = vrot.slane %v1684, %v2021
    %v2027 = vadd.f32 %v2002, %v2010
    %v2028 = vadd.f32 %v2003, %v2014
    %v2029 = vadd.f32 %v2004, %v2018
    %v2030 = vadd.f32 %v2005, %v2022
    %v2031 = vmax.f32 %v2027, 0.0
    %v2032 = vmax.f32 %v2028, 0.0
    %v2033 = vmax.f32 %v2029, 0.0
    %v2034 = vmax.f32 %v2030, 0.0
    %v2035 = vld [vmem:[#allocation10 + $0x400] sm:$0xff]
    %v2036 = vld [vmem:[#allocation10 + $0x408] sm:$0xff]
    %v2037 = vld [vmem:[#allocation10 + $0x410] sm:$0xff]
    %v2038 = vld [vmem:[#allocation10 + $0x418] sm:$0xff]
    %v2039 = vld [vmem:[#allocation10 + $0x420] sm:$0xff]
    %v2040 = vld [vmem:[#allocation10 + $0x428] sm:$0xff]
    %v2041 = vld [vmem:[#allocation10 + $0x430] sm:$0xff]
    %v2042 = vld [vmem:[#allocation10 + $0x438] sm:$0xff]
    %v2043 = vld [vmem:[#allocation10 + $0x440] sm:$0xff]
    %v2044 = vld [vmem:[#allocation10 + $0x448] sm:$0xff]
    %v2045 = vld [vmem:[#allocation10 + $0x450] sm:$0xff]
    %v2046 = vld [vmem:[#allocation10 + $0x458] sm:$0xff]
    %v2047 = vld [vmem:[#allocation10 + $0x460] sm:$0xff]
    %v2048 = vld [vmem:[#allocation10 + $0x468] sm:$0xff]
    %v2049 = vld [vmem:[#allocation10 + $0x470] sm:$0xff]
    %v2050 = vld [vmem:[#allocation10 + $0x478] sm:$0xff]
    %v2051 = vld [vmem:[#allocation10 + $0x480] sm:$0xff]
    %v2052 = vld [vmem:[#allocation10 + $0x488] sm:$0xff]
    %v2053 = vld [vmem:[#allocation10 + $0x490] sm:$0xff]
    %v2054 = vld [vmem:[#allocation10 + $0x498] sm:$0xff]
    %v2055 = vld [vmem:[#allocation10 + $0x4a0] sm:$0xff]
    %v2056 = vld [vmem:[#allocation10 + $0x4a8] sm:$0xff]
    %v2057 = vld [vmem:[#allocation10 + $0x4b0] sm:$0xff]
    %v2058 = vld [vmem:[#allocation10 + $0x4b8] sm:$0xff]
    %v2059 = vld [vmem:[#allocation10 + $0x4c0] sm:$0xff]
    %v2060 = vld [vmem:[#allocation10 + $0x4c8] sm:$0xff]
    %v2061 = vld [vmem:[#allocation10 + $0x4d0] sm:$0xff]
    %v2062 = vld [vmem:[#allocation10 + $0x4d8] sm:$0xff]
    %v2063 = vld [vmem:[#allocation10 + $0x4e0] sm:$0xff]
    %v2064 = vld [vmem:[#allocation10 + $0x4e8] sm:$0xff]
    %v2065 = vld [vmem:[#allocation10 + $0x4f0] sm:$0xff]
    %v2066 = vld [vmem:[#allocation10 + $0x4f8] sm:$0xff]
    %v2067 = vld [vmem:[#allocation10 + $0x500] sm:$0xff]
    %v2068 = vld [vmem:[#allocation10 + $0x508] sm:$0xff]
    %v2069 = vld [vmem:[#allocation10 + $0x510] sm:$0xff]
    %v2070 = vld [vmem:[#allocation10 + $0x518] sm:$0xff]
    %v2071 = vld [vmem:[#allocation10 + $0x520] sm:$0xff]
    %v2072 = vld [vmem:[#allocation10 + $0x528] sm:$0xff]
    %v2073 = vld [vmem:[#allocation10 + $0x530] sm:$0xff]
    %v2074 = vld [vmem:[#allocation10 + $0x538] sm:$0xff]
    %v2075 = vld [vmem:[#allocation10 + $0x540] sm:$0xff]
    %v2076 = vld [vmem:[#allocation10 + $0x548] sm:$0xff]
    %v2077 = vld [vmem:[#allocation10 + $0x550] sm:$0xff]
    %v2078 = vld [vmem:[#allocation10 + $0x558] sm:$0xff]
    %v2079 = vld [vmem:[#allocation10 + $0x560] sm:$0xff]
    %v2080 = vld [vmem:[#allocation10 + $0x568] sm:$0xff]
    %v2081 = vld [vmem:[#allocation10 + $0x570] sm:$0xff]
    %v2082 = vld [vmem:[#allocation10 + $0x578] sm:$0xff]
    %v2083 = vld [vmem:[#allocation10 + $0x580] sm:$0xff]
    %v2084 = vld [vmem:[#allocation10 + $0x588] sm:$0xff]
    %v2085 = vld [vmem:[#allocation10 + $0x590] sm:$0xff]
    %v2086 = vld [vmem:[#allocation10 + $0x598] sm:$0xff]
    %v2087 = vld [vmem:[#allocation10 + $0x5a0] sm:$0xff]
    %v2088 = vld [vmem:[#allocation10 + $0x5a8] sm:$0xff]
    %v2089 = vld [vmem:[#allocation10 + $0x5b0] sm:$0xff]
    %v2090 = vld [vmem:[#allocation10 + $0x5b8] sm:$0xff]
    %v2091 = vld [vmem:[#allocation10 + $0x5c0] sm:$0xff]
    %v2092 = vld [vmem:[#allocation10 + $0x5c8] sm:$0xff]
    %v2093 = vld [vmem:[#allocation10 + $0x5d0] sm:$0xff]
    %v2094 = vld [vmem:[#allocation10 + $0x5d8] sm:$0xff]
    %v2095 = vld [vmem:[#allocation10 + $0x5e0] sm:$0xff]
    %v2096 = vld [vmem:[#allocation10 + $0x5e8] sm:$0xff]
    %v2097 = vld [vmem:[#allocation10 + $0x5f0] sm:$0xff]
    %v2098 = vld [vmem:[#allocation10 + $0x5f8] sm:$0xff]
    %s2099 = scalar_lea.vmem [#allocation15], 5
    %v2100 = vld [vmem:[%s2099] ss:$8 sm:$0xf]
    %s2101 = scalar_lea.vmem [#allocation16], 5
    %v2102 = vld [vmem:[%s2101] ss:$8 sm:$0xf]
    %v2103 = vunpack.c.l.s8.bf16 %v2035
    %v2104 = vunpack.c.l.s8.bf16 %v2036
    %v2105 = vunpack.c.l.s8.bf16 %v2037
    %v2106 = vunpack.c.l.s8.bf16 %v2038
    %v2107 = vunpack.c.h.s8.bf16 %v2035
    %v2108 = vunpack.c.h.s8.bf16 %v2036
    %v2109 = vunpack.c.h.s8.bf16 %v2037
    %v2110 = vunpack.c.h.s8.bf16 %v2038
    %v2111 = vunpack.c.l.s8.bf16 %v2039
    %v2112 = vunpack.c.l.s8.bf16 %v2040
    %v2113 = vunpack.c.l.s8.bf16 %v2041
    %v2114 = vunpack.c.l.s8.bf16 %v2042
    %v2115 = vunpack.c.h.s8.bf16 %v2039
    %v2116 = vunpack.c.h.s8.bf16 %v2040
    %v2117 = vunpack.c.h.s8.bf16 %v2041
    %v2118 = vunpack.c.h.s8.bf16 %v2042
    %v2119 = vunpack.c.l.s8.bf16 %v2043
    %v2120 = vunpack.c.l.s8.bf16 %v2044
    %v2121 = vunpack.c.l.s8.bf16 %v2045
    %v2122 = vunpack.c.l.s8.bf16 %v2046
    %v2123 = vunpack.c.h.s8.bf16 %v2043
    %v2124 = vunpack.c.h.s8.bf16 %v2044
    %v2125 = vunpack.c.h.s8.bf16 %v2045
    %v2126 = vunpack.c.h.s8.bf16 %v2046
    %v2127 = vunpack.c.l.s8.bf16 %v2047
    %v2128 = vunpack.c.l.s8.bf16 %v2048
    %v2129 = vunpack.c.l.s8.bf16 %v2049
    %v2130 = vunpack.c.l.s8.bf16 %v2050
    %v2131 = vunpack.c.h.s8.bf16 %v2047
    %v2132 = vunpack.c.h.s8.bf16 %v2048
    %v2133 = vunpack.c.h.s8.bf16 %v2049
    %v2134 = vunpack.c.h.s8.bf16 %v2050
    %v2135 = vunpack.c.l.s8.bf16 %v2051
    %v2136 = vunpack.c.l.s8.bf16 %v2052
    %v2137 = vunpack.c.l.s8.bf16 %v2053
    %v2138 = vunpack.c.l.s8.bf16 %v2054
    %v2139 = vunpack.c.h.s8.bf16 %v2051
    %v2140 = vunpack.c.h.s8.bf16 %v2052
    %v2141 = vunpack.c.h.s8.bf16 %v2053
    %v2142 = vunpack.c.h.s8.bf16 %v2054
    %v2143 = vunpack.c.l.s8.bf16 %v2055
    %v2144 = vunpack.c.l.s8.bf16 %v2056
    %v2145 = vunpack.c.l.s8.bf16 %v2057
    %v2146 = vunpack.c.l.s8.bf16 %v2058
    %v2147 = vunpack.c.h.s8.bf16 %v2055
    %v2148 = vunpack.c.h.s8.bf16 %v2056
    %v2149 = vunpack.c.h.s8.bf16 %v2057
    %v2150 = vunpack.c.h.s8.bf16 %v2058
    %v2151 = vunpack.c.l.s8.bf16 %v2059
    %v2152 = vunpack.c.l.s8.bf16 %v2060
    %v2153 = vunpack.c.l.s8.bf16 %v2061
    %v2154 = vunpack.c.l.s8.bf16 %v2062
    %v2155 = vunpack.c.h.s8.bf16 %v2059
    %v2156 = vunpack.c.h.s8.bf16 %v2060
    %v2157 = vunpack.c.h.s8.bf16 %v2061
    %v2158 = vunpack.c.h.s8.bf16 %v2062
    %v2159 = vunpack.c.l.s8.bf16 %v2063
    %v2160 = vunpack.c.l.s8.bf16 %v2064
    %v2161 = vunpack.c.l.s8.bf16 %v2065
    %v2162 = vunpack.c.l.s8.bf16 %v2066
    %v2163 = vunpack.c.h.s8.bf16 %v2063
    %v2164 = vunpack.c.h.s8.bf16 %v2064
    %v2165 = vunpack.c.h.s8.bf16 %v2065
    %v2166 = vunpack.c.h.s8.bf16 %v2066
    %v2167 = vunpack.c.l.s8.bf16 %v2067
    %v2168 = vunpack.c.l.s8.bf16 %v2068
    %v2169 = vunpack.c.l.s8.bf16 %v2069
    %v2170 = vunpack.c.l.s8.bf16 %v2070
    %v2171 = vunpack.c.h.s8.bf16 %v2067
    %v2172 = vunpack.c.h.s8.bf16 %v2068
    %v2173 = vunpack.c.h.s8.bf16 %v2069
    %v2174 = vunpack.c.h.s8.bf16 %v2070
    %v2175 = vunpack.c.l.s8.bf16 %v2071
    %v2176 = vunpack.c.l.s8.bf16 %v2072
    %v2177 = vunpack.c.l.s8.bf16 %v2073
    %v2178 = vunpack.c.l.s8.bf16 %v2074
    %v2179 = vunpack.c.h.s8.bf16 %v2071
    %v2180 = vunpack.c.h.s8.bf16 %v2072
    %v2181 = vunpack.c.h.s8.bf16 %v2073
    %v2182 = vunpack.c.h.s8.bf16 %v2074
    %v2183 = vunpack.c.l.s8.bf16 %v2075
    %v2184 = vunpack.c.l.s8.bf16 %v2076
    %v2185 = vunpack.c.l.s8.bf16 %v2077
    %v2186 = vunpack.c.l.s8.bf16 %v2078
    %v2187 = vunpack.c.h.s8.bf16 %v2075
    %v2188 = vunpack.c.h.s8.bf16 %v2076
    %v2189 = vunpack.c.h.s8.bf16 %v2077
    %v2190 = vunpack.c.h.s8.bf16 %v2078
    %v2191 = vunpack.c.l.s8.bf16 %v2079
    %v2192 = vunpack.c.l.s8.bf16 %v2080
    %v2193 = vunpack.c.l.s8.bf16 %v2081
    %v2194 = vunpack.c.l.s8.bf16 %v2082
    %v2195 = vunpack.c.h.s8.bf16 %v2079
    %v2196 = vunpack.c.h.s8.bf16 %v2080
    %v2197 = vunpack.c.h.s8.bf16 %v2081
    %v2198 = vunpack.c.h.s8.bf16 %v2082
    %v2199 = vunpack.c.l.s8.bf16 %v2083
    %v2200 = vunpack.c.l.s8.bf16 %v2084
    %v2201 = vunpack.c.l.s8.bf16 %v2085
    %v2202 = vunpack.c.l.s8.bf16 %v2086
    %v2203 = vunpack.c.h.s8.bf16 %v2083
    %v2204 = vunpack.c.h.s8.bf16 %v2084
    %v2205 = vunpack.c.h.s8.bf16 %v2085
    %v2206 = vunpack.c.h.s8.bf16 %v2086
    %v2207 = vunpack.c.l.s8.bf16 %v2087
    %v2208 = vunpack.c.l.s8.bf16 %v2088
    %v2209 = vunpack.c.l.s8.bf16 %v2089
    %v2210 = vunpack.c.l.s8.bf16 %v2090
    %v2211 = vunpack.c.h.s8.bf16 %v2087
    %v2212 = vunpack.c.h.s8.bf16 %v2088
    %v2213 = vunpack.c.h.s8.bf16 %v2089
    %v2214 = vunpack.c.h.s8.bf16 %v2090
    %v2215 = vunpack.c.l.s8.bf16 %v2091
    %v2216 = vunpack.c.l.s8.bf16 %v2092
    %v2217 = vunpack.c.l.s8.bf16 %v2093
    %v2218 = vunpack.c.l.s8.bf16 %v2094
    %v2219 = vunpack.c.h.s8.bf16 %v2091
    %v2220 = vunpack.c.h.s8.bf16 %v2092
    %v2221 = vunpack.c.h.s8.bf16 %v2093
    %v2222 = vunpack.c.h.s8.bf16 %v2094
    %v2223 = vunpack.c.l.s8.bf16 %v2095
    %v2224 = vunpack.c.l.s8.bf16 %v2096
    %v2225 = vunpack.c.l.s8.bf16 %v2097
    %v2226 = vunpack.c.l.s8.bf16 %v2098
    %v2227 = vunpack.c.h.s8.bf16 %v2095
    %v2228 = vunpack.c.h.s8.bf16 %v2096
    %v2229 = vunpack.c.h.s8.bf16 %v2097
    %v2230 = vunpack.c.h.s8.bf16 %v2098
    %v2231 = vpack.c.bf16 %v2031, %v2031
    %v2232 = vpack.c.bf16 %v2032, %v2032
    %v2233 = vpack.c.bf16 %v2033, %v2033
    %v2234 = vpack.c.bf16 %v2034, %v2034
    %2235 = vmatprep.subr.bf16.mxu0 %v2104
    %2236 = vmatpush1.bf16.msra.mxu0 %v2103
    %2237 = vmatprep.subr.bf16.mxu0 %v2108
    %2238 = vmatpush1.bf16.msra.mxu0 %v2107
    %2239 = vmatprep.subr.bf16.mxu0 %v2112
    %2240 = vmatpush1.bf16.msra.mxu0 %v2111
    %2241 = vmatprep.subr.bf16.mxu0 %v2116
    %2242 = vmatpush1.bf16.msra.mxu0 %v2115
    %2243 = vmatprep.subr.bf16.mxu0 %v2120
    %2244 = vmatpush1.bf16.msra.mxu0 %v2119
    %2245 = vmatprep.subr.bf16.mxu0 %v2124
    %2246 = vmatpush1.bf16.msra.mxu0 %v2123
    %2247 = vmatprep.subr.bf16.mxu0 %v2128
    %2248 = vmatpush1.bf16.msra.mxu0 %v2127
    %2249 = vmatprep.subr.bf16.mxu0 %v2132
    %2250 = vmatpush1.bf16.msra.mxu0 %v2131
    %2251 = vmatprep.subr.bf16.mxu0 %v2136
    %2252 = vmatpush1.bf16.msra.mxu0 %v2135
    %2253 = vmatprep.subr.bf16.mxu0 %v2140
    %2254 = vmatpush1.bf16.msra.mxu0 %v2139
    %2255 = vmatprep.subr.bf16.mxu0 %v2144
    %2256 = vmatpush1.bf16.msra.mxu0 %v2143
    %2257 = vmatprep.subr.bf16.mxu0 %v2148
    %2258 = vmatpush1.bf16.msra.mxu0 %v2147
    %2259 = vmatprep.subr.bf16.mxu0 %v2152
    %2260 = vmatpush1.bf16.msra.mxu0 %v2151
    %2261 = vmatprep.subr.bf16.mxu0 %v2156
    %2262 = vmatpush1.bf16.msra.mxu0 %v2155
    %2263 = vmatprep.subr.bf16.mxu0 %v2160
    %2264 = vmatpush1.bf16.msra.mxu0 %v2159
    %2265 = vmatprep.subr.bf16.mxu0 %v2164
    %2266 = vmatpush1.bf16.msra.mxu0 %v2163
    %2267 = vmatprep.mubr.bf16.mxu0 %v2232
    %2268 = vmatmul.mubr.bf16.gmra.mrb[0].mxu0 %v2231
    %v2269 = vpop.f32.mrb[0].mxu0
    %v2270 = vadd.f32 0.0, %v2269
    %v2271 = vpop.f32.mrb[0].mxu0
    %v2272 = vadd.f32 0.0, %v2271
    %v2273 = vpop.f32.mrb[0].mxu0
    %v2274 = vpop.f32.mrb[0].mxu0
    %2275 = vdwg.mxu0
    %2276 = vmatprep.subr.bf16.mxu0 %v2168
    %2277 = vmatpush1.bf16.msra.mxu0 %v2167
    %2278 = vmatprep.subr.bf16.mxu0 %v2172
    %2279 = vmatpush1.bf16.msra.mxu0 %v2171
    %2280 = vmatprep.subr.bf16.mxu0 %v2176
    %2281 = vmatpush1.bf16.msra.mxu0 %v2175
    %2282 = vmatprep.subr.bf16.mxu0 %v2180
    %2283 = vmatpush1.bf16.msra.mxu0 %v2179
    %2284 = vmatprep.subr.bf16.mxu0 %v2184
    %2285 = vmatpush1.bf16.msra.mxu0 %v2183
    %2286 = vmatprep.subr.bf16.mxu0 %v2188
    %2287 = vmatpush1.bf16.msra.mxu0 %v2187
    %2288 = vmatprep.subr.bf16.mxu0 %v2192
    %2289 = vmatpush1.bf16.msra.mxu0 %v2191
    %2290 = vmatprep.subr.bf16.mxu0 %v2196
    %2291 = vmatpush1.bf16.msra.mxu0 %v2195
    %2292 = vmatprep.subr.bf16.mxu0 %v2200
    %2293 = vmatpush1.bf16.msra.mxu0 %v2199
    %2294 = vmatprep.subr.bf16.mxu0 %v2204
    %2295 = vmatpush1.bf16.msra.mxu0 %v2203
    %2296 = vmatprep.subr.bf16.mxu0 %v2208
    %2297 = vmatpush1.bf16.msra.mxu0 %v2207
    %2298 = vmatprep.subr.bf16.mxu0 %v2212
    %2299 = vmatpush1.bf16.msra.mxu0 %v2211
    %2300 = vmatprep.subr.bf16.mxu0 %v2216
    %2301 = vmatpush1.bf16.msra.mxu0 %v2215
    %2302 = vmatprep.subr.bf16.mxu0 %v2220
    %2303 = vmatpush1.bf16.msra.mxu0 %v2219
    %2304 = vmatprep.subr.bf16.mxu0 %v2224
    %2305 = vmatpush1.bf16.msra.mxu0 %v2223
    %2306 = vmatprep.subr.bf16.mxu0 %v2228
    %2307 = vmatpush1.bf16.msra.mxu0 %v2227
    %2308 = vmatprep.mubr.bf16.mxu0 %v2234
    %2309 = vmatmul.mubr.bf16.gmra.mrb[0].mxu0 %v2233
    %v2310 = vpop.f32.mrb[0].mxu0
    %v2311 = vadd.f32 %v2270, %v2310
    %v2312 = vpop.f32.mrb[0].mxu0
    %v2313 = vadd.f32 %v2272, %v2312
    %v2314 = vpop.f32.mrb[0].mxu0
    %v2315 = vpop.f32.mrb[0].mxu0
    %2316 = vdwg.mxu0
    %2317 = vmatprep.subr.bf16.mxu0 %v2106
    %2318 = vmatpush1.bf16.msra.mxu0 %v2105
    %2319 = vmatprep.subr.bf16.mxu0 %v2110
    %2320 = vmatpush1.bf16.msra.mxu0 %v2109
    %2321 = vmatprep.subr.bf16.mxu0 %v2114
    %2322 = vmatpush1.bf16.msra.mxu0 %v2113
    %2323 = vmatprep.subr.bf16.mxu0 %v2118
    %2324 = vmatpush1.bf16.msra.mxu0 %v2117
    %2325 = vmatprep.subr.bf16.mxu0 %v2122
    %2326 = vmatpush1.bf16.msra.mxu0 %v2121
    %2327 = vmatprep.subr.bf16.mxu0 %v2126
    %2328 = vmatpush1.bf16.msra.mxu0 %v2125
    %2329 = vmatprep.subr.bf16.mxu0 %v2130
    %2330 = vmatpush1.bf16.msra.mxu0 %v2129
    %2331 = vmatprep.subr.bf16.mxu0 %v2134
    %2332 = vmatpush1.bf16.msra.mxu0 %v2133
    %2333 = vmatprep.subr.bf16.mxu0 %v2138
    %2334 = vmatpush1.bf16.msra.mxu0 %v2137
    %2335 = vmatprep.subr.bf16.mxu0 %v2142
    %2336 = vmatpush1.bf16.msra.mxu0 %v2141
    %2337 = vmatprep.subr.bf16.mxu0 %v2146
    %2338 = vmatpush1.bf16.msra.mxu0 %v2145
    %2339 = vmatprep.subr.bf16.mxu0 %v2150
    %2340 = vmatpush1.bf16.msra.mxu0 %v2149
    %2341 = vmatprep.subr.bf16.mxu0 %v2154
    %2342 = vmatpush1.bf16.msra.mxu0 %v2153
    %2343 = vmatprep.subr.bf16.mxu0 %v2158
    %2344 = vmatpush1.bf16.msra.mxu0 %v2157
    %2345 = vmatprep.subr.bf16.mxu0 %v2162
    %2346 = vmatpush1.bf16.msra.mxu0 %v2161
    %2347 = vmatprep.subr.bf16.mxu0 %v2166
    %2348 = vmatpush1.bf16.msra.mxu0 %v2165
    %2349 = vmatprep.mubr.bf16.mxu0 %v2232
    %2350 = vmatmul.mubr.bf16.gmra.mrb[0].mxu0 %v2231
    %v2351 = vpop.f32.mrb[0].mxu0
    %v2352 = vadd.f32 0.0, %v2351
    %v2353 = vpop.f32.mrb[0].mxu0
    %v2354 = vadd.f32 0.0, %v2353
    %v2355 = vpop.f32.mrb[0].mxu0
    %v2356 = vpop.f32.mrb[0].mxu0
    %2357 = vdwg.mxu0
    %2358 = vmatprep.subr.bf16.mxu0 %v2170
    %2359 = vmatpush1.bf16.msra.mxu0 %v2169
    %2360 = vmatprep.subr.bf16.mxu0 %v2174
    %2361 = vmatpush1.bf16.msra.mxu0 %v2173
    %2362 = vmatprep.subr.bf16.mxu0 %v2178
    %2363 = vmatpush1.bf16.msra.mxu0 %v2177
    %2364 = vmatprep.subr.bf16.mxu0 %v2182
    %2365 = vmatpush1.bf16.msra.mxu0 %v2181
    %2366 = vmatprep.subr.bf16.mxu0 %v2186
    %2367 = vmatpush1.bf16.msra.mxu0 %v2185
    %2368 = vmatprep.subr.bf16.mxu0 %v2190
    %2369 = vmatpush1.bf16.msra.mxu0 %v2189
    %2370 = vmatprep.subr.bf16.mxu0 %v2194
    %2371 = vmatpush1.bf16.msra.mxu0 %v2193
    %2372 = vmatprep.subr.bf16.mxu0 %v2198
    %2373 = vmatpush1.bf16.msra.mxu0 %v2197
    %2374 = vmatprep.subr.bf16.mxu0 %v2202
    %2375 = vmatpush1.bf16.msra.mxu0 %v2201
    %2376 = vmatprep.subr.bf16.mxu0 %v2206
    %2377 = vmatpush1.bf16.msra.mxu0 %v2205
    %2378 = vmatprep.subr.bf16.mxu0 %v2210
    %2379 = vmatpush1.bf16.msra.mxu0 %v2209
    %2380 = vmatprep.subr.bf16.mxu0 %v2214
    %2381 = vmatpush1.bf16.msra.mxu0 %v2213
    %2382 = vmatprep.subr.bf16.mxu0 %v2218
    %2383 = vmatpush1.bf16.msra.mxu0 %v2217
    %2384 = vmatprep.subr.bf16.mxu0 %v2222
    %2385 = vmatpush1.bf16.msra.mxu0 %v2221
    %2386 = vmatprep.subr.bf16.mxu0 %v2226
    %2387 = vmatpush1.bf16.msra.mxu0 %v2225
    %2388 = vmatprep.subr.bf16.mxu0 %v2230
    %2389 = vmatpush1.bf16.msra.mxu0 %v2229
    %2390 = vmatprep.mubr.bf16.mxu0 %v2234
    %2391 = vmatmul.mubr.bf16.gmra.mrb[0].mxu0 %v2233
    %v2392 = vpop.f32.mrb[0].mxu0
    %v2393 = vadd.f32 %v2352, %v2392
    %v2394 = vpop.f32.mrb[0].mxu0
    %v2395 = vadd.f32 %v2354, %v2394
    %v2396 = vpop.f32.mrb[0].mxu0
    %v2397 = vpop.f32.mrb[0].mxu0
    %2398 = vdwg.mxu0
    %v2400 = vlaneseq
    %v2401 = vshrl.u32 %v2400, 7
    %v2402 = vsub.s32 0, %v2401
    %v2403 = vrot.slane %v2100, %v2402
    %v2404 = vlaneseq
    %v2405 = vshrl.u32 %v2404, 7
    %v2406 = vsub.s32 1, %v2405
    %v2407 = vrot.slane %v2100, %v2406
    %v2408 = vlaneseq
    %v2409 = vshrl.u32 %v2408, 7
    %v2410 = vsub.s32 2, %v2409
    %v2411 = vrot.slane %v2100, %v2410
    %v2412 = vlaneseq
    %v2413 = vshrl.u32 %v2412, 7
    %v2414 = vsub.s32 3, %v2413
    %v2415 = vrot.slane %v2100, %v2414
    %v2420 = vmul.f32 %v2311, %v2403
    %v2421 = vmul.f32 %v2313, %v2407
    %v2422 = vmul.f32 %v2393, %v2411
    %v2423 = vmul.f32 %v2395, %v2415
    %v2425 = vlaneseq
    %v2426 = vshrl.u32 %v2425, 7
    %v2427 = vsub.s32 0, %v2426
    %v2428 = vrot.slane %v2102, %v2427
    %v2429 = vlaneseq
    %v2430 = vshrl.u32 %v2429, 7
    %v2431 = vsub.s32 1, %v2430
    %v2432 = vrot.slane %v2102, %v2431
    %v2433 = vlaneseq
    %v2434 = vshrl.u32 %v2433, 7
    %v2435 = vsub.s32 2, %v2434
    %v2436 = vrot.slane %v2102, %v2435
    %v2437 = vlaneseq
    %v2438 = vshrl.u32 %v2437, 7
    %v2439 = vsub.s32 3, %v2438
    %v2440 = vrot.slane %v2102, %v2439
    %v2445 = vadd.f32 %v2420, %v2428
    %v2446 = vadd.f32 %v2421, %v2432
    %v2447 = vadd.f32 %v2422, %v2436
    %v2448 = vadd.f32 %v2423, %v2440
    %v2449 = vmax.f32 %v2445, 0.0
    %v2450 = vmax.f32 %v2446, 0.0
    %v2451 = vmax.f32 %v2447, 0.0
    %v2452 = vmax.f32 %v2448, 0.0
    %v2453 = vld [vmem:[#allocation12] sm:$0xff]
    %v2454 = vld [vmem:[#allocation12 + $0x8] sm:$0xff]
    %v2455 = vld [vmem:[#allocation12 + $0x10] sm:$0xff]
    %v2456 = vld [vmem:[#allocation12 + $0x18] sm:$0xff]
    %v2457 = vld [vmem:[#allocation12 + $0x20] sm:$0xff]
    %v2458 = vld [vmem:[#allocation12 + $0x28] sm:$0xff]
    %v2459 = vld [vmem:[#allocation12 + $0x30] sm:$0xff]
    %v2460 = vld [vmem:[#allocation12 + $0x38] sm:$0xff]
    %v2461 = vld [vmem:[#allocation12 + $0x40] sm:$0xff]
    %v2462 = vld [vmem:[#allocation12 + $0x48] sm:$0xff]
    %v2463 = vld [vmem:[#allocation12 + $0x50] sm:$0xff]
    %v2464 = vld [vmem:[#allocation12 + $0x58] sm:$0xff]
    %v2465 = vld [vmem:[#allocation12 + $0x60] sm:$0xff]
    %v2466 = vld [vmem:[#allocation12 + $0x68] sm:$0xff]
    %v2467 = vld [vmem:[#allocation12 + $0x70] sm:$0xff]
    %v2468 = vld [vmem:[#allocation12 + $0x78] sm:$0xff]
    %v2469 = vld [vmem:[#allocation12 + $0x80] sm:$0xff]
    %v2470 = vld [vmem:[#allocation12 + $0x88] sm:$0xff]
    %v2471 = vld [vmem:[#allocation12 + $0x90] sm:$0xff]
    %v2472 = vld [vmem:[#allocation12 + $0x98] sm:$0xff]
    %v2473 = vld [vmem:[#allocation12 + $0xa0] sm:$0xff]
    %v2474 = vld [vmem:[#allocation12 + $0xa8] sm:$0xff]
    %v2475 = vld [vmem:[#allocation12 + $0xb0] sm:$0xff]
    %v2476 = vld [vmem:[#allocation12 + $0xb8] sm:$0xff]
    %v2477 = vld [vmem:[#allocation12 + $0xc0] sm:$0xff]
    %v2478 = vld [vmem:[#allocation12 + $0xc8] sm:$0xff]
    %v2479 = vld [vmem:[#allocation12 + $0xd0] sm:$0xff]
    %v2480 = vld [vmem:[#allocation12 + $0xd8] sm:$0xff]
    %v2481 = vld [vmem:[#allocation12 + $0xe0] sm:$0xff]
    %v2482 = vld [vmem:[#allocation12 + $0xe8] sm:$0xff]
    %v2483 = vld [vmem:[#allocation12 + $0xf0] sm:$0xff]
    %v2484 = vld [vmem:[#allocation12 + $0xf8] sm:$0xff]
    %v2485 = vld [vmem:[#allocation12 + $0x100] sm:$0xff]
    %v2486 = vld [vmem:[#allocation12 + $0x108] sm:$0xff]
    %v2487 = vld [vmem:[#allocation12 + $0x110] sm:$0xff]
    %v2488 = vld [vmem:[#allocation12 + $0x118] sm:$0xff]
    %v2489 = vld [vmem:[#allocation12 + $0x120] sm:$0xff]
    %v2490 = vld [vmem:[#allocation12 + $0x128] sm:$0xff]
    %v2491 = vld [vmem:[#allocation12 + $0x130] sm:$0xff]
    %v2492 = vld [vmem:[#allocation12 + $0x138] sm:$0xff]
    %v2493 = vld [vmem:[#allocation12 + $0x140] sm:$0xff]
    %v2494 = vld [vmem:[#allocation12 + $0x148] sm:$0xff]
    %v2495 = vld [vmem:[#allocation12 + $0x150] sm:$0xff]
    %v2496 = vld [vmem:[#allocation12 + $0x158] sm:$0xff]
    %v2497 = vld [vmem:[#allocation12 + $0x160] sm:$0xff]
    %v2498 = vld [vmem:[#allocation12 + $0x168] sm:$0xff]
    %v2499 = vld [vmem:[#allocation12 + $0x170] sm:$0xff]
    %v2500 = vld [vmem:[#allocation12 + $0x178] sm:$0xff]
    %v2501 = vld [vmem:[#allocation12 + $0x180] sm:$0xff]
    %v2502 = vld [vmem:[#allocation12 + $0x188] sm:$0xff]
    %v2503 = vld [vmem:[#allocation12 + $0x190] sm:$0xff]
    %v2504 = vld [vmem:[#allocation12 + $0x198] sm:$0xff]
    %v2505 = vld [vmem:[#allocation12 + $0x1a0] sm:$0xff]
    %v2506 = vld [vmem:[#allocation12 + $0x1a8] sm:$0xff]
    %v2507 = vld [vmem:[#allocation12 + $0x1b0] sm:$0xff]
    %v2508 = vld [vmem:[#allocation12 + $0x1b8] sm:$0xff]
    %v2509 = vld [vmem:[#allocation12 + $0x1c0] sm:$0xff]
    %v2510 = vld [vmem:[#allocation12 + $0x1c8] sm:$0xff]
    %v2511 = vld [vmem:[#allocation12 + $0x1d0] sm:$0xff]
    %v2512 = vld [vmem:[#allocation12 + $0x1d8] sm:$0xff]
    %v2513 = vld [vmem:[#allocation12 + $0x1e0] sm:$0xff]
    %v2514 = vld [vmem:[#allocation12 + $0x1e8] sm:$0xff]
    %v2515 = vld [vmem:[#allocation12 + $0x1f0] sm:$0xff]
    %v2516 = vld [vmem:[#allocation12 + $0x1f8] sm:$0xff]
    %v2517 = vunpack.c.l.s8.bf16 %v2453
    %v2518 = vunpack.c.l.s8.bf16 %v2454
    %v2519 = vunpack.c.l.s8.bf16 %v2455
    %v2520 = vunpack.c.l.s8.bf16 %v2456
    %v2521 = vunpack.c.h.s8.bf16 %v2453
    %v2522 = vunpack.c.h.s8.bf16 %v2454
    %v2523 = vunpack.c.h.s8.bf16 %v2455
    %v2524 = vunpack.c.h.s8.bf16 %v2456
    %v2525 = vunpack.c.l.s8.bf16 %v2457
    %v2526 = vunpack.c.l.s8.bf16 %v2458
    %v2527 = vunpack.c.l.s8.bf16 %v2459
    %v2528 = vunpack.c.l.s8.bf16 %v2460
    %v2529 = vunpack.c.h.s8.bf16 %v2457
    %v2530 = vunpack.c.h.s8.bf16 %v2458
    %v2531 = vunpack.c.h.s8.bf16 %v2459
    %v2532 = vunpack.c.h.s8.bf16 %v2460
    %v2533 = vunpack.c.l.s8.bf16 %v2461
    %v2534 = vunpack.c.l.s8.bf16 %v2462
    %v2535 = vunpack.c.l.s8.bf16 %v2463
    %v2536 = vunpack.c.l.s8.bf16 %v2464
    %v2537 = vunpack.c.h.s8.bf16 %v2461
    %v2538 = vunpack.c.h.s8.bf16 %v2462
    %v2539 = vunpack.c.h.s8.bf16 %v2463
    %v2540 = vunpack.c.h.s8.bf16 %v2464
    %v2541 = vunpack.c.l.s8.bf16 %v2465
    %v2542 = vunpack.c.l.s8.bf16 %v2466
    %v2543 = vunpack.c.l.s8.bf16 %v2467
    %v2544 = vunpack.c.l.s8.bf16 %v2468
    %v2545 = vunpack.c.h.s8.bf16 %v2465
    %v2546 = vunpack.c.h.s8.bf16 %v2466
    %v2547 = vunpack.c.h.s8.bf16 %v2467
    %v2548 = vunpack.c.h.s8.bf16 %v2468
    %v2549 = vunpack.c.l.s8.bf16 %v2469
    %v2550 = vunpack.c.l.s8.bf16 %v2470
    %v2551 = vunpack.c.l.s8.bf16 %v2471
    %v2552 = vunpack.c.l.s8.bf16 %v2472
    %v2553 = vunpack.c.h.s8.bf16 %v2469
    %v2554 = vunpack.c.h.s8.bf16 %v2470
    %v2555 = vunpack.c.h.s8.bf16 %v2471
    %v2556 = vunpack.c.h.s8.bf16 %v2472
    %v2557 = vunpack.c.l.s8.bf16 %v2473
    %v2558 = vunpack.c.l.s8.bf16 %v2474
    %v2559 = vunpack.c.l.s8.bf16 %v2475
    %v2560 = vunpack.c.l.s8.bf16 %v2476
    %v2561 = vunpack.c.h.s8.bf16 %v2473
    %v2562 = vunpack.c.h.s8.bf16 %v2474
    %v2563 = vunpack.c.h.s8.bf16 %v2475
    %v2564 = vunpack.c.h.s8.bf16 %v2476
    %v2565 = vunpack.c.l.s8.bf16 %v2477
    %v2566 = vunpack.c.l.s8.bf16 %v2478
    %v2567 = vunpack.c.l.s8.bf16 %v2479
    %v2568 = vunpack.c.l.s8.bf16 %v2480
    %v2569 = vunpack.c.h.s8.bf16 %v2477
    %v2570 = vunpack.c.h.s8.bf16 %v2478
    %v2571 = vunpack.c.h.s8.bf16 %v2479
    %v2572 = vunpack.c.h.s8.bf16 %v2480
    %v2573 = vunpack.c.l.s8.bf16 %v2481
    %v2574 = vunpack.c.l.s8.bf16 %v2482
    %v2575 = vunpack.c.l.s8.bf16 %v2483
    %v2576 = vunpack.c.l.s8.bf16 %v2484
    %v2577 = vunpack.c.h.s8.bf16 %v2481
    %v2578 = vunpack.c.h.s8.bf16 %v2482
    %v2579 = vunpack.c.h.s8.bf16 %v2483
    %v2580 = vunpack.c.h.s8.bf16 %v2484
    %v2581 = vunpack.c.l.s8.bf16 %v2485
    %v2582 = vunpack.c.l.s8.bf16 %v2486
    %v2583 = vunpack.c.l.s8.bf16 %v2487
    %v2584 = vunpack.c.l.s8.bf16 %v2488
    %v2585 = vunpack.c.h.s8.bf16 %v2485
    %v2586 = vunpack.c.h.s8.bf16 %v2486
    %v2587 = vunpack.c.h.s8.bf16 %v2487
    %v2588 = vunpack.c.h.s8.bf16 %v2488
    %v2589 = vunpack.c.l.s8.bf16 %v2489
    %v2590 = vunpack.c.l.s8.bf16 %v2490
    %v2591 = vunpack.c.l.s8.bf16 %v2491
    %v2592 = vunpack.c.l.s8.bf16 %v2492
    %v2593 = vunpack.c.h.s8.bf16 %v2489
    %v2594 = vunpack.c.h.s8.bf16 %v2490
    %v2595 = vunpack.c.h.s8.bf16 %v2491
    %v2596 = vunpack.c.h.s8.bf16 %v2492
    %v2597 = vunpack.c.l.s8.bf16 %v2493
    %v2598 = vunpack.c.l.s8.bf16 %v2494
    %v2599 = vunpack.c.l.s8.bf16 %v2495
    %v2600 = vunpack.c.l.s8.bf16 %v2496
    %v2601 = vunpack.c.h.s8.bf16 %v2493
    %v2602 = vunpack.c.h.s8.bf16 %v2494
    %v2603 = vunpack.c.h.s8.bf16 %v2495
    %v2604 = vunpack.c.h.s8.bf16 %v2496
    %v2605 = vunpack.c.l.s8.bf16 %v2497
    %v2606 = vunpack.c.l.s8.bf16 %v2498
    %v2607 = vunpack.c.l.s8.bf16 %v2499
    %v2608 = vunpack.c.l.s8.bf16 %v2500
    %v2609 = vunpack.c.h.s8.bf16 %v2497
    %v2610 = vunpack.c.h.s8.bf16 %v2498
    %v2611 = vunpack.c.h.s8.bf16 %v2499
    %v2612 = vunpack.c.h.s8.bf16 %v2500
    %v2613 = vunpack.c.l.s8.bf16 %v2501
    %v2614 = vunpack.c.l.s8.bf16 %v2502
    %v2615 = vunpack.c.l.s8.bf16 %v2503
    %v2616 = vunpack.c.l.s8.bf16 %v2504
    %v2617 = vunpack.c.h.s8.bf16 %v2501
    %v2618 = vunpack.c.h.s8.bf16 %v2502
    %v2619 = vunpack.c.h.s8.bf16 %v2503
    %v2620 = vunpack.c.h.s8.bf16 %v2504
    %v2621 = vunpack.c.l.s8.bf16 %v2505
    %v2622 = vunpack.c.l.s8.bf16 %v2506
    %v2623 = vunpack.c.l.s8.bf16 %v2507
    %v2624 = vunpack.c.l.s8.bf16 %v2508
    %v2625 = vunpack.c.h.s8.bf16 %v2505
    %v2626 = vunpack.c.h.s8.bf16 %v2506
    %v2627 = vunpack.c.h.s8.bf16 %v2507
    %v2628 = vunpack.c.h.s8.bf16 %v2508
    %v2629 = vunpack.c.l.s8.bf16 %v2509
    %v2630 = vunpack.c.l.s8.bf16 %v2510
    %v2631 = vunpack.c.l.s8.bf16 %v2511
    %v2632 = vunpack.c.l.s8.bf16 %v2512
    %v2633 = vunpack.c.h.s8.bf16 %v2509
    %v2634 = vunpack.c.h.s8.bf16 %v2510
    %v2635 = vunpack.c.h.s8.bf16 %v2511
    %v2636 = vunpack.c.h.s8.bf16 %v2512
    %v2637 = vunpack.c.l.s8.bf16 %v2513
    %v2638 = vunpack.c.l.s8.bf16 %v2514
    %v2639 = vunpack.c.l.s8.bf16 %v2515
    %v2640 = vunpack.c.l.s8.bf16 %v2516
    %v2641 = vunpack.c.h.s8.bf16 %v2513
    %v2642 = vunpack.c.h.s8.bf16 %v2514
    %v2643 = vunpack.c.h.s8.bf16 %v2515
    %v2644 = vunpack.c.h.s8.bf16 %v2516
    %v2645 = vld [vmem:[#allocation12 + $0x200] sm:$0xff]
    %v2646 = vld [vmem:[#allocation12 + $0x208] sm:$0xff]
    %v2647 = vld [vmem:[#allocation12 + $0x210] sm:$0xff]
    %v2648 = vld [vmem:[#allocation12 + $0x218] sm:$0xff]
    %v2649 = vld [vmem:[#allocation12 + $0x220] sm:$0xff]
    %v2650 = vld [vmem:[#allocation12 + $0x228] sm:$0xff]
    %v2651 = vld [vmem:[#allocation12 + $0x230] sm:$0xff]
    %v2652 = vld [vmem:[#allocation12 + $0x238] sm:$0xff]
    %v2653 = vld [vmem:[#allocation12 + $0x240] sm:$0xff]
    %v2654 = vld [vmem:[#allocation12 + $0x248] sm:$0xff]
    %v2655 = vld [vmem:[#allocation12 + $0x250] sm:$0xff]
    %v2656 = vld [vmem:[#allocation12 + $0x258] sm:$0xff]
    %v2657 = vld [vmem:[#allocation12 + $0x260] sm:$0xff]
    %v2658 = vld [vmem:[#allocation12 + $0x268] sm:$0xff]
    %v2659 = vld [vmem:[#allocation12 + $0x270] sm:$0xff]
    %v2660 = vld [vmem:[#allocation12 + $0x278] sm:$0xff]
    %v2661 = vld [vmem:[#allocation12 + $0x280] sm:$0xff]
    %v2662 = vld [vmem:[#allocation12 + $0x288] sm:$0xff]
    %v2663 = vld [vmem:[#allocation12 + $0x290] sm:$0xff]
    %v2664 = vld [vmem:[#allocation12 + $0x298] sm:$0xff]
    %v2665 = vld [vmem:[#allocation12 + $0x2a0] sm:$0xff]
    %v2666 = vld [vmem:[#allocation12 + $0x2a8] sm:$0xff]
    %v2667 = vld [vmem:[#allocation12 + $0x2b0] sm:$0xff]
    %v2668 = vld [vmem:[#allocation12 + $0x2b8] sm:$0xff]
    %v2669 = vld [vmem:[#allocation12 + $0x2c0] sm:$0xff]
    %v2670 = vld [vmem:[#allocation12 + $0x2c8] sm:$0xff]
    %v2671 = vld [vmem:[#allocation12 + $0x2d0] sm:$0xff]
    %v2672 = vld [vmem:[#allocation12 + $0x2d8] sm:$0xff]
    %v2673 = vld [vmem:[#allocation12 + $0x2e0] sm:$0xff]
    %v2674 = vld [vmem:[#allocation12 + $0x2e8] sm:$0xff]
    %v2675 = vld [vmem:[#allocation12 + $0x2f0] sm:$0xff]
    %v2676 = vld [vmem:[#allocation12 + $0x2f8] sm:$0xff]
    %v2677 = vld [vmem:[#allocation12 + $0x300] sm:$0xff]
    %v2678 = vld [vmem:[#allocation12 + $0x308] sm:$0xff]
    %v2679 = vld [vmem:[#allocation12 + $0x310] sm:$0xff]
    %v2680 = vld [vmem:[#allocation12 + $0x318] sm:$0xff]
    %v2681 = vld [vmem:[#allocation12 + $0x320] sm:$0xff]
    %v2682 = vld [vmem:[#allocation12 + $0x328] sm:$0xff]
    %v2683 = vld [vmem:[#allocation12 + $0x330] sm:$0xff]
    %v2684 = vld [vmem:[#allocation12 + $0x338] sm:$0xff]
    %v2685 = vld [vmem:[#allocation12 + $0x340] sm:$0xff]
    %v2686 = vld [vmem:[#allocation12 + $0x348] sm:$0xff]
    %v2687 = vld [vmem:[#allocation12 + $0x350] sm:$0xff]
    %v2688 = vld [vmem:[#allocation12 + $0x358] sm:$0xff]
    %v2689 = vld [vmem:[#allocation12 + $0x360] sm:$0xff]
    %v2690 = vld [vmem:[#allocation12 + $0x368] sm:$0xff]
    %v2691 = vld [vmem:[#allocation12 + $0x370] sm:$0xff]
    %v2692 = vld [vmem:[#allocation12 + $0x378] sm:$0xff]
    %v2693 = vld [vmem:[#allocation12 + $0x380] sm:$0xff]
    %v2694 = vld [vmem:[#allocation12 + $0x388] sm:$0xff]
    %v2695 = vld [vmem:[#allocation12 + $0x390] sm:$0xff]
    %v2696 = vld [vmem:[#allocation12 + $0x398] sm:$0xff]
    %v2697 = vld [vmem:[#allocation12 + $0x3a0] sm:$0xff]
    %v2698 = vld [vmem:[#allocation12 + $0x3a8] sm:$0xff]
    %v2699 = vld [vmem:[#allocation12 + $0x3b0] sm:$0xff]
    %v2700 = vld [vmem:[#allocation12 + $0x3b8] sm:$0xff]
    %v2701 = vld [vmem:[#allocation12 + $0x3c0] sm:$0xff]
    %v2702 = vld [vmem:[#allocation12 + $0x3c8] sm:$0xff]
    %v2703 = vld [vmem:[#allocation12 + $0x3d0] sm:$0xff]
    %v2704 = vld [vmem:[#allocation12 + $0x3d8] sm:$0xff]
    %v2705 = vld [vmem:[#allocation12 + $0x3e0] sm:$0xff]
    %v2706 = vld [vmem:[#allocation12 + $0x3e8] sm:$0xff]
    %v2707 = vld [vmem:[#allocation12 + $0x3f0] sm:$0xff]
    %v2708 = vld [vmem:[#allocation12 + $0x3f8] sm:$0xff]
    %v2709 = vunpack.c.l.s8.bf16 %v2645
    %v2710 = vunpack.c.l.s8.bf16 %v2646
    %v2711 = vunpack.c.l.s8.bf16 %v2647
    %v2712 = vunpack.c.l.s8.bf16 %v2648
    %v2713 = vunpack.c.h.s8.bf16 %v2645
    %v2714 = vunpack.c.h.s8.bf16 %v2646
    %v2715 = vunpack.c.h.s8.bf16 %v2647
    %v2716 = vunpack.c.h.s8.bf16 %v2648
    %v2717 = vunpack.c.l.s8.bf16 %v2649
    %v2718 = vunpack.c.l.s8.bf16 %v2650
    %v2719 = vunpack.c.l.s8.bf16 %v2651
    %v2720 = vunpack.c.l.s8.bf16 %v2652
    %v2721 = vunpack.c.h.s8.bf16 %v2649
    %v2722 = vunpack.c.h.s8.bf16 %v2650
    %v2723 = vunpack.c.h.s8.bf16 %v2651
    %v2724 = vunpack.c.h.s8.bf16 %v2652
    %v2725 = vunpack.c.l.s8.bf16 %v2653
    %v2726 = vunpack.c.l.s8.bf16 %v2654
    %v2727 = vunpack.c.l.s8.bf16 %v2655
    %v2728 = vunpack.c.l.s8.bf16 %v2656
    %v2729 = vunpack.c.h.s8.bf16 %v2653
    %v2730 = vunpack.c.h.s8.bf16 %v2654
    %v2731 = vunpack.c.h.s8.bf16 %v2655
    %v2732 = vunpack.c.h.s8.bf16 %v2656
    %v2733 = vunpack.c.l.s8.bf16 %v2657
    %v2734 = vunpack.c.l.s8.bf16 %v2658
    %v2735 = vunpack.c.l.s8.bf16 %v2659
    %v2736 = vunpack.c.l.s8.bf16 %v2660
    %v2737 = vunpack.c.h.s8.bf16 %v2657
    %v2738 = vunpack.c.h.s8.bf16 %v2658
    %v2739 = vunpack.c.h.s8.bf16 %v2659
    %v2740 = vunpack.c.h.s8.bf16 %v2660
    %v2741 = vunpack.c.l.s8.bf16 %v2661
    %v2742 = vunpack.c.l.s8.bf16 %v2662
    %v2743 = vunpack.c.l.s8.bf16 %v2663
    %v2744 = vunpack.c.l.s8.bf16 %v2664
    %v2745 = vunpack.c.h.s8.bf16 %v2661
    %v2746 = vunpack.c.h.s8.bf16 %v2662
    %v2747 = vunpack.c.h.s8.bf16 %v2663
    %v2748 = vunpack.c.h.s8.bf16 %v2664
    %v2749 = vunpack.c.l.s8.bf16 %v2665
    %v2750 = vunpack.c.l.s8.bf16 %v2666
    %v2751 = vunpack.c.l.s8.bf16 %v2667
    %v2752 = vunpack.c.l.s8.bf16 %v2668
    %v2753 = vunpack.c.h.s8.bf16 %v2665
    %v2754 = vunpack.c.h.s8.bf16 %v2666
    %v2755 = vunpack.c.h.s8.bf16 %v2667
    %v2756 = vunpack.c.h.s8.bf16 %v2668
    %v2757 = vunpack.c.l.s8.bf16 %v2669
    %v2758 = vunpack.c.l.s8.bf16 %v2670
    %v2759 = vunpack.c.l.s8.bf16 %v2671
    %v2760 = vunpack.c.l.s8.bf16 %v2672
    %v2761 = vunpack.c.h.s8.bf16 %v2669
    %v2762 = vunpack.c.h.s8.bf16 %v2670
    %v2763 = vunpack.c.h.s8.bf16 %v2671
    %v2764 = vunpack.c.h.s8.bf16 %v2672
    %v2765 = vunpack.c.l.s8.bf16 %v2673
    %v2766 = vunpack.c.l.s8.bf16 %v2674
    %v2767 = vunpack.c.l.s8.bf16 %v2675
    %v2768 = vunpack.c.l.s8.bf16 %v2676
    %v2769 = vunpack.c.h.s8.bf16 %v2673
    %v2770 = vunpack.c.h.s8.bf16 %v2674
    %v2771 = vunpack.c.h.s8.bf16 %v2675
    %v2772 = vunpack.c.h.s8.bf16 %v2676
    %v2773 = vunpack.c.l.s8.bf16 %v2677
    %v2774 = vunpack.c.l.s8.bf16 %v2678
    %v2775 = vunpack.c.l.s8.bf16 %v2679
    %v2776 = vunpack.c.l.s8.bf16 %v2680
    %v2777 = vunpack.c.h.s8.bf16 %v2677
    %v2778 = vunpack.c.h.s8.bf16 %v2678
    %v2779 = vunpack.c.h.s8.bf16 %v2679
    %v2780 = vunpack.c.h.s8.bf16 %v2680
    %v2781 = vunpack.c.l.s8.bf16 %v2681
    %v2782 = vunpack.c.l.s8.bf16 %v2682
    %v2783 = vunpack.c.l.s8.bf16 %v2683
    %v2784 = vunpack.c.l.s8.bf16 %v2684
    %v2785 = vunpack.c.h.s8.bf16 %v2681
    %v2786 = vunpack.c.h.s8.bf16 %v2682
    %v2787 = vunpack.c.h.s8.bf16 %v2683
    %v2788 = vunpack.c.h.s8.bf16 %v2684
    %v2789 = vunpack.c.l.s8.bf16 %v2685
    %v2790 = vunpack.c.l.s8.bf16 %v2686
    %v2791 = vunpack.c.l.s8.bf16 %v2687
    %v2792 = vunpack.c.l.s8.bf16 %v2688
    %v2793 = vunpack.c.h.s8.bf16 %v2685
    %v2794 = vunpack.c.h.s8.bf16 %v2686
    %v2795 = vunpack.c.h.s8.bf16 %v2687
    %v2796 = vunpack.c.h.s8.bf16 %v2688
    %v2797 = vunpack.c.l.s8.bf16 %v2689
    %v2798 = vunpack.c.l.s8.bf16 %v2690
    %v2799 = vunpack.c.l.s8.bf16 %v2691
    %v2800 = vunpack.c.l.s8.bf16 %v2692
    %v2801 = vunpack.c.h.s8.bf16 %v2689
    %v2802 = vunpack.c.h.s8.bf16 %v2690
    %v2803 = vunpack.c.h.s8.bf16 %v2691
    %v2804 = vunpack.c.h.s8.bf16 %v2692
    %v2805 = vunpack.c.l.s8.bf16 %v2693
    %v2806 = vunpack.c.l.s8.bf16 %v2694
    %v2807 = vunpack.c.l.s8.bf16 %v2695
    %v2808 = vunpack.c.l.s8.bf16 %v2696
    %v2809 = vunpack.c.h.s8.bf16 %v2693
    %v2810 = vunpack.c.h.s8.bf16 %v2694
    %v2811 = vunpack.c.h.s8.bf16 %v2695
    %v2812 = vunpack.c.h.s8.bf16 %v2696
    %v2813 = vunpack.c.l.s8.bf16 %v2697
    %v2814 = vunpack.c.l.s8.bf16 %v2698
    %v2815 = vunpack.c.l.s8.bf16 %v2699
    %v2816 = vunpack.c.l.s8.bf16 %v2700
    %v2817 = vunpack.c.h.s8.bf16 %v2697
    %v2818 = vunpack.c.h.s8.bf16 %v2698
    %v2819 = vunpack.c.h.s8.bf16 %v2699
    %v2820 = vunpack.c.h.s8.bf16 %v2700
    %v2821 = vunpack.c.l.s8.bf16 %v2701
    %v2822 = vunpack.c.l.s8.bf16 %v2702
    %v2823 = vunpack.c.l.s8.bf16 %v2703
    %v2824 = vunpack.c.l.s8.bf16 %v2704
    %v2825 = vunpack.c.h.s8.bf16 %v2701
    %v2826 = vunpack.c.h.s8.bf16 %v2702
    %v2827 = vunpack.c.h.s8.bf16 %v2703
    %v2828 = vunpack.c.h.s8.bf16 %v2704
    %v2829 = vunpack.c.l.s8.bf16 %v2705
    %v2830 = vunpack.c.l.s8.bf16 %v2706
    %v2831 = vunpack.c.l.s8.bf16 %v2707
    %v2832 = vunpack.c.l.s8.bf16 %v2708
    %v2833 = vunpack.c.h.s8.bf16 %v2705
    %v2834 = vunpack.c.h.s8.bf16 %v2706
    %v2835 = vunpack.c.h.s8.bf16 %v2707
    %v2836 = vunpack.c.h.s8.bf16 %v2708
    %v2837 = vpack.c.bf16 %v1191, %v1191
    %v2838 = vpack.c.bf16 %v1192, %v1192
    %v2839 = vpack.c.bf16 %v1193, %v1193
    %v2840 = vpack.c.bf16 %v1194, %v1194
    %v2841 = vpack.c.bf16 %v2449, %v2449
    %v2842 = vpack.c.bf16 %v2450, %v2450
    %v2843 = vpack.c.bf16 %v2451, %v2451
    %v2844 = vpack.c.bf16 %v2452, %v2452
    %2845 = vmatprep.subr.bf16.mxu0 %v2710
    %2846 = vmatpush1.bf16.msra.mxu0 %v2709
    %2847 = vmatprep.subr.bf16.mxu0 %v2714
    %2848 = vmatpush1.bf16.msra.mxu0 %v2713
    %2849 = vmatprep.subr.bf16.mxu0 %v2718
    %2850 = vmatpush1.bf16.msra.mxu0 %v2717
    %2851 = vmatprep.subr.bf16.mxu0 %v2722
    %2852 = vmatpush1.bf16.msra.mxu0 %v2721
    %2853 = vmatprep.subr.bf16.mxu0 %v2726
    %2854 = vmatpush1.bf16.msra.mxu0 %v2725
    %2855 = vmatprep.subr.bf16.mxu0 %v2730
    %2856 = vmatpush1.bf16.msra.mxu0 %v2729
    %2857 = vmatprep.subr.bf16.mxu0 %v2734
    %2858 = vmatpush1.bf16.msra.mxu0 %v2733
    %2859 = vmatprep.subr.bf16.mxu0 %v2738
    %2860 = vmatpush1.bf16.msra.mxu0 %v2737
    %2861 = vmatprep.subr.bf16.mxu0 %v2742
    %2862 = vmatpush1.bf16.msra.mxu0 %v2741
    %2863 = vmatprep.subr.bf16.mxu0 %v2746
    %2864 = vmatpush1.bf16.msra.mxu0 %v2745
    %2865 = vmatprep.subr.bf16.mxu0 %v2750
    %2866 = vmatpush1.bf16.msra.mxu0 %v2749
    %2867 = vmatprep.subr.bf16.mxu0 %v2754
    %2868 = vmatpush1.bf16.msra.mxu0 %v2753
    %2869 = vmatprep.subr.bf16.mxu0 %v2758
    %2870 = vmatpush1.bf16.msra.mxu0 %v2757
    %2871 = vmatprep.subr.bf16.mxu0 %v2762
    %2872 = vmatpush1.bf16.msra.mxu0 %v2761
    %2873 = vmatprep.subr.bf16.mxu0 %v2766
    %2874 = vmatpush1.bf16.msra.mxu0 %v2765
    %2875 = vmatprep.subr.bf16.mxu0 %v2770
    %2876 = vmatpush1.bf16.msra.mxu0 %v2769
    %2877 = vmatprep.mubr.bf16.mxu0 %v2842
    %2878 = vmatmul.mubr.bf16.gmra.mrb[0].mxu0 %v2841
    %v2879 = vpop.f32.mrb[0].mxu0
    %v2880 = vadd.f32 0.0, %v2879
    %v2881 = vpop.f32.mrb[0].mxu0
    %v2882 = vadd.f32 0.0, %v2881
    %v2883 = vpop.f32.mrb[0].mxu0
    %v2884 = vpop.f32.mrb[0].mxu0
    %2885 = vdwg.mxu0
    %2886 = vmatprep.subr.bf16.mxu0 %v2774
    %2887 = vmatpush1.bf16.msra.mxu0 %v2773
    %2888 = vmatprep.subr.bf16.mxu0 %v2778
    %2889 = vmatpush1.bf16.msra.mxu0 %v2777
    %2890 = vmatprep.subr.bf16.mxu0 %v2782
    %2891 = vmatpush1.bf16.msra.mxu0 %v2781
    %2892 = vmatprep.subr.bf16.mxu0 %v2786
    %2893 = vmatpush1.bf16.msra.mxu0 %v2785
    %2894 = vmatprep.subr.bf16.mxu0 %v2790
    %2895 = vmatpush1.bf16.msra.mxu0 %v2789
    %2896 = vmatprep.subr.bf16.mxu0 %v2794
    %2897 = vmatpush1.bf16.msra.mxu0 %v2793
    %2898 = vmatprep.subr.bf16.mxu0 %v2798
    %2899 = vmatpush1.bf16.msra.mxu0 %v2797
    %2900 = vmatprep.subr.bf16.mxu0 %v2802
    %2901 = vmatpush1.bf16.msra.mxu0 %v2801
    %2902 = vmatprep.subr.bf16.mxu0 %v2806
    %2903 = vmatpush1.bf16.msra.mxu0 %v2805
    %2904 = vmatprep.subr.bf16.mxu0 %v2810
    %2905 = vmatpush1.bf16.msra.mxu0 %v2809
    %2906 = vmatprep.subr.bf16.mxu0 %v2814
    %2907 = vmatpush1.bf16.msra.mxu0 %v2813
    %2908 = vmatprep.subr.bf16.mxu0 %v2818
    %2909 = vmatpush1.bf16.msra.mxu0 %v2817
    %2910 = vmatprep.subr.bf16.mxu0 %v2822
    %2911 = vmatpush1.bf16.msra.mxu0 %v2821
    %2912 = vmatprep.subr.bf16.mxu0 %v2826
    %2913 = vmatpush1.bf16.msra.mxu0 %v2825
    %2914 = vmatprep.subr.bf16.mxu0 %v2830
    %2915 = vmatpush1.bf16.msra.mxu0 %v2829
    %2916 = vmatprep.subr.bf16.mxu0 %v2834
    %2917 = vmatpush1.bf16.msra.mxu0 %v2833
    %2918 = vmatprep.mubr.bf16.mxu0 %v2844
    %2919 = vmatmul.mubr.bf16.gmra.mrb[0].mxu0 %v2843
    %v2920 = vpop.f32.mrb[0].mxu0
    %v2921 = vadd.f32 %v2880, %v2920
    %v2922 = vpop.f32.mrb[0].mxu0
    %v2923 = vadd.f32 %v2882, %v2922
    %v2924 = vpop.f32.mrb[0].mxu0
    %v2925 = vpop.f32.mrb[0].mxu0
    %2926 = vdwg.mxu0
    %2927 = vmatprep.subr.bf16.mxu0 %v2712
    %2928 = vmatpush1.bf16.msra.mxu0 %v2711
    %2929 = vmatprep.subr.bf16.mxu0 %v2716
    %2930 = vmatpush1.bf16.msra.mxu0 %v2715
    %2931 = vmatprep.subr.bf16.mxu0 %v2720
    %2932 = vmatpush1.bf16.msra.mxu0 %v2719
    %2933 = vmatprep.subr.bf16.mxu0 %v2724
    %2934 = vmatpush1.bf16.msra.mxu0 %v2723
    %2935 = vmatprep.subr.bf16.mxu0 %v2728
    %2936 = vmatpush1.bf16.msra.mxu0 %v2727
    %2937 = vmatprep.subr.bf16.mxu0 %v2732
    %2938 = vmatpush1.bf16.msra.mxu0 %v2731
    %2939 = vmatprep.subr.bf16.mxu0 %v2736
    %2940 = vmatpush1.bf16.msra.mxu0 %v2735
    %2941 = vmatprep.subr.bf16.mxu0 %v2740
    %2942 = vmatpush1.bf16.msra.mxu0 %v2739
    %2943 = vmatprep.subr.bf16.mxu0 %v2744
    %2944 = vmatpush1.bf16.msra.mxu0 %v2743
    %2945 = vmatprep.subr.bf16.mxu0 %v2748
    %2946 = vmatpush1.bf16.msra.mxu0 %v2747
    %2947 = vmatprep.subr.bf16.mxu0 %v2752
    %2948 = vmatpush1.bf16.msra.mxu0 %v2751
    %2949 = vmatprep.subr.bf16.mxu0 %v2756
    %2950 = vmatpush1.bf16.msra.mxu0 %v2755
    %2951 = vmatprep.subr.bf16.mxu0 %v2760
    %2952 = vmatpush1.bf16.msra.mxu0 %v2759
    %2953 = vmatprep.subr.bf16.mxu0 %v2764
    %2954 = vmatpush1.bf16.msra.mxu0 %v2763
    %2955 = vmatprep.subr.bf16.mxu0 %v2768
    %2956 = vmatpush1.bf16.msra.mxu0 %v2767
    %2957 = vmatprep.subr.bf16.mxu0 %v2772
    %2958 = vmatpush1.bf16.msra.mxu0 %v2771
    %2959 = vmatprep.mubr.bf16.mxu0 %v2842
    %2960 = vmatmul.mubr.bf16.gmra.mrb[0].mxu0 %v2841
    %v2961 = vpop.f32.mrb[0].mxu0
    %v2962 = vadd.f32 0.0, %v2961
    %v2963 = vpop.f32.mrb[0].mxu0
    %v2964 = vadd.f32 0.0, %v2963
    %v2965 = vpop.f32.mrb[0].mxu0
    %v2966 = vpop.f32.mrb[0].mxu0
    %2967 = vdwg.mxu0
    %2968 = vmatprep.subr.bf16.mxu0 %v2776
    %2969 = vmatpush1.bf16.msra.mxu0 %v2775
    %2970 = vmatprep.subr.bf16.mxu0 %v2780
    %2971 = vmatpush1.bf16.msra.mxu0 %v2779
    %2972 = vmatprep.subr.bf16.mxu0 %v2784
    %2973 = vmatpush1.bf16.msra.mxu0 %v2783
    %2974 = vmatprep.subr.bf16.mxu0 %v2788
    %2975 = vmatpush1.bf16.msra.mxu0 %v2787
    %2976 = vmatprep.subr.bf16.mxu0 %v2792
    %2977 = vmatpush1.bf16.msra.mxu0 %v2791
    %2978 = vmatprep.subr.bf16.mxu0 %v2796
    %2979 = vmatpush1.bf16.msra.mxu0 %v2795
    %2980 = vmatprep.subr.bf16.mxu0 %v2800
    %2981 = vmatpush1.bf16.msra.mxu0 %v2799
    %2982 = vmatprep.subr.bf16.mxu0 %v2804
    %2983 = vmatpush1.bf16.msra.mxu0 %v2803
    %2984 = vmatprep.subr.bf16.mxu0 %v2808
    %2985 = vmatpush1.bf16.msra.mxu0 %v2807
    %2986 = vmatprep.subr.bf16.mxu0 %v2812
    %2987 = vmatpush1.bf16.msra.mxu0 %v2811
    %2988 = vmatprep.subr.bf16.mxu0 %v2816
    %2989 = vmatpush1.bf16.msra.mxu0 %v2815
    %2990 = vmatprep.subr.bf16.mxu0 %v2820
    %2991 = vmatpush1.bf16.msra.mxu0 %v2819
    %2992 = vmatprep.subr.bf16.mxu0 %v2824
    %2993 = vmatpush1.bf16.msra.mxu0 %v2823
    %2994 = vmatprep.subr.bf16.mxu0 %v2828
    %2995 = vmatpush1.bf16.msra.mxu0 %v2827
    %2996 = vmatprep.subr.bf16.mxu0 %v2832
    %2997 = vmatpush1.bf16.msra.mxu0 %v2831
    %2998 = vmatprep.subr.bf16.mxu0 %v2836
    %2999 = vmatpush1.bf16.msra.mxu0 %v2835
    %3000 = vmatprep.mubr.bf16.mxu0 %v2844
    %3001 = vmatmul.mubr.bf16.gmra.mrb[0].mxu0 %v2843
    %v3002 = vpop.f32.mrb[0].mxu0
    %v3003 = vadd.f32 %v2962, %v3002
    %v3004 = vpop.f32.mrb[0].mxu0
    %v3005 = vadd.f32 %v2964, %v3004
    %v3006 = vpop.f32.mrb[0].mxu0
    %v3007 = vpop.f32.mrb[0].mxu0
    %3008 = vdwg.mxu0
    %3009 = vmatprep.subr.bf16.mxu0 %v2518
    %3010 = vmatpush1.bf16.msra.mxu0 %v2517
    %3011 = vmatprep.subr.bf16.mxu0 %v2522
    %3012 = vmatpush1.bf16.msra.mxu0 %v2521
    %3013 = vmatprep.subr.bf16.mxu0 %v2526
    %3014 = vmatpush1.bf16.msra.mxu0 %v2525
    %3015 = vmatprep.subr.bf16.mxu0 %v2530
    %3016 = vmatpush1.bf16.msra.mxu0 %v2529
    %3017 = vmatprep.subr.bf16.mxu0 %v2534
    %3018 = vmatpush1.bf16.msra.mxu0 %v2533
    %3019 = vmatprep.subr.bf16.mxu0 %v2538
    %3020 = vmatpush1.bf16.msra.mxu0 %v2537
    %3021 = vmatprep.subr.bf16.mxu0 %v2542
    %3022 = vmatpush1.bf16.msra.mxu0 %v2541
    %3023 = vmatprep.subr.bf16.mxu0 %v2546
    %3024 = vmatpush1.bf16.msra.mxu0 %v2545
    %3025 = vmatprep.subr.bf16.mxu0 %v2550
    %3026 = vmatpush1.bf16.msra.mxu0 %v2549
    %3027 = vmatprep.subr.bf16.mxu0 %v2554
    %3028 = vmatpush1.bf16.msra.mxu0 %v2553
    %3029 = vmatprep.subr.bf16.mxu0 %v2558
    %3030 = vmatpush1.bf16.msra.mxu0 %v2557
    %3031 = vmatprep.subr.bf16.mxu0 %v2562
    %3032 = vmatpush1.bf16.msra.mxu0 %v2561
    %3033 = vmatprep.subr.bf16.mxu0 %v2566
    %3034 = vmatpush1.bf16.msra.mxu0 %v2565
    %3035 = vmatprep.subr.bf16.mxu0 %v2570
    %3036 = vmatpush1.bf16.msra.mxu0 %v2569
    %3037 = vmatprep.subr.bf16.mxu0 %v2574
    %3038 = vmatpush1.bf16.msra.mxu0 %v2573
    %3039 = vmatprep.subr.bf16.mxu0 %v2578
    %3040 = vmatpush1.bf16.msra.mxu0 %v2577
    %3041 = vmatprep.mubr.bf16.mxu0 %v2838
    %3042 = vmatmul.mubr.bf16.gmra.mrb[0].mxu0 %v2837
    %v3043 = vpop.f32.mrb[0].mxu0
    %v3044 = vadd.f32 %v2921, %v3043
    %v3045 = vpop.f32.mrb[0].mxu0
    %v3046 = vadd.f32 %v2923, %v3045
    %v3047 = vpop.f32.mrb[0].mxu0
    %v3048 = vpop.f32.mrb[0].mxu0
    %3049 = vdwg.mxu0
    %3050 = vmatprep.subr.bf16.mxu0 %v2582
    %3051 = vmatpush1.bf16.msra.mxu0 %v2581
    %3052 = vmatprep.subr.bf16.mxu0 %v2586
    %3053 = vmatpush1.bf16.msra.mxu0 %v2585
    %3054 = vmatprep.subr.bf16.mxu0 %v2590
    %3055 = vmatpush1.bf16.msra.mxu0 %v2589
    %3056 = vmatprep.subr.bf16.mxu0 %v2594
    %3057 = vmatpush1.bf16.msra.mxu0 %v2593
    %3058 = vmatprep.subr.bf16.mxu0 %v2598
    %3059 = vmatpush1.bf16.msra.mxu0 %v2597
    %3060 = vmatprep.subr.bf16.mxu0 %v2602
    %3061 = vmatpush1.bf16.msra.mxu0 %v2601
    %3062 = vmatprep.subr.bf16.mxu0 %v2606
    %3063 = vmatpush1.bf16.msra.mxu0 %v2605
    %3064 = vmatprep.subr.bf16.mxu0 %v2610
    %3065 = vmatpush1.bf16.msra.mxu0 %v2609
    %3066 = vmatprep.subr.bf16.mxu0 %v2614
    %3067 = vmatpush1.bf16.msra.mxu0 %v2613
    %3068 = vmatprep.subr.bf16.mxu0 %v2618
    %3069 = vmatpush1.bf16.msra.mxu0 %v2617
    %3070 = vmatprep.subr.bf16.mxu0 %v2622
    %3071 = vmatpush1.bf16.msra.mxu0 %v2621
    %3072 = vmatprep.subr.bf16.mxu0 %v2626
    %3073 = vmatpush1.bf16.msra.mxu0 %v2625
    %3074 = vmatprep.subr.bf16.mxu0 %v2630
    %3075 = vmatpush1.bf16.msra.mxu0 %v2629
    %3076 = vmatprep.subr.bf16.mxu0 %v2634
    %3077 = vmatpush1.bf16.msra.mxu0 %v2633
    %3078 = vmatprep.subr.bf16.mxu0 %v2638
    %3079 = vmatpush1.bf16.msra.mxu0 %v2637
    %3080 = vmatprep.subr.bf16.mxu0 %v2642
    %3081 = vmatpush1.bf16.msra.mxu0 %v2641
    %3082 = vmatprep.mubr.bf16.mxu0 %v2840
    %3083 = vmatmul.mubr.bf16.gmra.mrb[0].mxu0 %v2839
    %v3084 = vpop.f32.mrb[0].mxu0
    %v3085 = vadd.f32 %v3044, %v3084
    %v3086 = vpop.f32.mrb[0].mxu0
    %v3087 = vadd.f32 %v3046, %v3086
    %v3088 = vpop.f32.mrb[0].mxu0
    %v3089 = vpop.f32.mrb[0].mxu0
    %3090 = vdwg.mxu0
    %3091 = vmatprep.subr.bf16.mxu0 %v2520
    %3092 = vmatpush1.bf16.msra.mxu0 %v2519
    %3093 = vmatprep.subr.bf16.mxu0 %v2524
    %3094 = vmatpush1.bf16.msra.mxu0 %v2523
    %3095 = vmatprep.subr.bf16.mxu0 %v2528
    %3096 = vmatpush1.bf16.msra.mxu0 %v2527
    %3097 = vmatprep.subr.bf16.mxu0 %v2532
    %3098 = vmatpush1.bf16.msra.mxu0 %v2531
    %3099 = vmatprep.subr.bf16.mxu0 %v2536
    %3100 = vmatpush1.bf16.msra.mxu0 %v2535
    %3101 = vmatprep.subr.bf16.mxu0 %v2540
    %3102 = vmatpush1.bf16.msra.mxu0 %v2539
    %3103 = vmatprep.subr.bf16.mxu0 %v2544
    %3104 = vmatpush1.bf16.msra.mxu0 %v2543
    %3105 = vmatprep.subr.bf16.mxu0 %v2548
    %3106 = vmatpush1.bf16.msra.mxu0 %v2547
    %3107 = vmatprep.subr.bf16.mxu0 %v2552
    %3108 = vmatpush1.bf16.msra.mxu0 %v2551
    %3109 = vmatprep.subr.bf16.mxu0 %v2556
    %3110 = vmatpush1.bf16.msra.mxu0 %v2555
    %3111 = vmatprep.subr.bf16.mxu0 %v2560
    %3112 = vmatpush1.bf16.msra.mxu0 %v2559
    %3113 = vmatprep.subr.bf16.mxu0 %v2564
    %3114 = vmatpush1.bf16.msra.mxu0 %v2563
    %3115 = vmatprep.subr.bf16.mxu0 %v2568
    %3116 = vmatpush1.bf16.msra.mxu0 %v2567
    %3117 = vmatprep.subr.bf16.mxu0 %v2572
    %3118 = vmatpush1.bf16.msra.mxu0 %v2571
    %3119 = vmatprep.subr.bf16.mxu0 %v2576
    %3120 = vmatpush1.bf16.msra.mxu0 %v2575
    %3121 = vmatprep.subr.bf16.mxu0 %v2580
    %3122 = vmatpush1.bf16.msra.mxu0 %v2579
    %3123 = vmatprep.mubr.bf16.mxu0 %v2838
    %3124 = vmatmul.mubr.bf16.gmra.mrb[0].mxu0 %v2837
    %v3125 = vpop.f32.mrb[0].mxu0
    %v3126 = vadd.f32 %v3003, %v3125
    %v3127 = vpop.f32.mrb[0].mxu0
    %v3128 = vadd.f32 %v3005, %v3127
    %v3129 = vpop.f32.mrb[0].mxu0
    %v3130 = vpop.f32.mrb[0].mxu0
    %3131 = vdwg.mxu0
    %3132 = vmatprep.subr.bf16.mxu0 %v2584
    %3133 = vmatpush1.bf16.msra.mxu0 %v2583
    %3134 = vmatprep.subr.bf16.mxu0 %v2588
    %3135 = vmatpush1.bf16.msra.mxu0 %v2587
    %3136 = vmatprep.subr.bf16.mxu0 %v2592
    %3137 = vmatpush1.bf16.msra.mxu0 %v2591
    %3138 = vmatprep.subr.bf16.mxu0 %v2596
    %3139 = vmatpush1.bf16.msra.mxu0 %v2595
    %3140 = vmatprep.subr.bf16.mxu0 %v2600
    %3141 = vmatpush1.bf16.msra.mxu0 %v2599
    %3142 = vmatprep.subr.bf16.mxu0 %v2604
    %3143 = vmatpush1.bf16.msra.mxu0 %v2603
    %3144 = vmatprep.subr.bf16.mxu0 %v2608
    %3145 = vmatpush1.bf16.msra.mxu0 %v2607
    %3146 = vmatprep.subr.bf16.mxu0 %v2612
    %3147 = vmatpush1.bf16.msra.mxu0 %v2611
    %3148 = vmatprep.subr.bf16.mxu0 %v2616
    %3149 = vmatpush1.bf16.msra.mxu0 %v2615
    %3150 = vmatprep.subr.bf16.mxu0 %v2620
    %3151 = vmatpush1.bf16.msra.mxu0 %v2619
    %3152 = vmatprep.subr.bf16.mxu0 %v2624
    %3153 = vmatpush1.bf16.msra.mxu0 %v2623
    %3154 = vmatprep.subr.bf16.mxu0 %v2628
    %3155 = vmatpush1.bf16.msra.mxu0 %v2627
    %3156 = vmatprep.subr.bf16.mxu0 %v2632
    %3157 = vmatpush1.bf16.msra.mxu0 %v2631
    %3158 = vmatprep.subr.bf16.mxu0 %v2636
    %3159 = vmatpush1.bf16.msra.mxu0 %v2635
    %3160 = vmatprep.subr.bf16.mxu0 %v2640
    %3161 = vmatpush1.bf16.msra.mxu0 %v2639
    %3162 = vmatprep.subr.bf16.mxu0 %v2644
    %3163 = vmatpush1.bf16.msra.mxu0 %v2643
    %3164 = vmatprep.mubr.bf16.mxu0 %v2840
    %3165 = vmatmul.mubr.bf16.gmra.mrb[0].mxu0 %v2839
    %v3166 = vpop.f32.mrb[0].mxu0
    %v3167 = vadd.f32 %v3126, %v3166
    %v3168 = vpop.f32.mrb[0].mxu0
    %v3169 = vadd.f32 %v3128, %v3168
    %v3170 = vpop.f32.mrb[0].mxu0
    %v3171 = vpop.f32.mrb[0].mxu0
    %3172 = vdwg.mxu0
    %s3173 = scalar_lea.vmem [#allocation15], 6
    %v3174 = vld [vmem:[%s3173] ss:$8 sm:$0xf]
    %v3176 = vlaneseq
    %v3177 = vshrl.u32 %v3176, 7
    %v3178 = vsub.s32 0, %v3177
    %v3179 = vrot.slane %v3174, %v3178
    %v3180 = vlaneseq
    %v3181 = vshrl.u32 %v3180, 7
    %v3182 = vsub.s32 1, %v3181
    %v3183 = vrot.slane %v3174, %v3182
    %v3184 = vlaneseq
    %v3185 = vshrl.u32 %v3184, 7
    %v3186 = vsub.s32 2, %v3185
    %v3187 = vrot.slane %v3174, %v3186
    %v3188 = vlaneseq
    %v3189 = vshrl.u32 %v3188, 7
    %v3190 = vsub.s32 3, %v3189
    %v3191 = vrot.slane %v3174, %v3190
    %v3196 = vmul.f32 %v3085, %v3179
    %v3197 = vmul.f32 %v3087, %v3183
    %v3198 = vmul.f32 %v3167, %v3187
    %v3199 = vmul.f32 %v3169, %v3191
    %s3200 = scalar_lea.vmem [#allocation16], 6
    %v3201 = vld [vmem:[%s3200] ss:$8 sm:$0xf]
    %v3203 = vlaneseq
    %v3204 = vshrl.u32 %v3203, 7
    %v3205 = vsub.s32 0, %v3204
    %v3206 = vrot.slane %v3201, %v3205
    %v3207 = vlaneseq
    %v3208 = vshrl.u32 %v3207, 7
    %v3209 = vsub.s32 1, %v3208
    %v3210 = vrot.slane %v3201, %v3209
    %v3211 = vlaneseq
    %v3212 = vshrl.u32 %v3211, 7
    %v3213 = vsub.s32 2, %v3212
    %v3214 = vrot.slane %v3201, %v3213
    %v3215 = vlaneseq
    %v3216 = vshrl.u32 %v3215, 7
    %v3217 = vsub.s32 3, %v3216
    %v3218 = vrot.slane %v3201, %v3217
    %v3223 = vadd.f32 %v3196, %v3206
    %v3224 = vadd.f32 %v3197, %v3210
    %v3225 = vadd.f32 %v3198, %v3214
    %v3226 = vadd.f32 %v3199, %v3218
    %v3227 = vmax.f32 %v3223, 0.0
    %v3228 = vmax.f32 %v3224, 0.0
    %v3229 = vmax.f32 %v3225, 0.0
    %v3230 = vmax.f32 %v3226, 0.0
    %v3231 = vld [vmem:[#allocation12 + $0x400] sm:$0xff]
    %v3232 = vld [vmem:[#allocation12 + $0x408] sm:$0xff]
    %v3233 = vld [vmem:[#allocation12 + $0x410] sm:$0xff]
    %v3234 = vld [vmem:[#allocation12 + $0x418] sm:$0xff]
    %v3235 = vld [vmem:[#allocation12 + $0x420] sm:$0xff]
    %v3236 = vld [vmem:[#allocation12 + $0x428] sm:$0xff]
    %v3237 = vld [vmem:[#allocation12 + $0x430] sm:$0xff]
    %v3238 = vld [vmem:[#allocation12 + $0x438] sm:$0xff]
    %v3239 = vld [vmem:[#allocation12 + $0x440] sm:$0xff]
    %v3240 = vld [vmem:[#allocation12 + $0x448] sm:$0xff]
    %v3241 = vld [vmem:[#allocation12 + $0x450] sm:$0xff]
    %v3242 = vld [vmem:[#allocation12 + $0x458] sm:$0xff]
    %v3243 = vld [vmem:[#allocation12 + $0x460] sm:$0xff]
    %v3244 = vld [vmem:[#allocation12 + $0x468] sm:$0xff]
    %v3245 = vld [vmem:[#allocation12 + $0x470] sm:$0xff]
    %v3246 = vld [vmem:[#allocation12 + $0x478] sm:$0xff]
    %v3247 = vld [vmem:[#allocation12 + $0x480] sm:$0xff]
    %v3248 = vld [vmem:[#allocation12 + $0x488] sm:$0xff]
    %v3249 = vld [vmem:[#allocation12 + $0x490] sm:$0xff]
    %v3250 = vld [vmem:[#allocation12 + $0x498] sm:$0xff]
    %v3251 = vld [vmem:[#allocation12 + $0x4a0] sm:$0xff]
    %v3252 = vld [vmem:[#allocation12 + $0x4a8] sm:$0xff]
    %v3253 = vld [vmem:[#allocation12 + $0x4b0] sm:$0xff]
    %v3254 = vld [vmem:[#allocation12 + $0x4b8] sm:$0xff]
    %v3255 = vld [vmem:[#allocation12 + $0x4c0] sm:$0xff]
    %v3256 = vld [vmem:[#allocation12 + $0x4c8] sm:$0xff]
    %v3257 = vld [vmem:[#allocation12 + $0x4d0] sm:$0xff]
    %v3258 = vld [vmem:[#allocation12 + $0x4d8] sm:$0xff]
    %v3259 = vld [vmem:[#allocation12 + $0x4e0] sm:$0xff]
    %v3260 = vld [vmem:[#allocation12 + $0x4e8] sm:$0xff]
    %v3261 = vld [vmem:[#allocation12 + $0x4f0] sm:$0xff]
    %v3262 = vld [vmem:[#allocation12 + $0x4f8] sm:$0xff]
    %v3263 = vld [vmem:[#allocation12 + $0x500] sm:$0xff]
    %v3264 = vld [vmem:[#allocation12 + $0x508] sm:$0xff]
    %v3265 = vld [vmem:[#allocation12 + $0x510] sm:$0xff]
    %v3266 = vld [vmem:[#allocation12 + $0x518] sm:$0xff]
    %v3267 = vld [vmem:[#allocation12 + $0x520] sm:$0xff]
    %v3268 = vld [vmem:[#allocation12 + $0x528] sm:$0xff]
    %v3269 = vld [vmem:[#allocation12 + $0x530] sm:$0xff]
    %v3270 = vld [vmem:[#allocation12 + $0x538] sm:$0xff]
    %v3271 = vld [vmem:[#allocation12 + $0x540] sm:$0xff]
    %v3272 = vld [vmem:[#allocation12 + $0x548] sm:$0xff]
    %v3273 = vld [vmem:[#allocation12 + $0x550] sm:$0xff]
    %v3274 = vld [vmem:[#allocation12 + $0x558] sm:$0xff]
    %v3275 = vld [vmem:[#allocation12 + $0x560] sm:$0xff]
    %v3276 = vld [vmem:[#allocation12 + $0x568] sm:$0xff]
    %v3277 = vld [vmem:[#allocation12 + $0x570] sm:$0xff]
    %v3278 = vld [vmem:[#allocation12 + $0x578] sm:$0xff]
    %v3279 = vld [vmem:[#allocation12 + $0x580] sm:$0xff]
    %v3280 = vld [vmem:[#allocation12 + $0x588] sm:$0xff]
    %v3281 = vld [vmem:[#allocation12 + $0x590] sm:$0xff]
    %v3282 = vld [vmem:[#allocation12 + $0x598] sm:$0xff]
    %v3283 = vld [vmem:[#allocation12 + $0x5a0] sm:$0xff]
    %v3284 = vld [vmem:[#allocation12 + $0x5a8] sm:$0xff]
    %v3285 = vld [vmem:[#allocation12 + $0x5b0] sm:$0xff]
    %v3286 = vld [vmem:[#allocation12 + $0x5b8] sm:$0xff]
    %v3287 = vld [vmem:[#allocation12 + $0x5c0] sm:$0xff]
    %v3288 = vld [vmem:[#allocation12 + $0x5c8] sm:$0xff]
    %v3289 = vld [vmem:[#allocation12 + $0x5d0] sm:$0xff]
    %v3290 = vld [vmem:[#allocation12 + $0x5d8] sm:$0xff]
    %v3291 = vld [vmem:[#allocation12 + $0x5e0] sm:$0xff]
    %v3292 = vld [vmem:[#allocation12 + $0x5e8] sm:$0xff]
    %v3293 = vld [vmem:[#allocation12 + $0x5f0] sm:$0xff]
    %v3294 = vld [vmem:[#allocation12 + $0x5f8] sm:$0xff]
    %s3295 = scalar_lea.vmem [#allocation15], 7
    %v3296 = vld [vmem:[%s3295] ss:$8 sm:$0xf]
    %s3297 = scalar_lea.vmem [#allocation16], 7
    %v3298 = vld [vmem:[%s3297] ss:$8 sm:$0xf]
    %v3299 = vunpack.c.l.s8.bf16 %v3231
    %v3300 = vunpack.c.l.s8.bf16 %v3232
    %v3301 = vunpack.c.l.s8.bf16 %v3233
    %v3302 = vunpack.c.l.s8.bf16 %v3234
    %v3303 = vunpack.c.h.s8.bf16 %v3231
    %v3304 = vunpack.c.h.s8.bf16 %v3232
    %v3305 = vunpack.c.h.s8.bf16 %v3233
    %v3306 = vunpack.c.h.s8.bf16 %v3234
    %v3307 = vunpack.c.l.s8.bf16 %v3235
    %v3308 = vunpack.c.l.s8.bf16 %v3236
    %v3309 = vunpack.c.l.s8.bf16 %v3237
    %v3310 = vunpack.c.l.s8.bf16 %v3238
    %v3311 = vunpack.c.h.s8.bf16 %v3235
    %v3312 = vunpack.c.h.s8.bf16 %v3236
    %v3313 = vunpack.c.h.s8.bf16 %v3237
    %v3314 = vunpack.c.h.s8.bf16 %v3238
    %v3315 = vunpack.c.l.s8.bf16 %v3239
    %v3316 = vunpack.c.l.s8.bf16 %v3240
    %v3317 = vunpack.c.l.s8.bf16 %v3241
    %v3318 = vunpack.c.l.s8.bf16 %v3242
    %v3319 = vunpack.c.h.s8.bf16 %v3239
    %v3320 = vunpack.c.h.s8.bf16 %v3240
    %v3321 = vunpack.c.h.s8.bf16 %v3241
    %v3322 = vunpack.c.h.s8.bf16 %v3242
    %v3323 = vunpack.c.l.s8.bf16 %v3243
    %v3324 = vunpack.c.l.s8.bf16 %v3244
    %v3325 = vunpack.c.l.s8.bf16 %v3245
    %v3326 = vunpack.c.l.s8.bf16 %v3246
    %v3327 = vunpack.c.h.s8.bf16 %v3243
    %v3328 = vunpack.c.h.s8.bf16 %v3244
    %v3329 = vunpack.c.h.s8.bf16 %v3245
    %v3330 = vunpack.c.h.s8.bf16 %v3246
    %v3331 = vunpack.c.l.s8.bf16 %v3247
    %v3332 = vunpack.c.l.s8.bf16 %v3248
    %v3333 = vunpack.c.l.s8.bf16 %v3249
    %v3334 = vunpack.c.l.s8.bf16 %v3250
    %v3335 = vunpack.c.h.s8.bf16 %v3247
    %v3336 = vunpack.c.h.s8.bf16 %v3248
    %v3337 = vunpack.c.h.s8.bf16 %v3249
    %v3338 = vunpack.c.h.s8.bf16 %v3250
    %v3339 = vunpack.c.l.s8.bf16 %v3251
    %v3340 = vunpack.c.l.s8.bf16 %v3252
    %v3341 = vunpack.c.l.s8.bf16 %v3253
    %v3342 = vunpack.c.l.s8.bf16 %v3254
    %v3343 = vunpack.c.h.s8.bf16 %v3251
    %v3344 = vunpack.c.h.s8.bf16 %v3252
    %v3345 = vunpack.c.h.s8.bf16 %v3253
    %v3346 = vunpack.c.h.s8.bf16 %v3254
    %v3347 = vunpack.c.l.s8.bf16 %v3255
    %v3348 = vunpack.c.l.s8.bf16 %v3256
    %v3349 = vunpack.c.l.s8.bf16 %v3257
    %v3350 = vunpack.c.l.s8.bf16 %v3258
    %v3351 = vunpack.c.h.s8.bf16 %v3255
    %v3352 = vunpack.c.h.s8.bf16 %v3256
    %v3353 = vunpack.c.h.s8.bf16 %v3257
    %v3354 = vunpack.c.h.s8.bf16 %v3258
    %v3355 = vunpack.c.l.s8.bf16 %v3259
    %v3356 = vunpack.c.l.s8.bf16 %v3260
    %v3357 = vunpack.c.l.s8.bf16 %v3261
    %v3358 = vunpack.c.l.s8.bf16 %v3262
    %v3359 = vunpack.c.h.s8.bf16 %v3259
    %v3360 = vunpack.c.h.s8.bf16 %v3260
    %v3361 = vunpack.c.h.s8.bf16 %v3261
    %v3362 = vunpack.c.h.s8.bf16 %v3262
    %v3363 = vunpack.c.l.s8.bf16 %v3263
    %v3364 = vunpack.c.l.s8.bf16 %v3264
    %v3365 = vunpack.c.l.s8.bf16 %v3265
    %v3366 = vunpack.c.l.s8.bf16 %v3266
    %v3367 = vunpack.c.h.s8.bf16 %v3263
    %v3368 = vunpack.c.h.s8.bf16 %v3264
    %v3369 = vunpack.c.h.s8.bf16 %v3265
    %v3370 = vunpack.c.h.s8.bf16 %v3266
    %v3371 = vunpack.c.l.s8.bf16 %v3267
    %v3372 = vunpack.c.l.s8.bf16 %v3268
    %v3373 = vunpack.c.l.s8.bf16 %v3269
    %v3374 = vunpack.c.l.s8.bf16 %v3270
    %v3375 = vunpack.c.h.s8.bf16 %v3267
    %v3376 = vunpack.c.h.s8.bf16 %v3268
    %v3377 = vunpack.c.h.s8.bf16 %v3269
    %v3378 = vunpack.c.h.s8.bf16 %v3270
    %v3379 = vunpack.c.l.s8.bf16 %v3271
    %v3380 = vunpack.c.l.s8.bf16 %v3272
    %v3381 = vunpack.c.l.s8.bf16 %v3273
    %v3382 = vunpack.c.l.s8.bf16 %v3274
    %v3383 = vunpack.c.h.s8.bf16 %v3271
    %v3384 = vunpack.c.h.s8.bf16 %v3272
    %v3385 = vunpack.c.h.s8.bf16 %v3273
    %v3386 = vunpack.c.h.s8.bf16 %v3274
    %v3387 = vunpack.c.l.s8.bf16 %v3275
    %v3388 = vunpack.c.l.s8.bf16 %v3276
    %v3389 = vunpack.c.l.s8.bf16 %v3277
    %v3390 = vunpack.c.l.s8.bf16 %v3278
    %v3391 = vunpack.c.h.s8.bf16 %v3275
    %v3392 = vunpack.c.h.s8.bf16 %v3276
    %v3393 = vunpack.c.h.s8.bf16 %v3277
    %v3394 = vunpack.c.h.s8.bf16 %v3278
    %v3395 = vunpack.c.l.s8.bf16 %v3279
    %v3396 = vunpack.c.l.s8.bf16 %v3280
    %v3397 = vunpack.c.l.s8.bf16 %v3281
    %v3398 = vunpack.c.l.s8.bf16 %v3282
    %v3399 = vunpack.c.h.s8.bf16 %v3279
    %v3400 = vunpack.c.h.s8.bf16 %v3280
    %v3401 = vunpack.c.h.s8.bf16 %v3281
    %v3402 = vunpack.c.h.s8.bf16 %v3282
    %v3403 = vunpack.c.l.s8.bf16 %v3283
    %v3404 = vunpack.c.l.s8.bf16 %v3284
    %v3405 = vunpack.c.l.s8.bf16 %v3285
    %v3406 = vunpack.c.l.s8.bf16 %v3286
    %v3407 = vunpack.c.h.s8.bf16 %v3283
    %v3408 = vunpack.c.h.s8.bf16 %v3284
    %v3409 = vunpack.c.h.s8.bf16 %v3285
    %v3410 = vunpack.c.h.s8.bf16 %v3286
    %v3411 = vunpack.c.l.s8.bf16 %v3287
    %v3412 = vunpack.c.l.s8.bf16 %v3288
    %v3413 = vunpack.c.l.s8.bf16 %v3289
    %v3414 = vunpack.c.l.s8.bf16 %v3290
    %v3415 = vunpack.c.h.s8.bf16 %v3287
    %v3416 = vunpack.c.h.s8.bf16 %v3288
    %v3417 = vunpack.c.h.s8.bf16 %v3289
    %v3418 = vunpack.c.h.s8.bf16 %v3290
    %v3419 = vunpack.c.l.s8.bf16 %v3291
    %v3420 = vunpack.c.l.s8.bf16 %v3292
    %v3421 = vunpack.c.l.s8.bf16 %v3293
    %v3422 = vunpack.c.l.s8.bf16 %v3294
    %v3423 = vunpack.c.h.s8.bf16 %v3291
    %v3424 = vunpack.c.h.s8.bf16 %v3292
    %v3425 = vunpack.c.h.s8.bf16 %v3293
    %v3426 = vunpack.c.h.s8.bf16 %v3294
    %v3427 = vpack.c.bf16 %v3227, %v3227
    %v3428 = vpack.c.bf16 %v3228, %v3228
    %v3429 = vpack.c.bf16 %v3229, %v3229
    %v3430 = vpack.c.bf16 %v3230, %v3230
    %3431 = vmatprep.subr.bf16.mxu0 %v3300
    %3432 = vmatpush1.bf16.msra.mxu0 %v3299
    %3433 = vmatprep.subr.bf16.mxu0 %v3304
    %3434 = vmatpush1.bf16.msra.mxu0 %v3303
    %3435 = vmatprep.subr.bf16.mxu0 %v3308
    %3436 = vmatpush1.bf16.msra.mxu0 %v3307
    %3437 = vmatprep.subr.bf16.mxu0 %v3312
    %3438 = vmatpush1.bf16.msra.mxu0 %v3311
    %3439 = vmatprep.subr.bf16.mxu0 %v3316
    %3440 = vmatpush1.bf16.msra.mxu0 %v3315
    %3441 = vmatprep.subr.bf16.mxu0 %v3320
    %3442 = vmatpush1.bf16.msra.mxu0 %v3319
    %3443 = vmatprep.subr.bf16.mxu0 %v3324
    %3444 = vmatpush1.bf16.msra.mxu0 %v3323
    %3445 = vmatprep.subr.bf16.mxu0 %v3328
    %3446 = vmatpush1.bf16.msra.mxu0 %v3327
    %3447 = vmatprep.subr.bf16.mxu0 %v3332
    %3448 = vmatpush1.bf16.msra.mxu0 %v3331
    %3449 = vmatprep.subr.bf16.mxu0 %v3336
    %3450 = vmatpush1.bf16.msra.mxu0 %v3335
    %3451 = vmatprep.subr.bf16.mxu0 %v3340
    %3452 = vmatpush1.bf16.msra.mxu0 %v3339
    %3453 = vmatprep.subr.bf16.mxu0 %v3344
    %3454 = vmatpush1.bf16.msra.mxu0 %v3343
    %3455 = vmatprep.subr.bf16.mxu0 %v3348
    %3456 = vmatpush1.bf16.msra.mxu0 %v3347
    %3457 = vmatprep.subr.bf16.mxu0 %v3352
    %3458 = vmatpush1.bf16.msra.mxu0 %v3351
    %3459 = vmatprep.subr.bf16.mxu0 %v3356
    %3460 = vmatpush1.bf16.msra.mxu0 %v3355
    %3461 = vmatprep.subr.bf16.mxu0 %v3360
    %3462 = vmatpush1.bf16.msra.mxu0 %v3359
    %3463 = vmatprep.mubr.bf16.mxu0 %v3428
    %3464 = vmatmul.mubr.bf16.gmra.mrb[0].mxu0 %v3427
    %v3465 = vpop.f32.mrb[0].mxu0
    %v3466 = vadd.f32 0.0, %v3465
    %v3467 = vpop.f32.mrb[0].mxu0
    %v3468 = vadd.f32 0.0, %v3467
    %v3469 = vpop.f32.mrb[0].mxu0
    %v3470 = vpop.f32.mrb[0].mxu0
    %3471 = vdwg.mxu0
    %3472 = vmatprep.subr.bf16.mxu0 %v3364
    %3473 = vmatpush1.bf16.msra.mxu0 %v3363
    %3474 = vmatprep.subr.bf16.mxu0 %v3368
    %3475 = vmatpush1.bf16.msra.mxu0 %v3367
    %3476 = vmatprep.subr.bf16.mxu0 %v3372
    %3477 = vmatpush1.bf16.msra.mxu0 %v3371
    %3478 = vmatprep.subr.bf16.mxu0 %v3376
    %3479 = vmatpush1.bf16.msra.mxu0 %v3375
    %3480 = vmatprep.subr.bf16.mxu0 %v3380
    %3481 = vmatpush1.bf16.msra.mxu0 %v3379
    %3482 = vmatprep.subr.bf16.mxu0 %v3384
    %3483 = vmatpush1.bf16.msra.mxu0 %v3383
    %3484 = vmatprep.subr.bf16.mxu0 %v3388
    %3485 = vmatpush1.bf16.msra.mxu0 %v3387
    %3486 = vmatprep.subr.bf16.mxu0 %v3392
    %3487 = vmatpush1.bf16.msra.mxu0 %v3391
    %3488 = vmatprep.subr.bf16.mxu0 %v3396
    %3489 = vmatpush1.bf16.msra.mxu0 %v3395
    %3490 = vmatprep.subr.bf16.mxu0 %v3400
    %3491 = vmatpush1.bf16.msra.mxu0 %v3399
    %3492 = vmatprep.subr.bf16.mxu0 %v3404
    %3493 = vmatpush1.bf16.msra.mxu0 %v3403
    %3494 = vmatprep.subr.bf16.mxu0 %v3408
    %3495 = vmatpush1.bf16.msra.mxu0 %v3407
    %3496 = vmatprep.subr.bf16.mxu0 %v3412
    %3497 = vmatpush1.bf16.msra.mxu0 %v3411
    %3498 = vmatprep.subr.bf16.mxu0 %v3416
    %3499 = vmatpush1.bf16.msra.mxu0 %v3415
    %3500 = vmatprep.subr.bf16.mxu0 %v3420
    %3501 = vmatpush1.bf16.msra.mxu0 %v3419
    %3502 = vmatprep.subr.bf16.mxu0 %v3424
    %3503 = vmatpush1.bf16.msra.mxu0 %v3423
    %3504 = vmatprep.mubr.bf16.mxu0 %v3430
    %3505 = vmatmul.mubr.bf16.gmra.mrb[0].mxu0 %v3429
    %v3506 = vpop.f32.mrb[0].mxu0
    %v3507 = vadd.f32 %v3466, %v3506
    %v3508 = vpop.f32.mrb[0].mxu0
    %v3509 = vadd.f32 %v3468, %v3508
    %v3510 = vpop.f32.mrb[0].mxu0
    %v3511 = vpop.f32.mrb[0].mxu0
    %3512 = vdwg.mxu0
    %3513 = vmatprep.subr.bf16.mxu0 %v3302
    %3514 = vmatpush1.bf16.msra.mxu0 %v3301
    %3515 = vmatprep.subr.bf16.mxu0 %v3306
    %3516 = vmatpush1.bf16.msra.mxu0 %v3305
    %3517 = vmatprep.subr.bf16.mxu0 %v3310
    %3518 = vmatpush1.bf16.msra.mxu0 %v3309
    %3519 = vmatprep.subr.bf16.mxu0 %v3314
    %3520 = vmatpush1.bf16.msra.mxu0 %v3313
    %3521 = vmatprep.subr.bf16.mxu0 %v3318
    %3522 = vmatpush1.bf16.msra.mxu0 %v3317
    %3523 = vmatprep.subr.bf16.mxu0 %v3322
    %3524 = vmatpush1.bf16.msra.mxu0 %v3321
    %3525 = vmatprep.subr.bf16.mxu0 %v3326
    %3526 = vmatpush1.bf16.msra.mxu0 %v3325
    %3527 = vmatprep.subr.bf16.mxu0 %v3330
    %3528 = vmatpush1.bf16.msra.mxu0 %v3329
    %3529 = vmatprep.subr.bf16.mxu0 %v3334
    %3530 = vmatpush1.bf16.msra.mxu0 %v3333
    %3531 = vmatprep.subr.bf16.mxu0 %v3338
    %3532 = vmatpush1.bf16.msra.mxu0 %v3337
    %3533 = vmatprep.subr.bf16.mxu0 %v3342
    %3534 = vmatpush1.bf16.msra.mxu0 %v3341
    %3535 = vmatprep.subr.bf16.mxu0 %v3346
    %3536 = vmatpush1.bf16.msra.mxu0 %v3345
    %3537 = vmatprep.subr.bf16.mxu0 %v3350
    %3538 = vmatpush1.bf16.msra.mxu0 %v3349
    %3539 = vmatprep.subr.bf16.mxu0 %v3354
    %3540 = vmatpush1.bf16.msra.mxu0 %v3353
    %3541 = vmatprep.subr.bf16.mxu0 %v3358
    %3542 = vmatpush1.bf16.msra.mxu0 %v3357
    %3543 = vmatprep.subr.bf16.mxu0 %v3362
    %3544 = vmatpush1.bf16.msra.mxu0 %v3361
    %3545 = vmatprep.mubr.bf16.mxu0 %v3428
    %3546 = vmatmul.mubr.bf16.gmra.mrb[0].mxu0 %v3427
    %v3547 = vpop.f32.mrb[0].mxu0
    %v3548 = vadd.f32 0.0, %v3547
    %v3549 = vpop.f32.mrb[0].mxu0
    %v3550 = vadd.f32 0.0, %v3549
    %v3551 = vpop.f32.mrb[0].mxu0
    %v3552 = vpop.f32.mrb[0].mxu0
    %3553 = vdwg.mxu0
    %3554 = vmatprep.subr.bf16.mxu0 %v3366
    %3555 = vmatpush1.bf16.msra.mxu0 %v3365
    %3556 = vmatprep.subr.bf16.mxu0 %v3370
    %3557 = vmatpush1.bf16.msra.mxu0 %v3369
    %3558 = vmatprep.subr.bf16.mxu0 %v3374
    %3559 = vmatpush1.bf16.msra.mxu0 %v3373
    %3560 = vmatprep.subr.bf16.mxu0 %v3378
    %3561 = vmatpush1.bf16.msra.mxu0 %v3377
    %3562 = vmatprep.subr.bf16.mxu0 %v3382
    %3563 = vmatpush1.bf16.msra.mxu0 %v3381
    %3564 = vmatprep.subr.bf16.mxu0 %v3386
    %3565 = vmatpush1.bf16.msra.mxu0 %v3385
    %3566 = vmatprep.subr.bf16.mxu0 %v3390
    %3567 = vmatpush1.bf16.msra.mxu0 %v3389
    %3568 = vmatprep.subr.bf16.mxu0 %v3394
    %3569 = vmatpush1.bf16.msra.mxu0 %v3393
    %3570 = vmatprep.subr.bf16.mxu0 %v3398
    %3571 = vmatpush1.bf16.msra.mxu0 %v3397
    %3572 = vmatprep.subr.bf16.mxu0 %v3402
    %3573 = vmatpush1.bf16.msra.mxu0 %v3401
    %3574 = vmatprep.subr.bf16.mxu0 %v3406
    %3575 = vmatpush1.bf16.msra.mxu0 %v3405
    %3576 = vmatprep.subr.bf16.mxu0 %v3410
    %3577 = vmatpush1.bf16.msra.mxu0 %v3409
    %3578 = vmatprep.subr.bf16.mxu0 %v3414
    %3579 = vmatpush1.bf16.msra.mxu0 %v3413
    %3580 = vmatprep.subr.bf16.mxu0 %v3418
    %3581 = vmatpush1.bf16.msra.mxu0 %v3417
    %3582 = vmatprep.subr.bf16.mxu0 %v3422
    %3583 = vmatpush1.bf16.msra.mxu0 %v3421
    %3584 = vmatprep.subr.bf16.mxu0 %v3426
    %3585 = vmatpush1.bf16.msra.mxu0 %v3425
    %3586 = vmatprep.mubr.bf16.mxu0 %v3430
    %3587 = vmatmul.mubr.bf16.gmra.mrb[0].mxu0 %v3429
    %v3588 = vpop.f32.mrb[0].mxu0
    %v3589 = vadd.f32 %v3548, %v3588
    %v3590 = vpop.f32.mrb[0].mxu0
    %v3591 = vadd.f32 %v3550, %v3590
    %v3592 = vpop.f32.mrb[0].mxu0
    %v3593 = vpop.f32.mrb[0].mxu0
    %3594 = vdwg.mxu0
    %v3596 = vlaneseq
    %v3597 = vshrl.u32 %v3596, 7
    %v3598 = vsub.s32 0, %v3597
    %v3599 = vrot.slane %v3296, %v3598
    %v3600 = vlaneseq
    %v3601 = vshrl.u32 %v3600, 7
    %v3602 = vsub.s32 1, %v3601
    %v3603 = vrot.slane %v3296, %v3602
    %v3604 = vlaneseq
    %v3605 = vshrl.u32 %v3604, 7
    %v3606 = vsub.s32 2, %v3605
    %v3607 = vrot.slane %v3296, %v3606
    %v3608 = vlaneseq
    %v3609 = vshrl.u32 %v3608, 7
    %v3610 = vsub.s32 3, %v3609
    %v3611 = vrot.slane %v3296, %v3610
    %v3616 = vmul.f32 %v3507, %v3599
    %v3617 = vmul.f32 %v3509, %v3603
    %v3618 = vmul.f32 %v3589, %v3607
    %v3619 = vmul.f32 %v3591, %v3611
    %v3621 = vlaneseq
    %v3622 = vshrl.u32 %v3621, 7
    %v3623 = vsub.s32 0, %v3622
    %v3624 = vrot.slane %v3298, %v3623
    %v3625 = vlaneseq
    %v3626 = vshrl.u32 %v3625, 7
    %v3627 = vsub.s32 1, %v3626
    %v3628 = vrot.slane %v3298, %v3627
    %v3629 = vlaneseq
    %v3630 = vshrl.u32 %v3629, 7
    %v3631 = vsub.s32 2, %v3630
    %v3632 = vrot.slane %v3298, %v3631
    %v3633 = vlaneseq
    %v3634 = vshrl.u32 %v3633, 7
    %v3635 = vsub.s32 3, %v3634
    %v3636 = vrot.slane %v3298, %v3635
    %v3641 = vadd.f32 %v3616, %v3624
    %v3642 = vadd.f32 %v3617, %v3628
    %v3643 = vadd.f32 %v3618, %v3632
    %v3644 = vadd.f32 %v3619, %v3636
    %v3645 = vmax.f32 %v3641, 0.0
    %v3646 = vmax.f32 %v3642, 0.0
    %v3647 = vmax.f32 %v3643, 0.0
    %v3648 = vmax.f32 %v3644, 0.0
    %v3649 = vld [vmem:[#allocation13] sm:$0xff]
    %v3650 = vld [vmem:[#allocation13 + $0x8] sm:$0xff]
    %v3651 = vld [vmem:[#allocation13 + $0x10] sm:$0xff]
    %v3652 = vld [vmem:[#allocation13 + $0x18] sm:$0xff]
    %v3653 = vld [vmem:[#allocation13 + $0x20] sm:$0xff]
    %v3654 = vld [vmem:[#allocation13 + $0x28] sm:$0xff]
    %v3655 = vld [vmem:[#allocation13 + $0x30] sm:$0xff]
    %v3656 = vld [vmem:[#allocation13 + $0x38] sm:$0xff]
    %v3657 = vld [vmem:[#allocation13 + $0x40] sm:$0xff]
    %v3658 = vld [vmem:[#allocation13 + $0x48] sm:$0xff]
    %v3659 = vld [vmem:[#allocation13 + $0x50] sm:$0xff]
    %v3660 = vld [vmem:[#allocation13 + $0x58] sm:$0xff]
    %v3661 = vld [vmem:[#allocation13 + $0x60] sm:$0xff]
    %v3662 = vld [vmem:[#allocation13 + $0x68] sm:$0xff]
    %v3663 = vld [vmem:[#allocation13 + $0x70] sm:$0xff]
    %v3664 = vld [vmem:[#allocation13 + $0x78] sm:$0xff]
    %v3665 = vld [vmem:[#allocation15 + $0x20] ss:$0 sm:$0xff]
    %v3666 = vld [vmem:[#allocation16 + $0x20] ss:$0 sm:$0xff]
    %v3667 = vunpack.c.l.s8.bf16 %v3649
    %v3668 = vunpack.c.h.s8.bf16 %v3649
    %v3669 = vunpack.c.l.s8.bf16 %v3650
    %v3670 = vunpack.c.h.s8.bf16 %v3650
    %v3671 = vunpack.c.l.s8.bf16 %v3651
    %v3672 = vunpack.c.h.s8.bf16 %v3651
    %v3673 = vunpack.c.l.s8.bf16 %v3652
    %v3674 = vunpack.c.h.s8.bf16 %v3652
    %v3675 = vunpack.c.l.s8.bf16 %v3653
    %v3676 = vunpack.c.h.s8.bf16 %v3653
    %v3677 = vunpack.c.l.s8.bf16 %v3654
    %v3678 = vunpack.c.h.s8.bf16 %v3654
    %v3679 = vunpack.c.l.s8.bf16 %v3655
    %v3680 = vunpack.c.h.s8.bf16 %v3655
    %v3681 = vunpack.c.l.s8.bf16 %v3656
    %v3682 = vunpack.c.h.s8.bf16 %v3656
    %v3683 = vunpack.c.l.s8.bf16 %v3657
    %v3684 = vunpack.c.h.s8.bf16 %v3657
    %v3685 = vunpack.c.l.s8.bf16 %v3658
    %v3686 = vunpack.c.h.s8.bf16 %v3658
    %v3687 = vunpack.c.l.s8.bf16 %v3659
    %v3688 = vunpack.c.h.s8.bf16 %v3659
    %v3689 = vunpack.c.l.s8.bf16 %v3660
    %v3690 = vunpack.c.h.s8.bf16 %v3660
    %v3691 = vunpack.c.l.s8.bf16 %v3661
    %v3692 = vunpack.c.h.s8.bf16 %v3661
    %v3693 = vunpack.c.l.s8.bf16 %v3662
    %v3694 = vunpack.c.h.s8.bf16 %v3662
    %v3695 = vunpack.c.l.s8.bf16 %v3663
    %v3696 = vunpack.c.h.s8.bf16 %v3663
    %v3697 = vunpack.c.l.s8.bf16 %v3664
    %v3698 = vunpack.c.h.s8.bf16 %v3664
    %v3699 = vpack.c.bf16 %v3645, %v3645
    %v3700 = vpack.c.bf16 %v3646, %v3646
    %v3701 = vpack.c.bf16 %v3647, %v3647
    %v3702 = vpack.c.bf16 %v3648, %v3648
    %3703 = vmatprep.subr.bf16.mxu0 0
    %3704 = vmatpush1.bf16.msra.mxu0 %v3667
    %3705 = vmatprep.subr.bf16.mxu0 0
    %3706 = vmatpush1.bf16.msra.mxu0 %v3668
    %3707 = vmatprep.subr.bf16.mxu0 0
    %3708 = vmatpush1.bf16.msra.mxu0 %v3669
    %3709 = vmatprep.subr.bf16.mxu0 0
    %3710 = vmatpush1.bf16.msra.mxu0 %v3670
    %3711 = vmatprep.subr.bf16.mxu0 0
    %3712 = vmatpush1.bf16.msra.mxu0 %v3671
    %3713 = vmatprep.subr.bf16.mxu0 0
    %3714 = vmatpush1.bf16.msra.mxu0 %v3672
    %3715 = vmatprep.subr.bf16.mxu0 0
    %3716 = vmatpush1.bf16.msra.mxu0 %v3673
    %3717 = vmatprep.subr.bf16.mxu0 0
    %3718 = vmatpush1.bf16.msra.mxu0 %v3674
    %3719 = vmatprep.subr.bf16.mxu0 0
    %3720 = vmatpush1.bf16.msra.mxu0 %v3675
    %3721 = vmatprep.subr.bf16.mxu0 0
    %3722 = vmatpush1.bf16.msra.mxu0 %v3676
    %3723 = vmatprep.subr.bf16.mxu0 0
    %3724 = vmatpush1.bf16.msra.mxu0 %v3677
    %3725 = vmatprep.subr.bf16.mxu0 0
    %3726 = vmatpush1.bf16.msra.mxu0 %v3678
    %3727 = vmatprep.subr.bf16.mxu0 0
    %3728 = vmatpush1.bf16.msra.mxu0 %v3679
    %3729 = vmatprep.subr.bf16.mxu0 0
    %3730 = vmatpush1.bf16.msra.mxu0 %v3680
    %3731 = vmatprep.subr.bf16.mxu0 0
    %3732 = vmatpush1.bf16.msra.mxu0 %v3681
    %3733 = vmatprep.subr.bf16.mxu0 0
    %3734 = vmatpush1.bf16.msra.mxu0 %v3682
    %3735 = vmatprep.mubr.bf16.mxu0 %v3700
    %3736 = vmatmul.mubr.bf16.gmra.mrb[0].mxu0 %v3699
    %v3737 = vpop.f32.mrb[0].mxu0
    %v3738 = vadd.f32 0.0, %v3737
    %v3739 = vpop.f32.mrb[0].mxu0
    %v3740 = vpop.f32.mrb[0].mxu0
    %v3741 = vpop.f32.mrb[0].mxu0
    %3742 = vdwg.mxu0
    %3743 = vmatprep.subr.bf16.mxu0 0
    %3744 = vmatpush1.bf16.msra.mxu0 %v3683
    %3745 = vmatprep.subr.bf16.mxu0 0
    %3746 = vmatpush1.bf16.msra.mxu0 %v3684
    %3747 = vmatprep.subr.bf16.mxu0 0
    %3748 = vmatpush1.bf16.msra.mxu0 %v3685
    %3749 = vmatprep.subr.bf16.mxu0 0
    %3750 = vmatpush1.bf16.msra.mxu0 %v3686
    %3751 = vmatprep.subr.bf16.mxu0 0
    %3752 = vmatpush1.bf16.msra.mxu0 %v3687
    %3753 = vmatprep.subr.bf16.mxu0 0
    %3754 = vmatpush1.bf16.msra.mxu0 %v3688
    %3755 = vmatprep.subr.bf16.mxu0 0
    %3756 = vmatpush1.bf16.msra.mxu0 %v3689
    %3757 = vmatprep.subr.bf16.mxu0 0
    %3758 = vmatpush1.bf16.msra.mxu0 %v3690
    %3759 = vmatprep.subr.bf16.mxu0 0
    %3760 = vmatpush1.bf16.msra.mxu0 %v3691
    %3761 = vmatprep.subr.bf16.mxu0 0
    %3762 = vmatpush1.bf16.msra.mxu0 %v3692
    %3763 = vmatprep.subr.bf16.mxu0 0
    %3764 = vmatpush1.bf16.msra.mxu0 %v3693
    %3765 = vmatprep.subr.bf16.mxu0 0
    %3766 = vmatpush1.bf16.msra.mxu0 %v3694
    %3767 = vmatprep.subr.bf16.mxu0 0
    %3768 = vmatpush1.bf16.msra.mxu0 %v3695
    %3769 = vmatprep.subr.bf16.mxu0 0
    %3770 = vmatpush1.bf16.msra.mxu0 %v3696
    %3771 = vmatprep.subr.bf16.mxu0 0
    %3772 = vmatpush1.bf16.msra.mxu0 %v3697
    %3773 = vmatprep.subr.bf16.mxu0 0
    %3774 = vmatpush1.bf16.msra.mxu0 %v3698
    %3775 = vmatprep.mubr.bf16.mxu0 %v3702
    %3776 = vmatmul.mubr.bf16.gmra.mrb[0].mxu0 %v3701
    %v3777 = vpop.f32.mrb[0].mxu0
    %v3778 = vadd.f32 %v3738, %v3777
    %v3779 = vpop.f32.mrb[0].mxu0
    %v3780 = vpop.f32.mrb[0].mxu0
    %v3781 = vpop.f32.mrb[0].mxu0
    %3782 = vdwg.mxu0
    %v3783 = vmul.f32 %v3778, %v3665
    %v3784 = vadd.f32 %v3783, %v3666
    %vm3785 = vcmask 263168
    %3786 = vst.msk [vmem:[#allocation18] sm:$0x3] %vm3785, %v3784
    // Predicated region
    $region66: #{tpu_custom_call.1} parent=1 // pred_check
      _
    $region67: #{tpu_custom_call.1} parent=1 // pred_check_branch
      %3788 = sbr.rel (0) target = $region69
    $region68: #{tpu_custom_call.1} parent=1 // pred_region
      %s3790 = ssub.s32 32, 32
      %3791 = vsyncadd [#allocation6], %s3790
      %s3793 = sshll.u32 [#allocation18], 4
      %s3794 = int_to_ptr.vmem [resolvable:$true] %s3793
      %3796 = dma.vmem_to_hbm [thread:$0]  %s3794, 32, %s8, [#allocation6]
    $region69: #{tpu_custom_call.1} parent=1 // pred_fallthru
      _
    // Predicated region
    $region70: #{tpu_custom_call.1} parent=1 // pred_check
      _
    $region71: #{tpu_custom_call.1} parent=1 // pred_check_branch
      %3798 = sbr.rel (0) target = $region73
    $region72: #{tpu_custom_call.1} parent=1 // pred_region
      %3799 = dma.done [#allocation6], 32
    $region73: #{tpu_custom_call.1} parent=1 // pred_fallthru
      _
    %3800 = vsyncpa [#allocation5], 1
    %3801 = vsyncpa [#allocation8], 1
    %3802 = vsyncpa [#allocation11], 1
    %3803 = vsyncpa [#allocation14], 1
    %3804 = vsyncpa [#allocation17], 1
    %3805 = vsyncpa [#allocation6], 1

</llo_original>
